<compile_context>
chip_gen: v6e
topology: v6e:2x2x1
jax: 0.10.0
libtpu: 0.0.40
codegen_flags: <defaults>
</compile_context>

<pallas_src>
import functools

import jax
import jax.numpy as jnp
from jax.experimental import pallas as pl
from jax.experimental.pallas import tpu as pltpu


def _round_up(x, m):
    return ((x + m - 1) // m) * m


def _cdiv(a, b):
    return -(-a // b)


@functools.lru_cache(maxsize=1)
def _roll_mode():
    """Pin down pltpu.roll's shift convention with a tiny probe kernel.

    Returns 1 if pltpu.roll matches np.roll (out[i] = in[i - shift]),
    -1 for the reverse convention, 0 if roll is unavailable (the main kernel
    then uses a concatenate-based column shift instead).
    """
    try:
        def probe(x_ref, o_ref):
            o_ref[...] = pltpu.roll(x_ref[...], shift=1, axis=1)

        x = jnp.broadcast_to(
            jax.lax.iota(jnp.float32, 8).reshape(1, 8, 1), (2, 8, 128))
        out = pl.pallas_call(
            probe, out_shape=jax.ShapeDtypeStruct((2, 8, 128), jnp.float32))(x)
        v = float(out[0, 1, 0])
        if v == 0.0:
            return 1
        if v == 2.0:
            return -1
        return 0
    except Exception:   # fallback path, never fatal
        return 0


def _default_vmem_limit():
    try:
        cap = int(pltpu.get_tpu_info().vmem_capacity_bytes)
        # ~60% of physical: ~76 MiB on v5e/v6e (128 MiB), ~38 MiB on v7x (64 MiB)
        return min(96 * 1024 * 1024, (cap * 3) // 5)
    except Exception:
        return 48 * 1024 * 1024      # safe on every generation


def _dsconv_kernel(x_hbm, wd_ref, b1_ref, wp_ref, b2_ref, o_ref, buf, sems,
                   *, stride, tr, roll_mode, mxu_dtype):
    """One (image n, output-row-tile t) grid step.

    x_hbm : (N, Hrows, s*s, Wpad, Cpad) phase-split padded activation (HBM, pl.ANY)
    wd_ref: (9, 1, Cpad)      depthwise 3x3 taps with BN1 scale folded in (VMEM)
    b1_ref: (1, Cpad)         depthwise bias + BN1 shift (folded)
    wp_ref: (Cpad, Coutpad)   pointwise weights with BN2 scale folded in
    b2_ref: (1, Coutpad)      pointwise bias + BN2 shift (folded)
    o_ref : (1, th, Wpad, Coutpad)   output tile (auto-pipelined)
    buf   : (th+dy, s*s, Wpad, Cpad) VMEM scratch for this step's input window
    sems  : (n_dma,)                 DMA semaphores
    """
    s = stride
    n = pl.program_id(0)
    t = pl.program_id(1)
    th, wpad = o_ref.shape[1], o_ref.shape[2]
    rows_buf, _, _, cpad = buf.shape
    n_chunks = th // tr
    n_dma = _cdiv(rows_buf, tr)
    row0 = t * th                          # first phase-plane row of this tile

    def dma(j):                            # row-chunk j of this step's window
        lenj = min(tr, rows_buf - j * tr)
        return pltpu.make_async_copy(
            x_hbm.at[n, pl.ds(row0 + j * tr, lenj)],
            buf.at[j * tr:j * tr + lenj],
            sems.at[j])

    # Prime the first two row-chunk DMAs; later chunks are prefetched while the
    # previous chunk computes.  Everything is issued and waited inside this one
    # grid step, so "parallel" grid semantics (megacore sharding) stay safe.
    dma(0).start()
    if n_dma > 1:
        dma(1).start()
    dma(0).wait()

    # Hoisted, loop-invariant weight loads.
    w_taps = [wd_ref[k] for k in range(9)]            # each (1, Cpad)
    b1 = b1_ref[...]
    wp = wp_ref[...]
    b2 = b2_ref[...]

    for c in range(n_chunks):                         # static chunking
        if c + 2 < n_dma:
            dma(c + 2).start()                        # prefetch under this chunk
        if c + 1 < n_dma:
            dma(c + 1).wait()                         # rows this chunk needs
        r0 = c * tr

        # ---- depthwise 3x3: all nine taps accumulate in vregs, one store ----
        acc = jnp.zeros((tr, wpad, cpad), jnp.float32)
        for ky in range(3):
            for kx in range(3):
                p = (ky % s) * s + (kx % s)           # phase plane
                oy, ox = ky // s, kx // s             # in-plane offsets
                plane = buf[r0 + oy:r0 + oy + tr, p]  # (tr, Wpad, Cpad), aligned
                if ox:
                    # want shifted[w] = plane[w + ox]; wrapped columns land in
                    # the padded region (>= Wo) that the wrapper drops.
                    if roll_mode == 1:
                        plane = pltpu.roll(plane, shift=wpad - ox, axis=1)
                    elif roll_mode == -1:
                        plane = pltpu.roll(plane, shift=ox, axis=1)
                    else:
                        plane = jnp.concatenate(
                            [plane[:, ox:, :], plane[:, :ox, :]], axis=1)
                acc = acc + plane * w_taps[ky * 3 + kx]
        h = jnp.maximum(acc + b1, 0.0)                # folded bias+BN1, ReLU
        if mxu_dtype is not None:
            h = h.astype(mxu_dtype)                   # optional bf16 MXU operands

        # ---- pointwise 1x1 == lane-dense (tr*Wpad, Cpad)@(Cpad, Coutpad) ----
        y = jnp.dot(h.reshape(tr * wpad, cpad), wp,
                    preferred_element_type=jnp.float32)
        y = jnp.maximum(y + b2, 0.0)                  # folded bias+BN2, ReLU
        o_ref[0, r0:r0 + tr] = y.reshape(tr, wpad, -1).astype(o_ref.dtype)


def depthwise_separable_conv_forward(x_nchw, params, stride, *, tile_p=1024,
                                     use_bf16=False, vmem_limit_bytes=None):
    """Forward pass of the MobileNet-V1 depthwise-separable block (eval-mode BN)."""
    (wd, bd, g1, b1, m1, v1, wp, bp, g2, b2, m2, v2) = params
    eps = 1e-5
    s = int(stride)
    assert s in (1, 2), "phase-split halo math supports stride 1 or 2 only"
    N, Cin, H, W = x_nchw.shape
    Cout = wp.shape[0]
    Ho = (H + 2 - 3) // s + 1
    Wo = (W + 2 - 3) // s + 1
    dy = dx = 2 // s                       # halo rows / cols per phase plane

    Cpad = _round_up(Cin, 128)             # lane-dense channels
    Coutpad = _round_up(Cout, 128)
    Wpad = _round_up(Wo + dx, 8)           # sublane-aligned padded row width

    # ---- tiling: rows per grid step (th) and rows per in-vreg chunk (tr) ----
    tr_reg = max(1, (16 * 1024) // (Wpad * Cpad))     # ~16 f32 vregs of accumulator
    rows = max(1, min(Ho, tile_p // Wpad))
    if N == 1 and Ho >= 2:
        rows = min(rows, _cdiv(Ho, 2))     # >=2 grid steps so both v7x TCs get work
    tr = max(dy, min(tr_reg, rows))
    th = _round_up(max(rows, tr), tr)
    n_t = _cdiv(Ho, th)
    Ho_pad = n_t * th
    Hrows = Ho_pad + dy
    n_dma = _cdiv(th + dy, tr)

    # ---- layout glue (XLA): NCHW->NHWC, conv zero pad, channel pad, phase split ----
    x = jnp.transpose(x_nchw, (0, 2, 3, 1))                       # (N, H, W, Cin)
    xp = jnp.pad(x, ((0, 0), (1, Hrows * s - 1 - H),
                     (1, Wpad * s - 1 - W), (0, Cpad - Cin)))
    ph = xp.reshape(N, Hrows, s, Wpad, s, Cpad).transpose(0, 1, 2, 4, 3, 5)
    ph = ph.reshape(N, Hrows, s * s, Wpad, Cpad)                  # stride -> phases

    # ---- fold conv biases + eval-mode BatchNorm into the weights ----
    inv1 = g1 / jnp.sqrt(v1 + eps)
    inv2 = g2 / jnp.sqrt(v2 + eps)
    wd_k = jnp.transpose(wd[:, 0], (1, 2, 0)).reshape(9, Cin) * inv1[None, :]
    b1_k = bd * inv1 + (b1 - m1 * inv1)
    wp_k = jnp.transpose(wp[:, :, 0, 0], (1, 0)) * inv2[None, :]
    b2_k = bp * inv2 + (b2 - m2 * inv2)
    wd_k = jnp.pad(wd_k, ((0, 0), (0, Cpad - Cin))).reshape(9, 1, Cpad)
    b1_k = jnp.pad(b1_k, ((0, Cpad - Cin),)).reshape(1, Cpad)
    wp_k = jnp.pad(wp_k, ((0, Cpad - Cin), (0, Coutpad - Cout)))
    b2_k = jnp.pad(b2_k, ((0, Coutpad - Cout),)).reshape(1, Coutpad)
    if use_bf16:
        wp_k = wp_k.astype(jnp.bfloat16)   # bf16 MXU operands (v6e/v7x fast path)

    if vmem_limit_bytes is None:
        vmem_limit_bytes = _default_vmem_limit()

    kernel = functools.partial(
        _dsconv_kernel, stride=s, tr=tr, roll_mode=_roll_mode(),
        mxu_dtype=jnp.bfloat16 if use_bf16 else None)

    # NOTE: the four weight/bias operands have constant index_maps, so nothing
    # is re-copied across grid steps; pl.Buffered(1) would additionally drop
    # their idle second buffer but is left at the default for lowering safety.
    out = pl.pallas_call(
        kernel,
        out_shape=jax.ShapeDtypeStruct((N, Ho_pad, Wpad, Coutpad), jnp.float32),
        grid_spec=pltpu.PrefetchScalarGridSpec(
            num_scalar_prefetch=0,
            grid=(N, n_t),
            in_specs=[
                pl.BlockSpec(memory_space=pl.ANY),                   # activations stay in HBM
                pl.BlockSpec((9, 1, Cpad), lambda n, t: (0, 0, 0)),  # depthwise taps (resident)
                pl.BlockSpec((1, Cpad), lambda n, t: (0, 0)),        # depthwise shift
                pl.BlockSpec((Cpad, Coutpad), lambda n, t: (0, 0)),  # pointwise weights (resident)
                pl.BlockSpec((1, Coutpad), lambda n, t: (0, 0)),     # pointwise shift
            ],
            out_specs=pl.BlockSpec((1, th, Wpad, Coutpad),
                                   lambda n, t: (n, t, 0, 0)),
            scratch_shapes=[
                pltpu.VMEM((th + dy, s * s, Wpad, Cpad), jnp.float32),
                pltpu.SemaphoreType.DMA((n_dma,)),
            ]),
        compiler_params=pltpu.CompilerParams(
            dimension_semantics=("parallel", "parallel"),
            vmem_limit_bytes=int(vmem_limit_bytes)),
    )(ph, wd_k, b1_k, wp_k, b2_k)

    # (N, Ho_pad, Wpad, Coutpad) -> NCHW, dropping row / column / channel padding.
    out = out[:, :Ho, :Wo, :Cout]
    return jnp.transpose(out, (0, 3, 1, 2))


def ref_forward(x, params, stride):
    """Pure-JAX reference matching the PyTorch module (eval-mode BN)."""
    (wd, bd, g1, b1, m1, v1, wp, bp, g2, b2, m2, v2) = params
    eps = 1e-5
    Cin = x.shape[1]
    y = jax.lax.conv_general_dilated(
        x, wd, window_strides=(stride, stride), padding=((1, 1), (1, 1)),
        dimension_numbers=('NCHW', 'OIHW', 'NCHW'), feature_group_count=Cin)
    y = y + bd[None, :, None, None]
    y = (y - m1[None, :, None, None]) * (g1 / jnp.sqrt(v1 + eps))[None, :, None, None] \
        + b1[None, :, None, None]
    y = jnp.maximum(y, 0.0)
    z = jax.lax.conv_general_dilated(
        y, wp, window_strides=(1, 1), padding=((0, 0), (0, 0)),
        dimension_numbers=('NCHW', 'OIHW', 'NCHW'))
    z = z + bp[None, :, None, None]
    z = (z - m2[None, :, None, None]) * (g2 / jnp.sqrt(v2 + eps))[None, :, None, None] \
        + b2[None, :, None, None]
    z = jnp.maximum(z, 0.0)
    return z


if __name__ == "__main__":
    N, Cin, Cout, H, W = 2, 4, 8, 16, 16

    key = jax.random.PRNGKey(0)
    ks = jax.random.split(key, 13)
    params = (
        jax.random.normal(ks[0], (Cin, 1, 3, 3), jnp.float32) * 0.2,     # depthwise weight
        jax.random.normal(ks[1], (Cin,), jnp.float32) * 0.1,             # depthwise bias
        jax.random.uniform(ks[2], (Cin,), jnp.float32, 0.5, 1.5),        # BN1 gamma
        jax.random.normal(ks[3], (Cin,), jnp.float32) * 0.1,             # BN1 beta
        jax.random.normal(ks[4], (Cin,), jnp.float32) * 0.1,             # BN1 running mean
        jax.random.uniform(ks[5], (Cin,), jnp.float32, 0.5, 1.5),        # BN1 running var
        jax.random.normal(ks[6], (Cout, Cin, 1, 1), jnp.float32) * 0.2,  # pointwise weight
        jax.random.normal(ks[7], (Cout,), jnp.float32) * 0.1,            # pointwise bias
        jax.random.uniform(ks[8], (Cout,), jnp.float32, 0.5, 1.5),       # BN2 gamma
        jax.random.normal(ks[9], (Cout,), jnp.float32) * 0.1,            # BN2 beta
        jax.random.normal(ks[10], (Cout,), jnp.float32) * 0.1,           # BN2 running mean
        jax.random.uniform(ks[11], (Cout,), jnp.float32, 0.5, 1.5),      # BN2 running var
    )
    x = jax.random.normal(ks[12], (N, Cin, H, W), jnp.float32)

    # (stride, tile_p, use_bf16, tolerance): exercises the big-tile / chunked-DMA
    # path, the many-small-row-tiles path, the stride-2 phase split, and the
    # optional bf16 MXU path (looser tolerance).
    configs = (
        (1, 1024, False, 1e-4),
        (1, 64,   False, 1e-4),
        (2, 32,   False, 1e-4),
        (2, 256,  True,  5e-2),
    )
    for stride, tile_p, use_bf16, tol in configs:
        out = jax.block_until_ready(
            depthwise_separable_conv_forward(x, params, stride,
                                             tile_p=tile_p, use_bf16=use_bf16))
        ref = jax.block_until_ready(ref_forward(x, params, stride))
        Ho = (H + 2 - 3) // stride + 1
        Wo = (W + 2 - 3) // stride + 1
        assert out.shape == ref.shape == (N, Cout, Ho, Wo)
        err = float(jnp.max(jnp.abs(out - ref)))
        assert jnp.allclose(out, ref, rtol=tol, atol=tol), \
            f"stride={stride} tile_p={tile_p} bf16={use_bf16}: max abs err {err}"
    print("KERNEL_OK")
</pallas_src>

<mosaic_0001>
module attributes {stable_mosaic.version = 11 : i64} {
  func.func @probe(%arg0: memref<2x8x128xf32, #tpu.memory_space<vmem>>, %arg1: memref<2x8x128xf32, #tpu.memory_space<vmem>>) attributes {dimension_semantics = [], scalar_prefetch = 0 : i64, scratch_operands = 0 : i64, tpu.core_type = #tpu.core_type<tc>} {
    %c0 = arith.constant 0 : index
    %c0_0 = arith.constant 0 : index
    %c0_1 = arith.constant 0 : index
    %0 = vector.load %arg0[%c0, %c0_0, %c0_1] : memref<2x8x128xf32, #tpu.memory_space<vmem>>, vector<2x8x128xf32>
    %c1_i32 = arith.constant 1 : i32
    %1 = tpu.dynamic_rotate %0 by %c1_i32 dim 1 : vector<2x8x128xf32>, i32 -> vector<2x8x128xf32>
    %c0_2 = arith.constant 0 : index
    %c0_3 = arith.constant 0 : index
    %c0_4 = arith.constant 0 : index
    %2 = vector.load %arg1[%c0_2, %c0_3, %c0_4] : memref<2x8x128xf32, #tpu.memory_space<vmem>>, vector<2x8x128xf32>
    tpu.vector_store %arg1[%c0_2, %c0_3, %c0_4], %1 {strides = array<i32>} : memref<2x8x128xf32, #tpu.memory_space<vmem>>, vector<2x8x128xf32>,
    return
  }
}

module attributes {stable_mosaic.version = 11 : i64} {
  func.func @_dsconv_kernel(%arg0: i32, %arg1: i32, %arg2: memref<2x22x1x24x128xf32, #tpu.memory_space<any>>, %arg3: memref<9x1x128xf32, #tpu.memory_space<vmem>>, %arg4: memref<1x128xf32, #tpu.memory_space<vmem>>, %arg5: memref<128x128xf32, #tpu.memory_space<vmem>>, %arg6: memref<1x128xf32, #tpu.memory_space<vmem>>, %arg7: memref<1x20x24x128xf32, #tpu.memory_space<vmem>>, %arg8: memref<22x1x24x128xf32, #tpu.memory_space<vmem>>, %arg9: memref<5x!tpu.dma_semaphore, #tpu.memory_space<semaphore_mem>>) attributes {dimension_semantics = [#tpu.dimension_semantics<parallel>, #tpu.dimension_semantics<parallel>], iteration_bounds = array<i64: 2, 1>, scalar_prefetch = 0 : i64, scratch_operands = 2 : i64, tpu.core_type = #tpu.core_type<tc>, window_params = [{}, {pipeline_mode = #tpu.pipeline_mode<synchronous>, transform_indices = @transform_1, window_bounds = array<i64: 9, 1, 128>}, {pipeline_mode = #tpu.pipeline_mode<synchronous>, transform_indices = @transform_2, window_bounds = array<i64: 1, 128>}, {pipeline_mode = #tpu.pipeline_mode<synchronous>, transform_indices = @transform_3, window_bounds = array<i64: 128, 128>}, {pipeline_mode = #tpu.pipeline_mode<synchronous>, transform_indices = @transform_4, window_bounds = array<i64: 1, 128>}, {transform_indices = @transform_5, window_bounds = array<i64: 1, 20, 24, 128>}]} {
    %c20_i32 = arith.constant 20 : i32
    %0 = arith.muli %arg1, %c20_i32 : i32
    %c0_i32 = arith.constant 0 : i32
    %1 = arith.addi %0, %c0_i32 : i32
    %c0_i32_0 = arith.constant 0 : i32
    %c0_i32_1 = arith.constant 0 : i32
    %c0_i32_2 = arith.constant 0 : i32
    %c0_i32_3 = arith.constant 0 : i32
    %2 = tpu.memref_slice %arg2[%arg0, %1, %c0_i32_1, %c0_i32_2, %c0_i32_3] : memref<2x22x1x24x128xf32, #tpu.memory_space<any>> -> memref<1x5x1x24x128xf32, #tpu.memory_space<any>>
    %3 = tpu.memref_squeeze %2 : memref<1x5x1x24x128xf32, #tpu.memory_space<any>> -> memref<5x1x24x128xf32, #tpu.memory_space<any>>
    %c0_i32_4 = arith.constant 0 : i32
    %c0_i32_5 = arith.constant 0 : i32
    %c0_i32_6 = arith.constant 0 : i32
    %c0_i32_7 = arith.constant 0 : i32
    %4 = tpu.memref_slice %arg8[%c0_i32_4, %c0_i32_5, %c0_i32_6, %c0_i32_7] : memref<22x1x24x128xf32, #tpu.memory_space<vmem>> -> memref<5x1x24x128xf32, #tpu.memory_space<vmem>>
    %5 = tpu.memref_slice %arg9[%c0_i32_0] : memref<5x!tpu.dma_semaphore, #tpu.memory_space<semaphore_mem>> -> memref<1x!tpu.dma_semaphore, #tpu.memory_space<semaphore_mem>>
    %6 = tpu.memref_squeeze %5 : memref<1x!tpu.dma_semaphore, #tpu.memory_space<semaphore_mem>> -> memref<!tpu.dma_semaphore, #tpu.memory_space<semaphore_mem>>
    tpu.enqueue_dma source(%3 : memref<5x1x24x128xf32, #tpu.memory_space<any>>) target(%4 : memref<5x1x24x128xf32, #tpu.memory_space<vmem>>) target_semaphore(%6 : memref<!tpu.dma_semaphore, #tpu.memory_space<semaphore_mem>>)
    %c5_i32 = arith.constant 5 : i32
    %7 = arith.addi %0, %c5_i32 : i32
    %c1_i32 = arith.constant 1 : i32
    %c0_i32_8 = arith.constant 0 : i32
    %c0_i32_9 = arith.constant 0 : i32
    %c0_i32_10 = arith.constant 0 : i32
    %8 = tpu.memref_slice %arg2[%arg0, %7, %c0_i32_8, %c0_i32_9, %c0_i32_10] : memref<2x22x1x24x128xf32, #tpu.memory_space<any>> -> memref<1x5x1x24x128xf32, #tpu.memory_space<any>>
    %9 = tpu.memref_squeeze %8 : memref<1x5x1x24x128xf32, #tpu.memory_space<any>> -> memref<5x1x24x128xf32, #tpu.memory_space<any>>
    %c5_i32_11 = arith.constant 5 : i32
    %c0_i32_12 = arith.constant 0 : i32
    %c0_i32_13 = arith.constant 0 : i32
    %c0_i32_14 = arith.constant 0 : i32
    %10 = tpu.memref_slice %arg8[%c5_i32_11, %c0_i32_12, %c0_i32_13, %c0_i32_14] : memref<22x1x24x128xf32, #tpu.memory_space<vmem>> -> memref<5x1x24x128xf32, #tpu.memory_space<vmem>>
    %11 = tpu.memref_slice %arg9[%c1_i32] : memref<5x!tpu.dma_semaphore, #tpu.memory_space<semaphore_mem>> -> memref<1x!tpu.dma_semaphore, #tpu.memory_space<semaphore_mem>>
    %12 = tpu.memref_squeeze %11 : memref<1x!tpu.dma_semaphore, #tpu.memory_space<semaphore_mem>> -> memref<!tpu.dma_semaphore, #tpu.memory_space<semaphore_mem>>
    tpu.enqueue_dma source(%9 : memref<5x1x24x128xf32, #tpu.memory_space<any>>) target(%10 : memref<5x1x24x128xf32, #tpu.memory_space<vmem>>) target_semaphore(%12 : memref<!tpu.dma_semaphore, #tpu.memory_space<semaphore_mem>>)
    %c0_i32_15 = arith.constant 0 : i32
    %13 = arith.addi %0, %c0_i32_15 : i32
    %c0_i32_16 = arith.constant 0 : i32
    %c0_i32_17 = arith.constant 0 : i32
    %c0_i32_18 = arith.constant 0 : i32
    %c0_i32_19 = arith.constant 0 : i32
    %14 = tpu.memref_slice %arg2[%arg0, %13, %c0_i32_17, %c0_i32_18, %c0_i32_19] : memref<2x22x1x24x128xf32, #tpu.memory_space<any>> -> memref<1x5x1x24x128xf32, #tpu.memory_space<any>>
    %15 = tpu.memref_squeeze %14 : memref<1x5x1x24x128xf32, #tpu.memory_space<any>> -> memref<5x1x24x128xf32, #tpu.memory_space<any>>
    %c0_i32_20 = arith.constant 0 : i32
    %c0_i32_21 = arith.constant 0 : i32
    %c0_i32_22 = arith.constant 0 : i32
    %c0_i32_23 = arith.constant 0 : i32
    %16 = tpu.memref_slice %arg8[%c0_i32_20, %c0_i32_21, %c0_i32_22, %c0_i32_23] : memref<22x1x24x128xf32, #tpu.memory_space<vmem>> -> memref<5x1x24x128xf32, #tpu.memory_space<vmem>>
    %17 = tpu.memref_slice %arg9[%c0_i32_16] : memref<5x!tpu.dma_semaphore, #tpu.memory_space<semaphore_mem>> -> memref<1x!tpu.dma_semaphore, #tpu.memory_space<semaphore_mem>>
    %18 = tpu.memref_squeeze %17 : memref<1x!tpu.dma_semaphore, #tpu.memory_space<semaphore_mem>> -> memref<!tpu.dma_semaphore, #tpu.memory_space<semaphore_mem>>
    tpu.wait_dma2 semaphore(%18 : memref<!tpu.dma_semaphore, #tpu.memory_space<semaphore_mem>>) src(%15 : memref<5x1x24x128xf32, #tpu.memory_space<any>>) dst(%16 : memref<5x1x24x128xf32, #tpu.memory_space<vmem>>)
    %c0 = arith.constant 0 : index
    %c0_24 = arith.constant 0 : index
    %c0_25 = arith.constant 0 : index
    %19 = vector.load %arg3[%c0, %c0_24, %c0_25] : memref<9x1x128xf32, #tpu.memory_space<vmem>>, vector<1x1x128xf32>
    %20 = vector.shape_cast %19 : vector<1x1x128xf32> to vector<1x128xf32>
    %c1 = arith.constant 1 : index
    %c0_26 = arith.constant 0 : index
    %c0_27 = arith.constant 0 : index
    %21 = vector.load %arg3[%c1, %c0_26, %c0_27] : memref<9x1x128xf32, #tpu.memory_space<vmem>>, vector<1x1x128xf32>
    %22 = vector.shape_cast %21 : vector<1x1x128xf32> to vector<1x128xf32>
    %c2 = arith.constant 2 : index
    %c0_28 = arith.constant 0 : index
    %c0_29 = arith.constant 0 : index
    %23 = vector.load %arg3[%c2, %c0_28, %c0_29] : memref<9x1x128xf32, #tpu.memory_space<vmem>>, vector<1x1x128xf32>
    %24 = vector.shape_cast %23 : vector<1x1x128xf32> to vector<1x128xf32>
    %c3 = arith.constant 3 : index
    %c0_30 = arith.constant 0 : index
    %c0_31 = arith.constant 0 : index
    %25 = vector.load %arg3[%c3, %c0_30, %c0_31] : memref<9x1x128xf32, #tpu.memory_space<vmem>>, vector<1x1x128xf32>
    %26 = vector.shape_cast %25 : vector<1x1x128xf32> to vector<1x128xf32>
    %c4 = arith.constant 4 : index
    %c0_32 = arith.constant 0 : index
    %c0_33 = arith.constant 0 : index
    %27 = vector.load %arg3[%c4, %c0_32, %c0_33] : memref<9x1x128xf32, #tpu.memory_space<vmem>>, vector<1x1x128xf32>
    %28 = vector.shape_cast %27 : vector<1x1x128xf32> to vector<1x128xf32>
    %c5 = arith.constant 5 : index
    %c0_34 = arith.constant 0 : index
    %c0_35 = arith.constant 0 : index
    %29 = vector.load %arg3[%c5, %c0_34, %c0_35] : memref<9x1x128xf32, #tpu.memory_space<vmem>>, vector<1x1x128xf32>
    %30 = vector.shape_cast %29 : vector<1x1x128xf32> to vector<1x128xf32>
    %c6 = arith.constant 6 : index
    %c0_36 = arith.constant 0 : index
    %c0_37 = arith.constant 0 : index
    %31 = vector.load %arg3[%c6, %c0_36, %c0_37] : memref<9x1x128xf32, #tpu.memory_space<vmem>>, vector<1x1x128xf32>
    %32 = vector.shape_cast %31 : vector<1x1x128xf32> to vector<1x128xf32>
    %c7 = arith.constant 7 : index
    %c0_38 = arith.constant 0 : index
    %c0_39 = arith.constant 0 : index
    %33 = vector.load %arg3[%c7, %c0_38, %c0_39] : memref<9x1x128xf32, #tpu.memory_space<vmem>>, vector<1x1x128xf32>
    %34 = vector.shape_cast %33 : vector<1x1x128xf32> to vector<1x128xf32>
    %c8 = arith.constant 8 : index
    %c0_40 = arith.constant 0 : index
    %c0_41 = arith.constant 0 : index
    %35 = vector.load %arg3[%c8, %c0_40, %c0_41] : memref<9x1x128xf32, #tpu.memory_space<vmem>>, vector<1x1x128xf32>
    %36 = vector.shape_cast %35 : vector<1x1x128xf32> to vector<1x128xf32>
    %c0_42 = arith.constant 0 : index
    %c0_43 = arith.constant 0 : index
    %37 = vector.load %arg4[%c0_42, %c0_43] : memref<1x128xf32, #tpu.memory_space<vmem>>, vector<1x128xf32>
    %c0_44 = arith.constant 0 : index
    %c0_45 = arith.constant 0 : index
    %38 = vector.load %arg5[%c0_44, %c0_45] : memref<128x128xf32, #tpu.memory_space<vmem>>, vector<128x128xf32>
    %c0_46 = arith.constant 0 : index
    %c0_47 = arith.constant 0 : index
    %39 = vector.load %arg6[%c0_46, %c0_47] : memref<1x128xf32, #tpu.memory_space<vmem>>, vector<1x128xf32>
    %c10_i32 = arith.constant 10 : i32
    %40 = arith.addi %0, %c10_i32 : i32
    %c2_i32 = arith.constant 2 : i32
    %c0_i32_48 = arith.constant 0 : i32
    %c0_i32_49 = arith.constant 0 : i32
    %c0_i32_50 = arith.constant 0 : i32
    %41 = tpu.memref_slice %arg2[%arg0, %40, %c0_i32_48, %c0_i32_49, %c0_i32_50] : memref<2x22x1x24x128xf32, #tpu.memory_space<any>> -> memref<1x5x1x24x128xf32, #tpu.memory_space<any>>
    %42 = tpu.memref_squeeze %41 : memref<1x5x1x24x128xf32, #tpu.memory_space<any>> -> memref<5x1x24x128xf32, #tpu.memory_space<any>>
    %c10_i32_51 = arith.constant 10 : i32
    %c0_i32_52 = arith.constant 0 : i32
    %c0_i32_53 = arith.constant 0 : i32
    %c0_i32_54 = arith.constant 0 : i32
    %43 = tpu.memref_slice %arg8[%c10_i32_51, %c0_i32_52, %c0_i32_53, %c0_i32_54] : memref<22x1x24x128xf32, #tpu.memory_space<vmem>> -> memref<5x1x24x128xf32, #tpu.memory_space<vmem>>
    %44 = tpu.memref_slice %arg9[%c2_i32] : memref<5x!tpu.dma_semaphore, #tpu.memory_space<semaphore_mem>> -> memref<1x!tpu.dma_semaphore, #tpu.memory_space<semaphore_mem>>
    %45 = tpu.memref_squeeze %44 : memref<1x!tpu.dma_semaphore, #tpu.memory_space<semaphore_mem>> -> memref<!tpu.dma_semaphore, #tpu.memory_space<semaphore_mem>>
    tpu.enqueue_dma source(%42 : memref<5x1x24x128xf32, #tpu.memory_space<any>>) target(%43 : memref<5x1x24x128xf32, #tpu.memory_space<vmem>>) target_semaphore(%45 : memref<!tpu.dma_semaphore, #tpu.memory_space<semaphore_mem>>)
    %c5_i32_55 = arith.constant 5 : i32
    %46 = arith.addi %0, %c5_i32_55 : i32
    %c1_i32_56 = arith.constant 1 : i32
    %c0_i32_57 = arith.constant 0 : i32
    %c0_i32_58 = arith.constant 0 : i32
    %c0_i32_59 = arith.constant 0 : i32
    %47 = tpu.memref_slice %arg2[%arg0, %46, %c0_i32_57, %c0_i32_58, %c0_i32_59] : memref<2x22x1x24x128xf32, #tpu.memory_space<any>> -> memref<1x5x1x24x128xf32, #tpu.memory_space<any>>
    %48 = tpu.memref_squeeze %47 : memref<1x5x1x24x128xf32, #tpu.memory_space<any>> -> memref<5x1x24x128xf32, #tpu.memory_space<any>>
    %c5_i32_60 = arith.constant 5 : i32
    %c0_i32_61 = arith.constant 0 : i32
    %c0_i32_62 = arith.constant 0 : i32
    %c0_i32_63 = arith.constant 0 : i32
    %49 = tpu.memref_slice %arg8[%c5_i32_60, %c0_i32_61, %c0_i32_62, %c0_i32_63] : memref<22x1x24x128xf32, #tpu.memory_space<vmem>> -> memref<5x1x24x128xf32, #tpu.memory_space<vmem>>
    %50 = tpu.memref_slice %arg9[%c1_i32_56] : memref<5x!tpu.dma_semaphore, #tpu.memory_space<semaphore_mem>> -> memref<1x!tpu.dma_semaphore, #tpu.memory_space<semaphore_mem>>
    %51 = tpu.memref_squeeze %50 : memref<1x!tpu.dma_semaphore, #tpu.memory_space<semaphore_mem>> -> memref<!tpu.dma_semaphore, #tpu.memory_space<semaphore_mem>>
    tpu.wait_dma2 semaphore(%51 : memref<!tpu.dma_semaphore, #tpu.memory_space<semaphore_mem>>) src(%48 : memref<5x1x24x128xf32, #tpu.memory_space<any>>) dst(%49 : memref<5x1x24x128xf32, #tpu.memory_space<vmem>>)
    %cst = arith.constant 0.000000e+00 : f32
    %52 = vector.broadcast %cst : f32 to vector<5x24x128xf32>
    %c0_64 = arith.constant 0 : index
    %c0_65 = arith.constant 0 : index
    %c0_66 = arith.constant 0 : index
    %c0_67 = arith.constant 0 : index
    %53 = vector.load %arg8[%c0_64, %c0_65, %c0_66, %c0_67] : memref<22x1x24x128xf32, #tpu.memory_space<vmem>>, vector<5x1x24x128xf32>
    %54 = vector.shape_cast %53 : vector<5x1x24x128xf32> to vector<5x24x128xf32>
    %55 = vector.shape_cast %20 : vector<1x128xf32> to vector<1x1x128xf32>
    %56 = vector.broadcast %55 : vector<1x1x128xf32> to vector<5x24x128xf32>
    %57 = arith.mulf %54, %56 : vector<5x24x128xf32>
    %58 = arith.addf %52, %57 : vector<5x24x128xf32>
    %c0_68 = arith.constant 0 : index
    %c0_69 = arith.constant 0 : index
    %c0_70 = arith.constant 0 : index
    %c0_71 = arith.constant 0 : index
    %59 = vector.load %arg8[%c0_68, %c0_69, %c0_70, %c0_71] : memref<22x1x24x128xf32, #tpu.memory_space<vmem>>, vector<5x1x24x128xf32>
    %60 = vector.shape_cast %59 : vector<5x1x24x128xf32> to vector<5x24x128xf32>
    %61 = vector.extract_strided_slice %60 {offsets = [0, 1, 0], sizes = [5, 23, 128], strides = [1, 1, 1]} : vector<5x24x128xf32> to vector<5x23x128xf32>
    %62 = vector.extract_strided_slice %60 {offsets = [0, 0, 0], sizes = [5, 1, 128], strides = [1, 1, 1]} : vector<5x24x128xf32> to vector<5x1x128xf32>
    %63 = tpu.concatenate %61, %62 in 1 : vector<5x23x128xf32>, vector<5x1x128xf32> -> vector<5x24x128xf32>
    %64 = vector.shape_cast %22 : vector<1x128xf32> to vector<1x1x128xf32>
    %65 = vector.broadcast %64 : vector<1x1x128xf32> to vector<5x24x128xf32>
    %66 = arith.mulf %63, %65 : vector<5x24x128xf32>
    %67 = arith.addf %58, %66 : vector<5x24x128xf32>
    %c0_72 = arith.constant 0 : index
    %c0_73 = arith.constant 0 : index
    %c0_74 = arith.constant 0 : index
    %c0_75 = arith.constant 0 : index
    %68 = vector.load %arg8[%c0_72, %c0_73, %c0_74, %c0_75] : memref<22x1x24x128xf32, #tpu.memory_space<vmem>>, vector<5x1x24x128xf32>
    %69 = vector.shape_cast %68 : vector<5x1x24x128xf32> to vector<5x24x128xf32>
    %70 = vector.extract_strided_slice %69 {offsets = [0, 2, 0], sizes = [5, 22, 128], strides = [1, 1, 1]} : vector<5x24x128xf32> to vector<5x22x128xf32>
    %71 = vector.extract_strided_slice %69 {offsets = [0, 0, 0], sizes = [5, 2, 128], strides = [1, 1, 1]} : vector<5x24x128xf32> to vector<5x2x128xf32>
    %72 = tpu.concatenate %70, %71 in 1 : vector<5x22x128xf32>, vector<5x2x128xf32> -> vector<5x24x128xf32>
    %73 = vector.shape_cast %24 : vector<1x128xf32> to vector<1x1x128xf32>
    %74 = vector.broadcast %73 : vector<1x1x128xf32> to vector<5x24x128xf32>
    %75 = arith.mulf %72, %74 : vector<5x24x128xf32>
    %76 = arith.addf %67, %75 : vector<5x24x128xf32>
    %c1_76 = arith.constant 1 : index
    %c0_77 = arith.constant 0 : index
    %c0_78 = arith.constant 0 : index
    %c0_79 = arith.constant 0 : index
    %77 = vector.load %arg8[%c1_76, %c0_77, %c0_78, %c0_79] : memref<22x1x24x128xf32, #tpu.memory_space<vmem>>, vector<5x1x24x128xf32>
    %78 = vector.shape_cast %77 : vector<5x1x24x128xf32> to vector<5x24x128xf32>
    %79 = vector.shape_cast %26 : vector<1x128xf32> to vector<1x1x128xf32>
    %80 = vector.broadcast %79 : vector<1x1x128xf32> to vector<5x24x128xf32>
    %81 = arith.mulf %78, %80 : vector<5x24x128xf32>
    %82 = arith.addf %76, %81 : vector<5x24x128xf32>
    %c1_80 = arith.constant 1 : index
    %c0_81 = arith.constant 0 : index
    %c0_82 = arith.constant 0 : index
    %c0_83 = arith.constant 0 : index
    %83 = vector.load %arg8[%c1_80, %c0_81, %c0_82, %c0_83] : memref<22x1x24x128xf32, #tpu.memory_space<vmem>>, vector<5x1x24x128xf32>
    %84 = vector.shape_cast %83 : vector<5x1x24x128xf32> to vector<5x24x128xf32>
    %85 = vector.extract_strided_slice %84 {offsets = [0, 1, 0], sizes = [5, 23, 128], strides = [1, 1, 1]} : vector<5x24x128xf32> to vector<5x23x128xf32>
    %86 = vector.extract_strided_slice %84 {offsets = [0, 0, 0], sizes = [5, 1, 128], strides = [1, 1, 1]} : vector<5x24x128xf32> to vector<5x1x128xf32>
    %87 = tpu.concatenate %85, %86 in 1 : vector<5x23x128xf32>, vector<5x1x128xf32> -> vector<5x24x128xf32>
    %88 = vector.shape_cast %28 : vector<1x128xf32> to vector<1x1x128xf32>
    %89 = vector.broadcast %88 : vector<1x1x128xf32> to vector<5x24x128xf32>
    %90 = arith.mulf %87, %89 : vector<5x24x128xf32>
    %91 = arith.addf %82, %90 : vector<5x24x128xf32>
    %c1_84 = arith.constant 1 : index
    %c0_85 = arith.constant 0 : index
    %c0_86 = arith.constant 0 : index
    %c0_87 = arith.constant 0 : index
    %92 = vector.load %arg8[%c1_84, %c0_85, %c0_86, %c0_87] : memref<22x1x24x128xf32, #tpu.memory_space<vmem>>, vector<5x1x24x128xf32>
    %93 = vector.shape_cast %92 : vector<5x1x24x128xf32> to vector<5x24x128xf32>
    %94 = vector.extract_strided_slice %93 {offsets = [0, 2, 0], sizes = [5, 22, 128], strides = [1, 1, 1]} : vector<5x24x128xf32> to vector<5x22x128xf32>
    %95 = vector.extract_strided_slice %93 {offsets = [0, 0, 0], sizes = [5, 2, 128], strides = [1, 1, 1]} : vector<5x24x128xf32> to vector<5x2x128xf32>
    %96 = tpu.concatenate %94, %95 in 1 : vector<5x22x128xf32>, vector<5x2x128xf32> -> vector<5x24x128xf32>
    %97 = vector.shape_cast %30 : vector<1x128xf32> to vector<1x1x128xf32>
    %98 = vector.broadcast %97 : vector<1x1x128xf32> to vector<5x24x128xf32>
    %99 = arith.mulf %96, %98 : vector<5x24x128xf32>
    %100 = arith.addf %91, %99 : vector<5x24x128xf32>
    %c2_88 = arith.constant 2 : index
    %c0_89 = arith.constant 0 : index
    %c0_90 = arith.constant 0 : index
    %c0_91 = arith.constant 0 : index
    %101 = vector.load %arg8[%c2_88, %c0_89, %c0_90, %c0_91] : memref<22x1x24x128xf32, #tpu.memory_space<vmem>>, vector<5x1x24x128xf32>
    %102 = vector.shape_cast %101 : vector<5x1x24x128xf32> to vector<5x24x128xf32>
    %103 = vector.shape_cast %32 : vector<1x128xf32> to vector<1x1x128xf32>
    %104 = vector.broadcast %103 : vector<1x1x128xf32> to vector<5x24x128xf32>
    %105 = arith.mulf %102, %104 : vector<5x24x128xf32>
    %106 = arith.addf %100, %105 : vector<5x24x128xf32>
    %c2_92 = arith.constant 2 : index
    %c0_93 = arith.constant 0 : index
    %c0_94 = arith.constant 0 : index
    %c0_95 = arith.constant 0 : index
    %107 = vector.load %arg8[%c2_92, %c0_93, %c0_94, %c0_95] : memref<22x1x24x128xf32, #tpu.memory_space<vmem>>, vector<5x1x24x128xf32>
    %108 = vector.shape_cast %107 : vector<5x1x24x128xf32> to vector<5x24x128xf32>
    %109 = vector.extract_strided_slice %108 {offsets = [0, 1, 0], sizes = [5, 23, 128], strides = [1, 1, 1]} : vector<5x24x128xf32> to vector<5x23x128xf32>
    %110 = vector.extract_strided_slice %108 {offsets = [0, 0, 0], sizes = [5, 1, 128], strides = [1, 1, 1]} : vector<5x24x128xf32> to vector<5x1x128xf32>
    %111 = tpu.concatenate %109, %110 in 1 : vector<5x23x128xf32>, vector<5x1x128xf32> -> vector<5x24x128xf32>
    %112 = vector.shape_cast %34 : vector<1x128xf32> to vector<1x1x128xf32>
    %113 = vector.broadcast %112 : vector<1x1x128xf32> to vector<5x24x128xf32>
    %114 = arith.mulf %111, %113 : vector<5x24x128xf32>
    %115 = arith.addf %106, %114 : vector<5x24x128xf32>
    %c2_96 = arith.constant 2 : index
    %c0_97 = arith.constant 0 : index
    %c0_98 = arith.constant 0 : index
    %c0_99 = arith.constant 0 : index
    %116 = vector.load %arg8[%c2_96, %c0_97, %c0_98, %c0_99] : memref<22x1x24x128xf32, #tpu.memory_space<vmem>>, vector<5x1x24x128xf32>
    %117 = vector.shape_cast %116 : vector<5x1x24x128xf32> to vector<5x24x128xf32>
    %118 = vector.extract_strided_slice %117 {offsets = [0, 2, 0], sizes = [5, 22, 128], strides = [1, 1, 1]} : vector<5x24x128xf32> to vector<5x22x128xf32>
    %119 = vector.extract_strided_slice %117 {offsets = [0, 0, 0], sizes = [5, 2, 128], strides = [1, 1, 1]} : vector<5x24x128xf32> to vector<5x2x128xf32>
    %120 = tpu.concatenate %118, %119 in 1 : vector<5x22x128xf32>, vector<5x2x128xf32> -> vector<5x24x128xf32>
    %121 = vector.shape_cast %36 : vector<1x128xf32> to vector<1x1x128xf32>
    %122 = vector.broadcast %121 : vector<1x1x128xf32> to vector<5x24x128xf32>
    %123 = arith.mulf %120, %122 : vector<5x24x128xf32>
    %124 = arith.addf %115, %123 : vector<5x24x128xf32>
    %125 = vector.shape_cast %37 : vector<1x128xf32> to vector<1x1x128xf32>
    %126 = vector.broadcast %125 : vector<1x1x128xf32> to vector<5x24x128xf32>
    %127 = arith.addf %124, %126 : vector<5x24x128xf32>
    %cst_100 = arith.constant 0.000000e+00 : f32
    %128 = vector.broadcast %cst_100 : f32 to vector<5x24x128xf32>
    %129 = arith.maximumf %127, %128 : vector<5x24x128xf32>
    %130 = vector.shape_cast %129 : vector<5x24x128xf32> to vector<120x128xf32>
    %cst_101 = arith.constant dense<0.000000e+00> : vector<120x128xf32>
    %131 = tpu.matmul %130, %38, %cst_101 {dimension_numbers = #tpu.dot_dimension_numbers<[1], [0], [0], [1], [0, 0, 1, 1], [], []>} : vector<120x128xf32>, vector<128x128xf32>, vector<120x128xf32> -> vector<120x128xf32>
    %132 = vector.broadcast %39 : vector<1x128xf32> to vector<120x128xf32>
    %133 = arith.addf %131, %132 : vector<120x128xf32>
    %cst_102 = arith.constant 0.000000e+00 : f32
    %134 = vector.broadcast %cst_102 : f32 to vector<120x128xf32>
    %135 = arith.maximumf %133, %134 : vector<120x128xf32>
    %136 = vector.shape_cast %135 : vector<120x128xf32> to vector<5x24x128xf32>
    %c0_103 = arith.constant 0 : index
    %c0_104 = arith.constant 0 : index
    %c0_105 = arith.constant 0 : index
    %c0_106 = arith.constant 0 : index
    %137 = vector.load %arg7[%c0_103, %c0_104, %c0_105, %c0_106] : memref<1x20x24x128xf32, #tpu.memory_space<vmem>>, vector<1x5x24x128xf32>
    %138 = vector.shape_cast %137 : vector<1x5x24x128xf32> to vector<5x24x128xf32>
    %139 = vector.shape_cast %136 : vector<5x24x128xf32> to vector<1x5x24x128xf32>
    tpu.vector_store %arg7[%c0_103, %c0_104, %c0_105, %c0_106], %139 {strides = array<i32>} : memref<1x20x24x128xf32, #tpu.memory_space<vmem>>, vector<1x5x24x128xf32>,
    %c15_i32 = arith.constant 15 : i32
    %140 = arith.addi %0, %c15_i32 : i32
    %c3_i32 = arith.constant 3 : i32
    %c0_i32_107 = arith.constant 0 : i32
    %c0_i32_108 = arith.constant 0 : i32
    %c0_i32_109 = arith.constant 0 : i32
    %141 = tpu.memref_slice %arg2[%arg0, %140, %c0_i32_107, %c0_i32_108, %c0_i32_109] : memref<2x22x1x24x128xf32, #tpu.memory_space<any>> -> memref<1x5x1x24x128xf32, #tpu.memory_space<any>>
    %142 = tpu.memref_squeeze %141 : memref<1x5x1x24x128xf32, #tpu.memory_space<any>> -> memref<5x1x24x128xf32, #tpu.memory_space<any>>
    %c15_i32_110 = arith.constant 15 : i32
    %c0_i32_111 = arith.constant 0 : i32
    %c0_i32_112 = arith.constant 0 : i32
    %c0_i32_113 = arith.constant 0 : i32
    %143 = tpu.memref_slice %arg8[%c15_i32_110, %c0_i32_111, %c0_i32_112, %c0_i32_113] : memref<22x1x24x128xf32, #tpu.memory_space<vmem>> -> memref<5x1x24x128xf32, #tpu.memory_space<vmem>>
    %144 = tpu.memref_slice %arg9[%c3_i32] : memref<5x!tpu.dma_semaphore, #tpu.memory_space<semaphore_mem>> -> memref<1x!tpu.dma_semaphore, #tpu.memory_space<semaphore_mem>>
    %145 = tpu.memref_squeeze %144 : memref<1x!tpu.dma_semaphore, #tpu.memory_space<semaphore_mem>> -> memref<!tpu.dma_semaphore, #tpu.memory_space<semaphore_mem>>
    tpu.enqueue_dma source(%142 : memref<5x1x24x128xf32, #tpu.memory_space<any>>) target(%143 : memref<5x1x24x128xf32, #tpu.memory_space<vmem>>) target_semaphore(%145 : memref<!tpu.dma_semaphore, #tpu.memory_space<semaphore_mem>>)
    %c10_i32_114 = arith.constant 10 : i32
    %146 = arith.addi %0, %c10_i32_114 : i32
    %c2_i32_115 = arith.constant 2 : i32
    %c0_i32_116 = arith.constant 0 : i32
    %c0_i32_117 = arith.constant 0 : i32
    %c0_i32_118 = arith.constant 0 : i32
    %147 = tpu.memref_slice %arg2[%arg0, %146, %c0_i32_116, %c0_i32_117, %c0_i32_118] : memref<2x22x1x24x128xf32, #tpu.memory_space<any>> -> memref<1x5x1x24x128xf32, #tpu.memory_space<any>>
    %148 = tpu.memref_squeeze %147 : memref<1x5x1x24x128xf32, #tpu.memory_space<any>> -> memref<5x1x24x128xf32, #tpu.memory_space<any>>
    %c10_i32_119 = arith.constant 10 : i32
    %c0_i32_120 = arith.constant 0 : i32
    %c0_i32_121 = arith.constant 0 : i32
    %c0_i32_122 = arith.constant 0 : i32
    %149 = tpu.memref_slice %arg8[%c10_i32_119, %c0_i32_120, %c0_i32_121, %c0_i32_122] : memref<22x1x24x128xf32, #tpu.memory_space<vmem>> -> memref<5x1x24x128xf32, #tpu.memory_space<vmem>>
    %150 = tpu.memref_slice %arg9[%c2_i32_115] : memref<5x!tpu.dma_semaphore, #tpu.memory_space<semaphore_mem>> -> memref<1x!tpu.dma_semaphore, #tpu.memory_space<semaphore_mem>>
    %151 = tpu.memref_squeeze %150 : memref<1x!tpu.dma_semaphore, #tpu.memory_space<semaphore_mem>> -> memref<!tpu.dma_semaphore, #tpu.memory_space<semaphore_mem>>
    tpu.wait_dma2 semaphore(%151 : memref<!tpu.dma_semaphore, #tpu.memory_space<semaphore_mem>>) src(%148 : memref<5x1x24x128xf32, #tpu.memory_space<any>>) dst(%149 : memref<5x1x24x128xf32, #tpu.memory_space<vmem>>)
    %cst_123 = arith.constant 0.000000e+00 : f32
    %152 = vector.broadcast %cst_123 : f32 to vector<5x24x128xf32>
    %c5_124 = arith.constant 5 : index
    %c0_125 = arith.constant 0 : index
    %c0_126 = arith.constant 0 : index
    %c0_127 = arith.constant 0 : index
    %153 = vector.load %arg8[%c5_124, %c0_125, %c0_126, %c0_127] : memref<22x1x24x128xf32, #tpu.memory_space<vmem>>, vector<5x1x24x128xf32>
    %154 = vector.shape_cast %153 : vector<5x1x24x128xf32> to vector<5x24x128xf32>
    %155 = vector.shape_cast %20 : vector<1x128xf32> to vector<1x1x128xf32>
    %156 = vector.broadcast %155 : vector<1x1x128xf32> to vector<5x24x128xf32>
    %157 = arith.mulf %154, %156 : vector<5x24x128xf32>
    %158 = arith.addf %152, %157 : vector<5x24x128xf32>
    %c5_128 = arith.constant 5 : index
    %c0_129 = arith.constant 0 : index
    %c0_130 = arith.constant 0 : index
    %c0_131 = arith.constant 0 : index
    %159 = vector.load %arg8[%c5_128, %c0_129, %c0_130, %c0_131] : memref<22x1x24x128xf32, #tpu.memory_space<vmem>>, vector<5x1x24x128xf32>
    %160 = vector.shape_cast %159 : vector<5x1x24x128xf32> to vector<5x24x128xf32>
    %161 = vector.extract_strided_slice %160 {offsets = [0, 1, 0], sizes = [5, 23, 128], strides = [1, 1, 1]} : vector<5x24x128xf32> to vector<5x23x128xf32>
    %162 = vector.extract_strided_slice %160 {offsets = [0, 0, 0], sizes = [5, 1, 128], strides = [1, 1, 1]} : vector<5x24x128xf32> to vector<5x1x128xf32>
    %163 = tpu.concatenate %161, %162 in 1 : vector<5x23x128xf32>, vector<5x1x128xf32> -> vector<5x24x128xf32>
    %164 = vector.shape_cast %22 : vector<1x128xf32> to vector<1x1x128xf32>
    %165 = vector.broadcast %164 : vector<1x1x128xf32> to vector<5x24x128xf32>
    %166 = arith.mulf %163, %165 : vector<5x24x128xf32>
    %167 = arith.addf %158, %166 : vector<5x24x128xf32>
    %c5_132 = arith.constant 5 : index
    %c0_133 = arith.constant 0 : index
    %c0_134 = arith.constant 0 : index
    %c0_135 = arith.constant 0 : index
    %168 = vector.load %arg8[%c5_132, %c0_133, %c0_134, %c0_135] : memref<22x1x24x128xf32, #tpu.memory_space<vmem>>, vector<5x1x24x128xf32>
    %169 = vector.shape_cast %168 : vector<5x1x24x128xf32> to vector<5x24x128xf32>
    %170 = vector.extract_strided_slice %169 {offsets = [0, 2, 0], sizes = [5, 22, 128], strides = [1, 1, 1]} : vector<5x24x128xf32> to vector<5x22x128xf32>
    %171 = vector.extract_strided_slice %169 {offsets = [0, 0, 0], sizes = [5, 2, 128], strides = [1, 1, 1]} : vector<5x24x128xf32> to vector<5x2x128xf32>
    %172 = tpu.concatenate %170, %171 in 1 : vector<5x22x128xf32>, vector<5x2x128xf32> -> vector<5x24x128xf32>
    %173 = vector.shape_cast %24 : vector<1x128xf32> to vector<1x1x128xf32>
    %174 = vector.broadcast %173 : vector<1x1x128xf32> to vector<5x24x128xf32>
    %175 = arith.mulf %172, %174 : vector<5x24x128xf32>
    %176 = arith.addf %167, %175 : vector<5x24x128xf32>
    %c6_136 = arith.constant 6 : index
    %c0_137 = arith.constant 0 : index
    %c0_138 = arith.constant 0 : index
    %c0_139 = arith.constant 0 : index
    %177 = vector.load %arg8[%c6_136, %c0_137, %c0_138, %c0_139] : memref<22x1x24x128xf32, #tpu.memory_space<vmem>>, vector<5x1x24x128xf32>
    %178 = vector.shape_cast %177 : vector<5x1x24x128xf32> to vector<5x24x128xf32>
    %179 = vector.shape_cast %26 : vector<1x128xf32> to vector<1x1x128xf32>
    %180 = vector.broadcast %179 : vector<1x1x128xf32> to vector<5x24x128xf32>
    %181 = arith.mulf %178, %180 : vector<5x24x128xf32>
    %182 = arith.addf %176, %181 : vector<5x24x128xf32>
    %c6_140 = arith.constant 6 : index
    %c0_141 = arith.constant 0 : index
    %c0_142 = arith.constant 0 : index
    %c0_143 = arith.constant 0 : index
    %183 = vector.load %arg8[%c6_140, %c0_141, %c0_142, %c0_143] : memref<22x1x24x128xf32, #tpu.memory_space<vmem>>, vector<5x1x24x128xf32>
    %184 = vector.shape_cast %183 : vector<5x1x24x128xf32> to vector<5x24x128xf32>
    %185 = vector.extract_strided_slice %184 {offsets = [0, 1, 0], sizes = [5, 23, 128], strides = [1, 1, 1]} : vector<5x24x128xf32> to vector<5x23x128xf32>
    %186 = vector.extract_strided_slice %184 {offsets = [0, 0, 0], sizes = [5, 1, 128], strides = [1, 1, 1]} : vector<5x24x128xf32> to vector<5x1x128xf32>
    %187 = tpu.concatenate %185, %186 in 1 : vector<5x23x128xf32>, vector<5x1x128xf32> -> vector<5x24x128xf32>
    %188 = vector.shape_cast %28 : vector<1x128xf32> to vector<1x1x128xf32>
    %189 = vector.broadcast %188 : vector<1x1x128xf32> to vector<5x24x128xf32>
    %190 = arith.mulf %187, %189 : vector<5x24x128xf32>
    %191 = arith.addf %182, %190 : vector<5x24x128xf32>
    %c6_144 = arith.constant 6 : index
    %c0_145 = arith.constant 0 : index
    %c0_146 = arith.constant 0 : index
    %c0_147 = arith.constant 0 : index
    %192 = vector.load %arg8[%c6_144, %c0_145, %c0_146, %c0_147] : memref<22x1x24x128xf32, #tpu.memory_space<vmem>>, vector<5x1x24x128xf32>
    %193 = vector.shape_cast %192 : vector<5x1x24x128xf32> to vector<5x24x128xf32>
    %194 = vector.extract_strided_slice %193 {offsets = [0, 2, 0], sizes = [5, 22, 128], strides = [1, 1, 1]} : vector<5x24x128xf32> to vector<5x22x128xf32>
    %195 = vector.extract_strided_slice %193 {offsets = [0, 0, 0], sizes = [5, 2, 128], strides = [1, 1, 1]} : vector<5x24x128xf32> to vector<5x2x128xf32>
    %196 = tpu.concatenate %194, %195 in 1 : vector<5x22x128xf32>, vector<5x2x128xf32> -> vector<5x24x128xf32>
    %197 = vector.shape_cast %30 : vector<1x128xf32> to vector<1x1x128xf32>
    %198 = vector.broadcast %197 : vector<1x1x128xf32> to vector<5x24x128xf32>
    %199 = arith.mulf %196, %198 : vector<5x24x128xf32>
    %200 = arith.addf %191, %199 : vector<5x24x128xf32>
    %c7_148 = arith.constant 7 : index
    %c0_149 = arith.constant 0 : index
    %c0_150 = arith.constant 0 : index
    %c0_151 = arith.constant 0 : index
    %201 = vector.load %arg8[%c7_148, %c0_149, %c0_150, %c0_151] : memref<22x1x24x128xf32, #tpu.memory_space<vmem>>, vector<5x1x24x128xf32>
    %202 = vector.shape_cast %201 : vector<5x1x24x128xf32> to vector<5x24x128xf32>
    %203 = vector.shape_cast %32 : vector<1x128xf32> to vector<1x1x128xf32>
    %204 = vector.broadcast %203 : vector<1x1x128xf32> to vector<5x24x128xf32>
    %205 = arith.mulf %202, %204 : vector<5x24x128xf32>
    %206 = arith.addf %200, %205 : vector<5x24x128xf32>
    %c7_152 = arith.constant 7 : index
    %c0_153 = arith.constant 0 : index
    %c0_154 = arith.constant 0 : index
    %c0_155 = arith.constant 0 : index
    %207 = vector.load %arg8[%c7_152, %c0_153, %c0_154, %c0_155] : memref<22x1x24x128xf32, #tpu.memory_space<vmem>>, vector<5x1x24x128xf32>
    %208 = vector.shape_cast %207 : vector<5x1x24x128xf32> to vector<5x24x128xf32>
    %209 = vector.extract_strided_slice %208 {offsets = [0, 1, 0], sizes = [5, 23, 128], strides = [1, 1, 1]} : vector<5x24x128xf32> to vector<5x23x128xf32>
    %210 = vector.extract_strided_slice %208 {offsets = [0, 0, 0], sizes = [5, 1, 128], strides = [1, 1, 1]} : vector<5x24x128xf32> to vector<5x1x128xf32>
    %211 = tpu.concatenate %209, %210 in 1 : vector<5x23x128xf32>, vector<5x1x128xf32> -> vector<5x24x128xf32>
    %212 = vector.shape_cast %34 : vector<1x128xf32> to vector<1x1x128xf32>
    %213 = vector.broadcast %212 : vector<1x1x128xf32> to vector<5x24x128xf32>
    %214 = arith.mulf %211, %213 : vector<5x24x128xf32>
    %215 = arith.addf %206, %214 : vector<5x24x128xf32>
    %c7_156 = arith.constant 7 : index
    %c0_157 = arith.constant 0 : index
    %c0_158 = arith.constant 0 : index
    %c0_159 = arith.constant 0 : index
    %216 = vector.load %arg8[%c7_156, %c0_157, %c0_158, %c0_159] : memref<22x1x24x128xf32, #tpu.memory_space<vmem>>, vector<5x1x24x128xf32>
    %217 = vector.shape_cast %216 : vector<5x1x24x128xf32> to vector<5x24x128xf32>
    %218 = vector.extract_strided_slice %217 {offsets = [0, 2, 0], sizes = [5, 22, 128], strides = [1, 1, 1]} : vector<5x24x128xf32> to vector<5x22x128xf32>
    %219 = vector.extract_strided_slice %217 {offsets = [0, 0, 0], sizes = [5, 2, 128], strides = [1, 1, 1]} : vector<5x24x128xf32> to vector<5x2x128xf32>
    %220 = tpu.concatenate %218, %219 in 1 : vector<5x22x128xf32>, vector<5x2x128xf32> -> vector<5x24x128xf32>
    %221 = vector.shape_cast %36 : vector<1x128xf32> to vector<1x1x128xf32>
    %222 = vector.broadcast %221 : vector<1x1x128xf32> to vector<5x24x128xf32>
    %223 = arith.mulf %220, %222 : vector<5x24x128xf32>
    %224 = arith.addf %215, %223 : vector<5x24x128xf32>
    %225 = vector.shape_cast %37 : vector<1x128xf32> to vector<1x1x128xf32>
    %226 = vector.broadcast %225 : vector<1x1x128xf32> to vector<5x24x128xf32>
    %227 = arith.addf %224, %226 : vector<5x24x128xf32>
    %cst_160 = arith.constant 0.000000e+00 : f32
    %228 = vector.broadcast %cst_160 : f32 to vector<5x24x128xf32>
    %229 = arith.maximumf %227, %228 : vector<5x24x128xf32>
    %230 = vector.shape_cast %229 : vector<5x24x128xf32> to vector<120x128xf32>
    %cst_161 = arith.constant dense<0.000000e+00> : vector<120x128xf32>
    %231 = tpu.matmul %230, %38, %cst_161 {dimension_numbers = #tpu.dot_dimension_numbers<[1], [0], [0], [1], [0, 0, 1, 1], [], []>} : vector<120x128xf32>, vector<128x128xf32>, vector<120x128xf32> -> vector<120x128xf32>
    %232 = vector.broadcast %39 : vector<1x128xf32> to vector<120x128xf32>
    %233 = arith.addf %231, %232 : vector<120x128xf32>
    %cst_162 = arith.constant 0.000000e+00 : f32
    %234 = vector.broadcast %cst_162 : f32 to vector<120x128xf32>
    %235 = arith.maximumf %233, %234 : vector<120x128xf32>
    %236 = vector.shape_cast %235 : vector<120x128xf32> to vector<5x24x128xf32>
    %c0_163 = arith.constant 0 : index
    %c5_164 = arith.constant 5 : index
    %c0_165 = arith.constant 0 : index
    %c0_166 = arith.constant 0 : index
    %237 = vector.load %arg7[%c0_163, %c5_164, %c0_165, %c0_166] : memref<1x20x24x128xf32, #tpu.memory_space<vmem>>, vector<1x5x24x128xf32>
    %238 = vector.shape_cast %237 : vector<1x5x24x128xf32> to vector<5x24x128xf32>
    %239 = vector.shape_cast %236 : vector<5x24x128xf32> to vector<1x5x24x128xf32>
    tpu.vector_store %arg7[%c0_163, %c5_164, %c0_165, %c0_166], %239 {strides = array<i32>} : memref<1x20x24x128xf32, #tpu.memory_space<vmem>>, vector<1x5x24x128xf32>,
    %c20_i32_167 = arith.constant 20 : i32
    %240 = arith.addi %0, %c20_i32_167 : i32
    %c4_i32 = arith.constant 4 : i32
    %c0_i32_168 = arith.constant 0 : i32
    %c0_i32_169 = arith.constant 0 : i32
    %c0_i32_170 = arith.constant 0 : i32
    %241 = tpu.memref_slice %arg2[%arg0, %240, %c0_i32_168, %c0_i32_169, %c0_i32_170] : memref<2x22x1x24x128xf32, #tpu.memory_space<any>> -> memref<1x2x1x24x128xf32, #tpu.memory_space<any>>
    %242 = tpu.memref_squeeze %241 : memref<1x2x1x24x128xf32, #tpu.memory_space<any>> -> memref<2x1x24x128xf32, #tpu.memory_space<any>>
    %c20_i32_171 = arith.constant 20 : i32
    %c0_i32_172 = arith.constant 0 : i32
    %c0_i32_173 = arith.constant 0 : i32
    %c0_i32_174 = arith.constant 0 : i32
    %243 = tpu.memref_slice %arg8[%c20_i32_171, %c0_i32_172, %c0_i32_173, %c0_i32_174] : memref<22x1x24x128xf32, #tpu.memory_space<vmem>> -> memref<2x1x24x128xf32, #tpu.memory_space<vmem>>
    %244 = tpu.memref_slice %arg9[%c4_i32] : memref<5x!tpu.dma_semaphore, #tpu.memory_space<semaphore_mem>> -> memref<1x!tpu.dma_semaphore, #tpu.memory_space<semaphore_mem>>
    %245 = tpu.memref_squeeze %244 : memref<1x!tpu.dma_semaphore, #tpu.memory_space<semaphore_mem>> -> memref<!tpu.dma_semaphore, #tpu.memory_space<semaphore_mem>>
    tpu.enqueue_dma source(%242 : memref<2x1x24x128xf32, #tpu.memory_space<any>>) target(%243 : memref<2x1x24x128xf32, #tpu.memory_space<vmem>>) target_semaphore(%245 : memref<!tpu.dma_semaphore, #tpu.memory_space<semaphore_mem>>)
    %c15_i32_175 = arith.constant 15 : i32
    %246 = arith.addi %0, %c15_i32_175 : i32
    %c3_i32_176 = arith.constant 3 : i32
    %c0_i32_177 = arith.constant 0 : i32
    %c0_i32_178 = arith.constant 0 : i32
    %c0_i32_179 = arith.constant 0 : i32
    %247 = tpu.memref_slice %arg2[%arg0, %246, %c0_i32_177, %c0_i32_178, %c0_i32_179] : memref<2x22x1x24x128xf32, #tpu.memory_space<any>> -> memref<1x5x1x24x128xf32, #tpu.memory_space<any>>
    %248 = tpu.memref_squeeze %247 : memref<1x5x1x24x128xf32, #tpu.memory_space<any>> -> memref<5x1x24x128xf32, #tpu.memory_space<any>>
    %c15_i32_180 = arith.constant 15 : i32
    %c0_i32_181 = arith.constant 0 : i32
    %c0_i32_182 = arith.constant 0 : i32
    %c0_i32_183 = arith.constant 0 : i32
    %249 = tpu.memref_slice %arg8[%c15_i32_180, %c0_i32_181, %c0_i32_182, %c0_i32_183] : memref<22x1x24x128xf32, #tpu.memory_space<vmem>> -> memref<5x1x24x128xf32, #tpu.memory_space<vmem>>
    %250 = tpu.memref_slice %arg9[%c3_i32_176] : memref<5x!tpu.dma_semaphore, #tpu.memory_space<semaphore_mem>> -> memref<1x!tpu.dma_semaphore, #tpu.memory_space<semaphore_mem>>
    %251 = tpu.memref_squeeze %250 : memref<1x!tpu.dma_semaphore, #tpu.memory_space<semaphore_mem>> -> memref<!tpu.dma_semaphore, #tpu.memory_space<semaphore_mem>>
    tpu.wait_dma2 semaphore(%251 : memref<!tpu.dma_semaphore, #tpu.memory_space<semaphore_mem>>) src(%248 : memref<5x1x24x128xf32, #tpu.memory_space<any>>) dst(%249 : memref<5x1x24x128xf32, #tpu.memory_space<vmem>>)
    %cst_184 = arith.constant 0.000000e+00 : f32
    %252 = vector.broadcast %cst_184 : f32 to vector<5x24x128xf32>
    %c10 = arith.constant 10 : index
    %c0_185 = arith.constant 0 : index
    %c0_186 = arith.constant 0 : index
    %c0_187 = arith.constant 0 : index
    %253 = vector.load %arg8[%c10, %c0_185, %c0_186, %c0_187] : memref<22x1x24x128xf32, #tpu.memory_space<vmem>>, vector<5x1x24x128xf32>
    %254 = vector.shape_cast %253 : vector<5x1x24x128xf32> to vector<5x24x128xf32>
    %255 = vector.shape_cast %20 : vector<1x128xf32> to vector<1x1x128xf32>
    %256 = vector.broadcast %255 : vector<1x1x128xf32> to vector<5x24x128xf32>
    %257 = arith.mulf %254, %256 : vector<5x24x128xf32>
    %258 = arith.addf %252, %257 : vector<5x24x128xf32>
    %c10_188 = arith.constant 10 : index
    %c0_189 = arith.constant 0 : index
    %c0_190 = arith.constant 0 : index
    %c0_191 = arith.constant 0 : index
    %259 = vector.load %arg8[%c10_188, %c0_189, %c0_190, %c0_191] : memref<22x1x24x128xf32, #tpu.memory_space<vmem>>, vector<5x1x24x128xf32>
    %260 = vector.shape_cast %259 : vector<5x1x24x128xf32> to vector<5x24x128xf32>
    %261 = vector.extract_strided_slice %260 {offsets = [0, 1, 0], sizes = [5, 23, 128], strides = [1, 1, 1]} : vector<5x24x128xf32> to vector<5x23x128xf32>
    %262 = vector.extract_strided_slice %260 {offsets = [0, 0, 0], sizes = [5, 1, 128], strides = [1, 1, 1]} : vector<5x24x128xf32> to vector<5x1x128xf32>
    %263 = tpu.concatenate %261, %262 in 1 : vector<5x23x128xf32>, vector<5x1x128xf32> -> vector<5x24x128xf32>
    %264 = vector.shape_cast %22 : vector<1x128xf32> to vector<1x1x128xf32>
    %265 = vector.broadcast %264 : vector<1x1x128xf32> to vector<5x24x128xf32>
    %266 = arith.mulf %263, %265 : vector<5x24x128xf32>
    %267 = arith.addf %258, %266 : vector<5x24x128xf32>
    %c10_192 = arith.constant 10 : index
    %c0_193 = arith.constant 0 : index
    %c0_194 = arith.constant 0 : index
    %c0_195 = arith.constant 0 : index
    %268 = vector.load %arg8[%c10_192, %c0_193, %c0_194, %c0_195] : memref<22x1x24x128xf32, #tpu.memory_space<vmem>>, vector<5x1x24x128xf32>
    %269 = vector.shape_cast %268 : vector<5x1x24x128xf32> to vector<5x24x128xf32>
    %270 = vector.extract_strided_slice %269 {offsets = [0, 2, 0], sizes = [5, 22, 128], strides = [1, 1, 1]} : vector<5x24x128xf32> to vector<5x22x128xf32>
    %271 = vector.extract_strided_slice %269 {offsets = [0, 0, 0], sizes = [5, 2, 128], strides = [1, 1, 1]} : vector<5x24x128xf32> to vector<5x2x128xf32>
    %272 = tpu.concatenate %270, %271 in 1 : vector<5x22x128xf32>, vector<5x2x128xf32> -> vector<5x24x128xf32>
    %273 = vector.shape_cast %24 : vector<1x128xf32> to vector<1x1x128xf32>
    %274 = vector.broadcast %273 : vector<1x1x128xf32> to vector<5x24x128xf32>
    %275 = arith.mulf %272, %274 : vector<5x24x128xf32>
    %276 = arith.addf %267, %275 : vector<5x24x128xf32>
    %c11 = arith.constant 11 : index
    %c0_196 = arith.constant 0 : index
    %c0_197 = arith.constant 0 : index
    %c0_198 = arith.constant 0 : index
    %277 = vector.load %arg8[%c11, %c0_196, %c0_197, %c0_198] : memref<22x1x24x128xf32, #tpu.memory_space<vmem>>, vector<5x1x24x128xf32>
    %278 = vector.shape_cast %277 : vector<5x1x24x128xf32> to vector<5x24x128xf32>
    %279 = vector.shape_cast %26 : vector<1x128xf32> to vector<1x1x128xf32>
    %280 = vector.broadcast %279 : vector<1x1x128xf32> to vector<5x24x128xf32>
    %281 = arith.mulf %278, %280 : vector<5x24x128xf32>
    %282 = arith.addf %276, %281 : vector<5x24x128xf32>
    %c11_199 = arith.constant 11 : index
    %c0_200 = arith.constant 0 : index
    %c0_201 = arith.constant 0 : index
    %c0_202 = arith.constant 0 : index
    %283 = vector.load %arg8[%c11_199, %c0_200, %c0_201, %c0_202] : memref<22x1x24x128xf32, #tpu.memory_space<vmem>>, vector<5x1x24x128xf32>
    %284 = vector.shape_cast %283 : vector<5x1x24x128xf32> to vector<5x24x128xf32>
    %285 = vector.extract_strided_slice %284 {offsets = [0, 1, 0], sizes = [5, 23, 128], strides = [1, 1, 1]} : vector<5x24x128xf32> to vector<5x23x128xf32>
    %286 = vector.extract_strided_slice %284 {offsets = [0, 0, 0], sizes = [5, 1, 128], strides = [1, 1, 1]} : vector<5x24x128xf32> to vector<5x1x128xf32>
    %287 = tpu.concatenate %285, %286 in 1 : vector<5x23x128xf32>, vector<5x1x128xf32> -> vector<5x24x128xf32>
    %288 = vector.shape_cast %28 : vector<1x128xf32> to vector<1x1x128xf32>
    %289 = vector.broadcast %288 : vector<1x1x128xf32> to vector<5x24x128xf32>
    %290 = arith.mulf %287, %289 : vector<5x24x128xf32>
    %291 = arith.addf %282, %290 : vector<5x24x128xf32>
    %c11_203 = arith.constant 11 : index
    %c0_204 = arith.constant 0 : index
    %c0_205 = arith.constant 0 : index
    %c0_206 = arith.constant 0 : index
    %292 = vector.load %arg8[%c11_203, %c0_204, %c0_205, %c0_206] : memref<22x1x24x128xf32, #tpu.memory_space<vmem>>, vector<5x1x24x128xf32>
    %293 = vector.shape_cast %292 : vector<5x1x24x128xf32> to vector<5x24x128xf32>
    %294 = vector.extract_strided_slice %293 {offsets = [0, 2, 0], sizes = [5, 22, 128], strides = [1, 1, 1]} : vector<5x24x128xf32> to vector<5x22x128xf32>
    %295 = vector.extract_strided_slice %293 {offsets = [0, 0, 0], sizes = [5, 2, 128], strides = [1, 1, 1]} : vector<5x24x128xf32> to vector<5x2x128xf32>
    %296 = tpu.concatenate %294, %295 in 1 : vector<5x22x128xf32>, vector<5x2x128xf32> -> vector<5x24x128xf32>
    %297 = vector.shape_cast %30 : vector<1x128xf32> to vector<1x1x128xf32>
    %298 = vector.broadcast %297 : vector<1x1x128xf32> to vector<5x24x128xf32>
    %299 = arith.mulf %296, %298 : vector<5x24x128xf32>
    %300 = arith.addf %291, %299 : vector<5x24x128xf32>
    %c12 = arith.constant 12 : index
    %c0_207 = arith.constant 0 : index
    %c0_208 = arith.constant 0 : index
    %c0_209 = arith.constant 0 : index
    %301 = vector.load %arg8[%c12, %c0_207, %c0_208, %c0_209] : memref<22x1x24x128xf32, #tpu.memory_space<vmem>>, vector<5x1x24x128xf32>
    %302 = vector.shape_cast %301 : vector<5x1x24x128xf32> to vector<5x24x128xf32>
    %303 = vector.shape_cast %32 : vector<1x128xf32> to vector<1x1x128xf32>
    %304 = vector.broadcast %303 : vector<1x1x128xf32> to vector<5x24x128xf32>
    %305 = arith.mulf %302, %304 : vector<5x24x128xf32>
    %306 = arith.addf %300, %305 : vector<5x24x128xf32>
    %c12_210 = arith.constant 12 : index
    %c0_211 = arith.constant 0 : index
    %c0_212 = arith.constant 0 : index
    %c0_213 = arith.constant 0 : index
    %307 = vector.load %arg8[%c12_210, %c0_211, %c0_212, %c0_213] : memref<22x1x24x128xf32, #tpu.memory_space<vmem>>, vector<5x1x24x128xf32>
    %308 = vector.shape_cast %307 : vector<5x1x24x128xf32> to vector<5x24x128xf32>
    %309 = vector.extract_strided_slice %308 {offsets = [0, 1, 0], sizes = [5, 23, 128], strides = [1, 1, 1]} : vector<5x24x128xf32> to vector<5x23x128xf32>
    %310 = vector.extract_strided_slice %308 {offsets = [0, 0, 0], sizes = [5, 1, 128], strides = [1, 1, 1]} : vector<5x24x128xf32> to vector<5x1x128xf32>
    %311 = tpu.concatenate %309, %310 in 1 : vector<5x23x128xf32>, vector<5x1x128xf32> -> vector<5x24x128xf32>
    %312 = vector.shape_cast %34 : vector<1x128xf32> to vector<1x1x128xf32>
    %313 = vector.broadcast %312 : vector<1x1x128xf32> to vector<5x24x128xf32>
    %314 = arith.mulf %311, %313 : vector<5x24x128xf32>
    %315 = arith.addf %306, %314 : vector<5x24x128xf32>
    %c12_214 = arith.constant 12 : index
    %c0_215 = arith.constant 0 : index
    %c0_216 = arith.constant 0 : index
    %c0_217 = arith.constant 0 : index
    %316 = vector.load %arg8[%c12_214, %c0_215, %c0_216, %c0_217] : memref<22x1x24x128xf32, #tpu.memory_space<vmem>>, vector<5x1x24x128xf32>
    %317 = vector.shape_cast %316 : vector<5x1x24x128xf32> to vector<5x24x128xf32>
    %318 = vector.extract_strided_slice %317 {offsets = [0, 2, 0], sizes = [5, 22, 128], strides = [1, 1, 1]} : vector<5x24x128xf32> to vector<5x22x128xf32>
    %319 = vector.extract_strided_slice %317 {offsets = [0, 0, 0], sizes = [5, 2, 128], strides = [1, 1, 1]} : vector<5x24x128xf32> to vector<5x2x128xf32>
    %320 = tpu.concatenate %318, %319 in 1 : vector<5x22x128xf32>, vector<5x2x128xf32> -> vector<5x24x128xf32>
    %321 = vector.shape_cast %36 : vector<1x128xf32> to vector<1x1x128xf32>
    %322 = vector.broadcast %321 : vector<1x1x128xf32> to vector<5x24x128xf32>
    %323 = arith.mulf %320, %322 : vector<5x24x128xf32>
    %324 = arith.addf %315, %323 : vector<5x24x128xf32>
    %325 = vector.shape_cast %37 : vector<1x128xf32> to vector<1x1x128xf32>
    %326 = vector.broadcast %325 : vector<1x1x128xf32> to vector<5x24x128xf32>
    %327 = arith.addf %324, %326 : vector<5x24x128xf32>
    %cst_218 = arith.constant 0.000000e+00 : f32
    %328 = vector.broadcast %cst_218 : f32 to vector<5x24x128xf32>
    %329 = arith.maximumf %327, %328 : vector<5x24x128xf32>
    %330 = vector.shape_cast %329 : vector<5x24x128xf32> to vector<120x128xf32>
    %cst_219 = arith.constant dense<0.000000e+00> : vector<120x128xf32>
    %331 = tpu.matmul %330, %38, %cst_219 {dimension_numbers = #tpu.dot_dimension_numbers<[1], [0], [0], [1], [0, 0, 1, 1], [], []>} : vector<120x128xf32>, vector<128x128xf32>, vector<120x128xf32> -> vector<120x128xf32>
    %332 = vector.broadcast %39 : vector<1x128xf32> to vector<120x128xf32>
    %333 = arith.addf %331, %332 : vector<120x128xf32>
    %cst_220 = arith.constant 0.000000e+00 : f32
    %334 = vector.broadcast %cst_220 : f32 to vector<120x128xf32>
    %335 = arith.maximumf %333, %334 : vector<120x128xf32>
    %336 = vector.shape_cast %335 : vector<120x128xf32> to vector<5x24x128xf32>
    %c0_221 = arith.constant 0 : index
    %c10_222 = arith.constant 10 : index
    %c0_223 = arith.constant 0 : index
    %c0_224 = arith.constant 0 : index
    %337 = vector.load %arg7[%c0_221, %c10_222, %c0_223, %c0_224] : memref<1x20x24x128xf32, #tpu.memory_space<vmem>>, vector<1x5x24x128xf32>
    %338 = vector.shape_cast %337 : vector<1x5x24x128xf32> to vector<5x24x128xf32>
    %339 = vector.shape_cast %336 : vector<5x24x128xf32> to vector<1x5x24x128xf32>
    tpu.vector_store %arg7[%c0_221, %c10_222, %c0_223, %c0_224], %339 {strides = array<i32>} : memref<1x20x24x128xf32, #tpu.memory_space<vmem>>, vector<1x5x24x128xf32>,
    %c20_i32_225 = arith.constant 20 : i32
    %340 = arith.addi %0, %c20_i32_225 : i32
    %c4_i32_226 = arith.constant 4 : i32
    %c0_i32_227 = arith.constant 0 : i32
    %c0_i32_228 = arith.constant 0 : i32
    %c0_i32_229 = arith.constant 0 : i32
    %341 = tpu.memref_slice %arg2[%arg0, %340, %c0_i32_227, %c0_i32_228, %c0_i32_229] : memref<2x22x1x24x128xf32, #tpu.memory_space<any>> -> memref<1x2x1x24x128xf32, #tpu.memory_space<any>>
    %342 = tpu.memref_squeeze %341 : memref<1x2x1x24x128xf32, #tpu.memory_space<any>> -> memref<2x1x24x128xf32, #tpu.memory_space<any>>
    %c20_i32_230 = arith.constant 20 : i32
    %c0_i32_231 = arith.constant 0 : i32
    %c0_i32_232 = arith.constant 0 : i32
    %c0_i32_233 = arith.constant 0 : i32
    %343 = tpu.memref_slice %arg8[%c20_i32_230, %c0_i32_231, %c0_i32_232, %c0_i32_233] : memref<22x1x24x128xf32, #tpu.memory_space<vmem>> -> memref<2x1x24x128xf32, #tpu.memory_space<vmem>>
    %344 = tpu.memref_slice %arg9[%c4_i32_226] : memref<5x!tpu.dma_semaphore, #tpu.memory_space<semaphore_mem>> -> memref<1x!tpu.dma_semaphore, #tpu.memory_space<semaphore_mem>>
    %345 = tpu.memref_squeeze %344 : memref<1x!tpu.dma_semaphore, #tpu.memory_space<semaphore_mem>> -> memref<!tpu.dma_semaphore, #tpu.memory_space<semaphore_mem>>
    tpu.wait_dma2 semaphore(%345 : memref<!tpu.dma_semaphore, #tpu.memory_space<semaphore_mem>>) src(%342 : memref<2x1x24x128xf32, #tpu.memory_space<any>>) dst(%343 : memref<2x1x24x128xf32, #tpu.memory_space<vmem>>)
    %cst_234 = arith.constant 0.000000e+00 : f32
    %346 = vector.broadcast %cst_234 : f32 to vector<5x24x128xf32>
    %c15 = arith.constant 15 : index
    %c0_235 = arith.constant 0 : index
    %c0_236 = arith.constant 0 : index
    %c0_237 = arith.constant 0 : index
    %347 = vector.load %arg8[%c15, %c0_235, %c0_236, %c0_237] : memref<22x1x24x128xf32, #tpu.memory_space<vmem>>, vector<5x1x24x128xf32>
    %348 = vector.shape_cast %347 : vector<5x1x24x128xf32> to vector<5x24x128xf32>
    %349 = vector.shape_cast %20 : vector<1x128xf32> to vector<1x1x128xf32>
    %350 = vector.broadcast %349 : vector<1x1x128xf32> to vector<5x24x128xf32>
    %351 = arith.mulf %348, %350 : vector<5x24x128xf32>
    %352 = arith.addf %346, %351 : vector<5x24x128xf32>
    %c15_238 = arith.constant 15 : index
    %c0_239 = arith.constant 0 : index
    %c0_240 = arith.constant 0 : index
    %c0_241 = arith.constant 0 : index
    %353 = vector.load %arg8[%c15_238, %c0_239, %c0_240, %c0_241] : memref<22x1x24x128xf32, #tpu.memory_space<vmem>>, vector<5x1x24x128xf32>
    %354 = vector.shape_cast %353 : vector<5x1x24x128xf32> to vector<5x24x128xf32>
    %355 = vector.extract_strided_slice %354 {offsets = [0, 1, 0], sizes = [5, 23, 128], strides = [1, 1, 1]} : vector<5x24x128xf32> to vector<5x23x128xf32>
    %356 = vector.extract_strided_slice %354 {offsets = [0, 0, 0], sizes = [5, 1, 128], strides = [1, 1, 1]} : vector<5x24x128xf32> to vector<5x1x128xf32>
    %357 = tpu.concatenate %355, %356 in 1 : vector<5x23x128xf32>, vector<5x1x128xf32> -> vector<5x24x128xf32>
    %358 = vector.shape_cast %22 : vector<1x128xf32> to vector<1x1x128xf32>
    %359 = vector.broadcast %358 : vector<1x1x128xf32> to vector<5x24x128xf32>
    %360 = arith.mulf %357, %359 : vector<5x24x128xf32>
    %361 = arith.addf %352, %360 : vector<5x24x128xf32>
    %c15_242 = arith.constant 15 : index
    %c0_243 = arith.constant 0 : index
    %c0_244 = arith.constant 0 : index
    %c0_245 = arith.constant 0 : index
    %362 = vector.load %arg8[%c15_242, %c0_243, %c0_244, %c0_245] : memref<22x1x24x128xf32, #tpu.memory_space<vmem>>, vector<5x1x24x128xf32>
    %363 = vector.shape_cast %362 : vector<5x1x24x128xf32> to vector<5x24x128xf32>
    %364 = vector.extract_strided_slice %363 {offsets = [0, 2, 0], sizes = [5, 22, 128], strides = [1, 1, 1]} : vector<5x24x128xf32> to vector<5x22x128xf32>
    %365 = vector.extract_strided_slice %363 {offsets = [0, 0, 0], sizes = [5, 2, 128], strides = [1, 1, 1]} : vector<5x24x128xf32> to vector<5x2x128xf32>
    %366 = tpu.concatenate %364, %365 in 1 : vector<5x22x128xf32>, vector<5x2x128xf32> -> vector<5x24x128xf32>
    %367 = vector.shape_cast %24 : vector<1x128xf32> to vector<1x1x128xf32>
    %368 = vector.broadcast %367 : vector<1x1x128xf32> to vector<5x24x128xf32>
    %369 = arith.mulf %366, %368 : vector<5x24x128xf32>
    %370 = arith.addf %361, %369 : vector<5x24x128xf32>
    %c16 = arith.constant 16 : index
    %c0_246 = arith.constant 0 : index
    %c0_247 = arith.constant 0 : index
    %c0_248 = arith.constant 0 : index
    %371 = vector.load %arg8[%c16, %c0_246, %c0_247, %c0_248] : memref<22x1x24x128xf32, #tpu.memory_space<vmem>>, vector<5x1x24x128xf32>
    %372 = vector.shape_cast %371 : vector<5x1x24x128xf32> to vector<5x24x128xf32>
    %373 = vector.shape_cast %26 : vector<1x128xf32> to vector<1x1x128xf32>
    %374 = vector.broadcast %373 : vector<1x1x128xf32> to vector<5x24x128xf32>
    %375 = arith.mulf %372, %374 : vector<5x24x128xf32>
    %376 = arith.addf %370, %375 : vector<5x24x128xf32>
    %c16_249 = arith.constant 16 : index
    %c0_250 = arith.constant 0 : index
    %c0_251 = arith.constant 0 : index
    %c0_252 = arith.constant 0 : index
    %377 = vector.load %arg8[%c16_249, %c0_250, %c0_251, %c0_252] : memref<22x1x24x128xf32, #tpu.memory_space<vmem>>, vector<5x1x24x128xf32>
    %378 = vector.shape_cast %377 : vector<5x1x24x128xf32> to vector<5x24x128xf32>
    %379 = vector.extract_strided_slice %378 {offsets = [0, 1, 0], sizes = [5, 23, 128], strides = [1, 1, 1]} : vector<5x24x128xf32> to vector<5x23x128xf32>
    %380 = vector.extract_strided_slice %378 {offsets = [0, 0, 0], sizes = [5, 1, 128], strides = [1, 1, 1]} : vector<5x24x128xf32> to vector<5x1x128xf32>
    %381 = tpu.concatenate %379, %380 in 1 : vector<5x23x128xf32>, vector<5x1x128xf32> -> vector<5x24x128xf32>
    %382 = vector.shape_cast %28 : vector<1x128xf32> to vector<1x1x128xf32>
    %383 = vector.broadcast %382 : vector<1x1x128xf32> to vector<5x24x128xf32>
    %384 = arith.mulf %381, %383 : vector<5x24x128xf32>
    %385 = arith.addf %376, %384 : vector<5x24x128xf32>
    %c16_253 = arith.constant 16 : index
    %c0_254 = arith.constant 0 : index
    %c0_255 = arith.constant 0 : index
    %c0_256 = arith.constant 0 : index
    %386 = vector.load %arg8[%c16_253, %c0_254, %c0_255, %c0_256] : memref<22x1x24x128xf32, #tpu.memory_space<vmem>>, vector<5x1x24x128xf32>
    %387 = vector.shape_cast %386 : vector<5x1x24x128xf32> to vector<5x24x128xf32>
    %388 = vector.extract_strided_slice %387 {offsets = [0, 2, 0], sizes = [5, 22, 128], strides = [1, 1, 1]} : vector<5x24x128xf32> to vector<5x22x128xf32>
    %389 = vector.extract_strided_slice %387 {offsets = [0, 0, 0], sizes = [5, 2, 128], strides = [1, 1, 1]} : vector<5x24x128xf32> to vector<5x2x128xf32>
    %390 = tpu.concatenate %388, %389 in 1 : vector<5x22x128xf32>, vector<5x2x128xf32> -> vector<5x24x128xf32>
    %391 = vector.shape_cast %30 : vector<1x128xf32> to vector<1x1x128xf32>
    %392 = vector.broadcast %391 : vector<1x1x128xf32> to vector<5x24x128xf32>
    %393 = arith.mulf %390, %392 : vector<5x24x128xf32>
    %394 = arith.addf %385, %393 : vector<5x24x128xf32>
    %c17 = arith.constant 17 : index
    %c0_257 = arith.constant 0 : index
    %c0_258 = arith.constant 0 : index
    %c0_259 = arith.constant 0 : index
    %395 = vector.load %arg8[%c17, %c0_257, %c0_258, %c0_259] : memref<22x1x24x128xf32, #tpu.memory_space<vmem>>, vector<5x1x24x128xf32>
    %396 = vector.shape_cast %395 : vector<5x1x24x128xf32> to vector<5x24x128xf32>
    %397 = vector.shape_cast %32 : vector<1x128xf32> to vector<1x1x128xf32>
    %398 = vector.broadcast %397 : vector<1x1x128xf32> to vector<5x24x128xf32>
    %399 = arith.mulf %396, %398 : vector<5x24x128xf32>
    %400 = arith.addf %394, %399 : vector<5x24x128xf32>
    %c17_260 = arith.constant 17 : index
    %c0_261 = arith.constant 0 : index
    %c0_262 = arith.constant 0 : index
    %c0_263 = arith.constant 0 : index
    %401 = vector.load %arg8[%c17_260, %c0_261, %c0_262, %c0_263] : memref<22x1x24x128xf32, #tpu.memory_space<vmem>>, vector<5x1x24x128xf32>
    %402 = vector.shape_cast %401 : vector<5x1x24x128xf32> to vector<5x24x128xf32>
    %403 = vector.extract_strided_slice %402 {offsets = [0, 1, 0], sizes = [5, 23, 128], strides = [1, 1, 1]} : vector<5x24x128xf32> to vector<5x23x128xf32>
    %404 = vector.extract_strided_slice %402 {offsets = [0, 0, 0], sizes = [5, 1, 128], strides = [1, 1, 1]} : vector<5x24x128xf32> to vector<5x1x128xf32>
    %405 = tpu.concatenate %403, %404 in 1 : vector<5x23x128xf32>, vector<5x1x128xf32> -> vector<5x24x128xf32>
    %406 = vector.shape_cast %34 : vector<1x128xf32> to vector<1x1x128xf32>
    %407 = vector.broadcast %406 : vector<1x1x128xf32> to vector<5x24x128xf32>
    %408 = arith.mulf %405, %407 : vector<5x24x128xf32>
    %409 = arith.addf %400, %408 : vector<5x24x128xf32>
    %c17_264 = arith.constant 17 : index
    %c0_265 = arith.constant 0 : index
    %c0_266 = arith.constant 0 : index
    %c0_267 = arith.constant 0 : index
    %410 = vector.load %arg8[%c17_264, %c0_265, %c0_266, %c0_267] : memref<22x1x24x128xf32, #tpu.memory_space<vmem>>, vector<5x1x24x128xf32>
    %411 = vector.shape_cast %410 : vector<5x1x24x128xf32> to vector<5x24x128xf32>
    %412 = vector.extract_strided_slice %411 {offsets = [0, 2, 0], sizes = [5, 22, 128], strides = [1, 1, 1]} : vector<5x24x128xf32> to vector<5x22x128xf32>
    %413 = vector.extract_strided_slice %411 {offsets = [0, 0, 0], sizes = [5, 2, 128], strides = [1, 1, 1]} : vector<5x24x128xf32> to vector<5x2x128xf32>
    %414 = tpu.concatenate %412, %413 in 1 : vector<5x22x128xf32>, vector<5x2x128xf32> -> vector<5x24x128xf32>
    %415 = vector.shape_cast %36 : vector<1x128xf32> to vector<1x1x128xf32>
    %416 = vector.broadcast %415 : vector<1x1x128xf32> to vector<5x24x128xf32>
    %417 = arith.mulf %414, %416 : vector<5x24x128xf32>
    %418 = arith.addf %409, %417 : vector<5x24x128xf32>
    %419 = vector.shape_cast %37 : vector<1x128xf32> to vector<1x1x128xf32>
    %420 = vector.broadcast %419 : vector<1x1x128xf32> to vector<5x24x128xf32>
    %421 = arith.addf %418, %420 : vector<5x24x128xf32>
    %cst_268 = arith.constant 0.000000e+00 : f32
    %422 = vector.broadcast %cst_268 : f32 to vector<5x24x128xf32>
    %423 = arith.maximumf %421, %422 : vector<5x24x128xf32>
    %424 = vector.shape_cast %423 : vector<5x24x128xf32> to vector<120x128xf32>
    %cst_269 = arith.constant dense<0.000000e+00> : vector<120x128xf32>
    %425 = tpu.matmul %424, %38, %cst_269 {dimension_numbers = #tpu.dot_dimension_numbers<[1], [0], [0], [1], [0, 0, 1, 1], [], []>} : vector<120x128xf32>, vector<128x128xf32>, vector<120x128xf32> -> vector<120x128xf32>
    %426 = vector.broadcast %39 : vector<1x128xf32> to vector<120x128xf32>
    %427 = arith.addf %425, %426 : vector<120x128xf32>
    %cst_270 = arith.constant 0.000000e+00 : f32
    %428 = vector.broadcast %cst_270 : f32 to vector<120x128xf32>
    %429 = arith.maximumf %427, %428 : vector<120x128xf32>
    %430 = vector.shape_cast %429 : vector<120x128xf32> to vector<5x24x128xf32>
    %c0_271 = arith.constant 0 : index
    %c15_272 = arith.constant 15 : index
    %c0_273 = arith.constant 0 : index
    %c0_274 = arith.constant 0 : index
    %431 = vector.load %arg7[%c0_271, %c15_272, %c0_273, %c0_274] : memref<1x20x24x128xf32, #tpu.memory_space<vmem>>, vector<1x5x24x128xf32>
    %432 = vector.shape_cast %431 : vector<1x5x24x128xf32> to vector<5x24x128xf32>
    %433 = vector.shape_cast %430 : vector<5x24x128xf32> to vector<1x5x24x128xf32>
    tpu.vector_store %arg7[%c0_271, %c15_272, %c0_273, %c0_274], %433 {strides = array<i32>} : memref<1x20x24x128xf32, #tpu.memory_space<vmem>>, vector<1x5x24x128xf32>,
    return
  }
  func.func @transform_1(%arg0: i32, %arg1: i32) -> (i32, i32, i32) {
    %c0_i32 = arith.constant 0 : i32
    %c0_i32_0 = arith.constant 0 : i32
    %c0_i32_1 = arith.constant 0 : i32
    %c0_i32_2 = arith.constant 0 : i32
    return %c0_i32, %c0_i32_0, %c0_i32_1 : i32, i32, i32
  }
  func.func @transform_2(%arg0: i32, %arg1: i32) -> (i32, i32) {
    %c0_i32 = arith.constant 0 : i32
    %c0_i32_0 = arith.constant 0 : i32
    %c0_i32_1 = arith.constant 0 : i32
    return %c0_i32, %c0_i32_0 : i32, i32
  }
  func.func @transform_3(%arg0: i32, %arg1: i32) -> (i32, i32) {
    %c0_i32 = arith.constant 0 : i32
    %c0_i32_0 = arith.constant 0 : i32
    %c0_i32_1 = arith.constant 0 : i32
    return %c0_i32, %c0_i32_0 : i32, i32
  }
  func.func @transform_4(%arg0: i32, %arg1: i32) -> (i32, i32) {
    %c0_i32 = arith.constant 0 : i32
    %c0_i32_0 = arith.constant 0 : i32
    %c0_i32_1 = arith.constant 0 : i32
    return %c0_i32, %c0_i32_0 : i32, i32
  }
  func.func @transform_5(%arg0: i32, %arg1: i32) -> (i32, i32, i32, i32) {
    %c0_i32 = arith.constant 0 : i32
    %c0_i32_0 = arith.constant 0 : i32
    %c0_i32_1 = arith.constant 0 : i32
    return %arg0, %arg1, %c0_i32, %c0_i32_0 : i32, i32, i32, i32
  }
}

</mosaic_0001>

<llo_original>
// kernel: tpu_custom_call.1
$region0: #{tpu_custom_call.1}
  #allocation0 [shape = 'u32[]', space=smem, size = 0x4, offset = 0x4, fixed_abs, tag = 'smem constant byte address 0x4 - core index']
  #allocation1 [shape = 'u32[144,128]{1,0:T(1,128)}', space=vmem, size = 0x12000, scoped, tag = 'internal scratch']
  %s0 = inlined_call_operand.hbm [shape: f32[2,8,128], index: 0, kind: input, shape index: {}]
  %s1 = inlined_call_operand.hbm [shape: f32[2,8,128], index: 1, kind: output, shape index: {}]
  %s2 = sld [smem:[#allocation0]]
  $region18: #{tpu_custom_call.1} parent=0
    _
  %s4 = ssub.s32 1, %s2
  %s5 = scalar_select 0, %s4, %s2
  $region1: #{tpu_custom_call.1} parent=0
    #allocation2 [shape = 'u8[8192]{0}', space=vmem, size = 0x2000, scoped, tag = 'input window, operand 0, single buffered']
    #allocation3 [shape = 's32[1]{0}', space=sflag, size = 0x4, scoped, tag = 'scoped memory for tpu_custom_call.1']
    #allocation4 [shape = 's32[1]{0}', space=sflag, size = 0x4, scoped, tag = 'scoped memory for tpu_custom_call.1']
    #allocation5 [shape = 'u8[8192]{0}', space=vmem, size = 0x2000, scoped, tag = 'output window, operand 0, single buffered']
    %6 = vsyncpa [#allocation3], 0
    %7 = vsyncpa [#allocation4], 0
    // Predicated region
    $region2: #{tpu_custom_call.1} parent=1 // pred_check
      _
    $region3: #{tpu_custom_call.1} parent=1 // pred_check_branch
      %9 = sbr.rel (0) target = $region5
    $region4: #{tpu_custom_call.1} parent=1 // pred_region
      %s11 = ssub.s32 256, 256
      %12 = vsyncadd [#allocation3], %s11
      %s13 = sshll.u32 [#allocation2], 4
      %s14 = int_to_ptr.vmem [resolvable:$true] %s13
      %19 = dma.hbm_to_vmem [thread:$0]  %s0, 256, %s14, [#allocation3], 128, 128, 8
    $region5: #{tpu_custom_call.1} parent=1 // pred_fallthru
      _
    // Predicated region
    $region6: #{tpu_custom_call.1} parent=1 // pred_check
      _
    $region7: #{tpu_custom_call.1} parent=1 // pred_check_branch
      %21 = sbr.rel (0) target = $region9
    $region8: #{tpu_custom_call.1} parent=1 // pred_region
      %22 = dma.done [#allocation3], 256
    $region9: #{tpu_custom_call.1} parent=1 // pred_fallthru
      _
    %v23 = vld [vmem:[#allocation2] sm:$0xff]
    %v24 = vld [vmem:[#allocation2 + $0x8] sm:$0xff]
    %v25 = vrot.slane %v23, 7
    %v26 = vrot.slane %v24, 7
    %27 = vst [vmem:[#allocation5] sm:$0xff] %v25
    %28 = vst [vmem:[#allocation5 + $0x8] sm:$0xff] %v26
    // Predicated region
    $region10: #{tpu_custom_call.1} parent=1 // pred_check
      _
    $region11: #{tpu_custom_call.1} parent=1 // pred_check_branch
      %30 = sbr.rel (0) target = $region13
    $region12: #{tpu_custom_call.1} parent=1 // pred_region
      %s32 = ssub.s32 256, 256
      %33 = vsyncadd [#allocation4], %s32
      %s34 = sshll.u32 [#allocation5], 4
      %s35 = int_to_ptr.vmem [resolvable:$true] %s34
      %40 = dma.vmem_to_hbm [thread:$0]  %s35, 256, %s1, [#allocation4], 128, 128, 8
    $region13: #{tpu_custom_call.1} parent=1 // pred_fallthru
      _
    // Predicated region
    $region14: #{tpu_custom_call.1} parent=1 // pred_check
      _
    $region15: #{tpu_custom_call.1} parent=1 // pred_check_branch
      %42 = sbr.rel (0) target = $region17
    $region16: #{tpu_custom_call.1} parent=1 // pred_region
      %43 = dma.done [#allocation4], 256
    $region17: #{tpu_custom_call.1} parent=1 // pred_fallthru
      _
    %44 = vsyncpa [#allocation3], 1
    %45 = vsyncpa [#allocation4], 1

// kernel: tpu_custom_call.1
$region0: #{tpu_custom_call.1}
  #allocation0 [shape = 'u32[]', space=smem, size = 0x4, offset = 0x4, fixed_abs, tag = 'smem constant byte address 0x4 - core index']
  #allocation1 [shape = 'u32[144,128]{1,0:T(1,128)}', space=vmem, size = 0x12000, scoped, tag = 'internal scratch']
  #allocation2 [shape = 'f32[22,1,24,128]{3,2,1,0:T(8,128)}', space=vmem, size = 0x42000, scoped, tag = 'scratch operand']
  #allocation3 [shape = 's32[5]{0}', space=sflag, size = 0x14, scoped, tag = 'scratch operand']
  #allocation10 [shape = 's32[]', space=sflag, size = 0x4, offset = 0, fixed_abs, tag = 'sflag constant byte address 0x0 - dummy sync flag']
  #allocation11 [shape = 's32[]', space=sflag, size = 0x4, offset = 0, fixed_abs, tag = 'sflag constant byte address 0x0 - dummy sync flag']
  #allocation12 [shape = 'u32[]', space=smem, size = 0x4, offset = 0x44, fixed_abs, tag = 'smem constant byte address 0x44 - assertion arg 0']
  #allocation13 [shape = 'u32[]', space=smem, size = 0x4, offset = 0x48, fixed_abs, tag = 'smem constant byte address 0x48 - assertion arg 1']
  #allocation14 [shape = 's32[]', space=sflag, size = 0x4, offset = 0, fixed_abs, tag = 'sflag constant byte address 0x0 - dummy sync flag']
  #allocation15 [shape = 's32[]', space=sflag, size = 0x4, offset = 0, fixed_abs, tag = 'sflag constant byte address 0x0 - dummy sync flag']
  #allocation16 [shape = 's32[]', space=sflag, size = 0x4, offset = 0, fixed_abs, tag = 'sflag constant byte address 0x0 - dummy sync flag']
  #allocation17 [shape = 's32[]', space=sflag, size = 0x4, offset = 0, fixed_abs, tag = 'sflag constant byte address 0x0 - dummy sync flag']
  #allocation18 [shape = 's32[]', space=sflag, size = 0x4, offset = 0, fixed_abs, tag = 'sflag constant byte address 0x0 - dummy sync flag']
  #allocation19 [shape = 's32[]', space=sflag, size = 0x4, offset = 0, fixed_abs, tag = 'sflag constant byte address 0x0 - dummy sync flag']
  #allocation20 [shape = 's32[]', space=sflag, size = 0x4, offset = 0, fixed_abs, tag = 'sflag constant byte address 0x0 - dummy sync flag']
  #allocation21 [shape = 's32[]', space=sflag, size = 0x4, offset = 0, fixed_abs, tag = 'sflag constant byte address 0x0 - dummy sync flag']
  %s0 = inlined_call_operand.hbm [shape: f32[2,22,1,24,128], index: 0, kind: input, shape index: {}]
  %s1 = inlined_call_operand.hbm [shape: f32[9,1,128], index: 1, kind: input, shape index: {}]
  %s2 = inlined_call_operand.vmem [shape: f32[1,128], index: 2, kind: input, shape index: {}]
  %s3 = inlined_call_operand.hbm [shape: f32[128,128], index: 3, kind: input, shape index: {}]
  %s4 = inlined_call_operand.vmem [shape: f32[1,128], index: 4, kind: input, shape index: {}]
  %s5 = inlined_call_operand.hbm [shape: f32[2,20,24,128], index: 5, kind: output, shape index: {}]
  %s6 = sld [smem:[#allocation0]]
  $region77: #{tpu_custom_call.1} parent=0
    _
  %s8 = ssub.s32 1, %s6
  %s9 = scalar_select 0, %s8, %s6
  $region1: #{tpu_custom_call.1} parent=0
    #allocation4 [shape = 'u8[4608]{0}', space=vmem, size = 0x1400, scoped, tag = 'input window, operand 1, single buffered']
    #allocation5 [shape = 's32[2]{0}', space=sflag, size = 0x8, scoped, tag = 'scoped memory for tpu_custom_call.1']
    #allocation6 [shape = 's32[2]{0}', space=sflag, size = 0x8, scoped, tag = 'scoped memory for tpu_custom_call.1']
    #allocation7 [shape = 'u8[65536]{0}', space=vmem, size = 0x10000, scoped, tag = 'input window, operand 3, single buffered']
    #allocation8 [shape = 's32[1]{0}', space=sflag, size = 0x4, scoped, tag = 'scoped memory for tpu_custom_call.1']
    #allocation9 [shape = 'u8[491520]{0}', space=vmem, size = 0x78000, scoped, tag = 'output window, operand 0']
    %10 = vsyncpa [#allocation5], 0
    %11 = vsyncpa [#allocation8], 0
    %12 = vsyncpa [#allocation6], 0
    %s13 = scalar_lea.sflag [#allocation6], 1
    %14 = vsyncpa %s13, 0
    loop: start=0, step=1, limit=4
    $region2: #{tpu_custom_call.1} parent=1 // loop_pre_header
      _
    $region3: #{tpu_custom_call.1} parent=1 // loop_header
      %s16 = sphi 0, %s20
      %p17 = scmp.ge.s32.totalorder %s16, 4
      %s23 = sphi 0, %s35
      %s24 = sphi 0, %s31
      %s25 = sphi 0, %s23
      %s26 = sphi 0, %s24
      %s27 = sphi 0, %s25
      %s28 = sphi 0, %s26
      %s36 = sphi 0, %s36
      %s38 = sphi 0, %s36
      %s39 = sphi 0, %s38
      %s53 = sphi 0, %s39
      %s57 = sphi 0, %s57
      %s59 = sphi 0, %s57
      %s60 = sphi 0, %s59
      %s74 = sphi 0, %s60
      %s78 = sphi 0, %s78
      %s80 = sphi 0, %s78
      %s81 = sphi 0, %s80
      %s95 = sphi 0, %s81
      %s99 = sphi 0, %s99
      %s101 = sphi 0, %s99
      %s102 = sphi 0, %s101
      %s116 = sphi 0, %s102
      %s124 = sphi 0, %s126
      %s127 = sphi 0, %s124
      %s128 = sphi 0, %s127
      %s144 = sphi 0, %s128
    $region4: #{tpu_custom_call.1} parent=1 // loop_header_branch
      %19 = sbr.rel (%p17) target = $region8
    $region5: #{tpu_custom_call.1} parent=1 // loop_body
      %s21 = ssub.s32 %s16, 1
      %s22 = ssub.s32 %s16, 2
      %s29 = sadd.s32 1, %s24
      %p30 = scmp.ge.s32.totalorder %s29, 1
      %s31 = scalar_select %p30, 0, %s29
      %s32 = sadd.s32 1, %s23
      %s33 = scalar_select %p30, %s32, %s23
      %p34 = scmp.ge.s32.totalorder %s33, 2
      %s35 = scalar_select %p34, 0, %s33
      %s37 = sadd.s32 %s36, 1
      %p40 = scmp.eq.s32.totalorder %s16, 1
      %p41 = scmp.ne.s32.totalorder %s36, %s38
      %p42 = scmp.eq.s32.totalorder %s16, 0
      %p43 = por %p41, %p42
      %p44 = scmp.ne.s32.totalorder %s36, %s38
      %p45 = scmp.eq.s32.totalorder %s21, 1
      %p46 = por %p44, %p45
      %p47 = scmp.ne.s32.totalorder %s38, %s39
      %p48 = scmp.eq.s32.totalorder %s21, 0
      %p49 = por %p47, %p48
      %p50 = scmp.ne.s32.totalorder %s38, %s39
      %p51 = scmp.eq.s32.totalorder %s22, 1
      %p52 = por %p50, %p51
      %p54 = scmp.ne.s32.totalorder %s39, %s53
      %p55 = scmp.eq.s32.totalorder %s22, 0
      %p56 = por %p54, %p55
      %s58 = sadd.s32 %s57, 1
      %p61 = scmp.eq.s32.totalorder %s16, 1
      %p62 = scmp.ne.s32.totalorder %s57, %s59
      %p63 = scmp.eq.s32.totalorder %s16, 0
      %p64 = por %p62, %p63
      %p65 = scmp.ne.s32.totalorder %s57, %s59
      %p66 = scmp.eq.s32.totalorder %s21, 1
      %p67 = por %p65, %p66
      %p68 = scmp.ne.s32.totalorder %s59, %s60
      %p69 = scmp.eq.s32.totalorder %s21, 0
      %p70 = por %p68, %p69
      %p71 = scmp.ne.s32.totalorder %s59, %s60
      %p72 = scmp.eq.s32.totalorder %s22, 1
      %p73 = por %p71, %p72
      %p75 = scmp.ne.s32.totalorder %s60, %s74
      %p76 = scmp.eq.s32.totalorder %s22, 0
      %p77 = por %p75, %p76
      %s79 = sadd.s32 %s78, 1
      %p82 = scmp.eq.s32.totalorder %s16, 1
      %p83 = scmp.ne.s32.totalorder %s78, %s80
      %p84 = scmp.eq.s32.totalorder %s16, 0
      %p85 = por %p83, %p84
      %p86 = scmp.ne.s32.totalorder %s78, %s80
      %p87 = scmp.eq.s32.totalorder %s21, 1
      %p88 = por %p86, %p87
      %p89 = scmp.ne.s32.totalorder %s80, %s81
      %p90 = scmp.eq.s32.totalorder %s21, 0
      %p91 = por %p89, %p90
      %p92 = scmp.ne.s32.totalorder %s80, %s81
      %p93 = scmp.eq.s32.totalorder %s22, 1
      %p94 = por %p92, %p93
      %p96 = scmp.ne.s32.totalorder %s81, %s95
      %p97 = scmp.eq.s32.totalorder %s22, 0
      %p98 = por %p96, %p97
      %s100 = sadd.s32 %s99, 1
      %p103 = scmp.eq.s32.totalorder %s16, 1
      %p104 = scmp.ne.s32.totalorder %s99, %s101
      %p105 = scmp.eq.s32.totalorder %s16, 0
      %p106 = por %p104, %p105
      %p107 = scmp.ne.s32.totalorder %s99, %s101
      %p108 = scmp.eq.s32.totalorder %s21, 1
      %p109 = por %p107, %p108
      %p110 = scmp.ne.s32.totalorder %s101, %s102
      %p111 = scmp.eq.s32.totalorder %s21, 0
      %p112 = por %p110, %p111
      %p113 = scmp.ne.s32.totalorder %s101, %s102
      %p114 = scmp.eq.s32.totalorder %s22, 1
      %p115 = por %p113, %p114
      %p117 = scmp.ne.s32.totalorder %s102, %s116
      %p118 = scmp.eq.s32.totalorder %s22, 0
      %p119 = por %p117, %p118
      %s120 = ssub.s32 %s23, %s35
      %s121 = ssub.s32 %s24, %s31
      %s122 = sor.u32 %s120, %s121
      %p123 = scmp.eq.s32.totalorder %s122, 0
      %s125 = sadd.s32 %s124, 1
      %s126 = scalar_select %p123, %s124, %s125
      %p129 = pneg %p123
      %p130 = scmp.eq.s32.totalorder %s16, 1
      %p131 = por %p129, %p130
      %p132 = scmp.ne.s32.totalorder %s124, %s127
      %p133 = scmp.eq.s32.totalorder %s16, 0
      %p134 = por %p132, %p133
      %p135 = scmp.ne.s32.totalorder %s124, %s127
      %p136 = scmp.eq.s32.totalorder %s21, 1
      %p137 = por %p135, %p136
      %p138 = scmp.ne.s32.totalorder %s127, %s128
      %p139 = scmp.eq.s32.totalorder %s21, 0
      %p140 = por %p138, %p139
      %p141 = scmp.ne.s32.totalorder %s127, %s128
      %p142 = scmp.eq.s32.totalorder %s22, 1
      %p143 = por %p141, %p142
      %p145 = scmp.ne.s32.totalorder %s128, %s144
      %p146 = scmp.eq.s32.totalorder %s22, 0
      %p147 = por %p145, %p146
      %p148 = scmp.le.s32.totalorder 1, %s16
      %p149 = scmp.lt.s32.totalorder %s16, 3
      %p150 = pnand %p148, %p149
      %p151 = pneg %p150
      // Predicated region
      $region9: #{tpu_custom_call.1} parent=5 // pred_check
        _
      $region10: #{tpu_custom_call.1} parent=5 // pred_check_branch
        %153 = sbr.rel (%p150) target = $region12
      $region11: #{tpu_custom_call.1} parent=5 // pred_region
        %s154 = ssub.s32 %s16, 1
        // Predicated region
        $region13: #{tpu_custom_call.1} parent=11 // pred_check
          %p155 = pneg %p49
        $region14: #{tpu_custom_call.1} parent=11 // pred_check_branch
          %157 = sbr.rel (%p155) target = $region16
        $region15: #{tpu_custom_call.1} parent=11 // pred_region
          %s159 = ssub.s32 144, 144
          %160 = vsyncadd [#allocation5], %s159
          %s161 = sshll.u32 [#allocation4], 4
          %s162 = int_to_ptr.vmem [resolvable:$true] %s161
          %167 = dma.hbm_to_vmem [thread:$0]  %s1, 144, %s162, [#allocation5], 16, 16, 1
        $region16: #{tpu_custom_call.1} parent=11 // pred_fallthru
          _
        // Predicated region
        $region17: #{tpu_custom_call.1} parent=11 // pred_check
          %p168 = pneg %p70
        $region18: #{tpu_custom_call.1} parent=11 // pred_check_branch
          %170 = sbr.rel (%p168) target = $region20
        $region19: #{tpu_custom_call.1} parent=11 // pred_region
          _
        $region20: #{tpu_custom_call.1} parent=11 // pred_fallthru
          _
        // Predicated region
        $region21: #{tpu_custom_call.1} parent=11 // pred_check
          %p171 = pneg %p91
        $region22: #{tpu_custom_call.1} parent=11 // pred_check_branch
          %173 = sbr.rel (%p171) target = $region24
        $region23: #{tpu_custom_call.1} parent=11 // pred_region
          %s175 = ssub.s32 2048, 2048
          %176 = vsyncadd [#allocation8], %s175
          %s177 = sshll.u32 [#allocation7], 4
          %s178 = int_to_ptr.vmem [resolvable:$true] %s177
          %183 = dma.hbm_to_vmem [thread:$0]  %s3, 2048, %s178, [#allocation8], 128, 128, 8
        $region24: #{tpu_custom_call.1} parent=11 // pred_fallthru
          _
        // Predicated region
        $region25: #{tpu_custom_call.1} parent=11 // pred_check
          %p184 = pneg %p112
        $region26: #{tpu_custom_call.1} parent=11 // pred_check_branch
          %186 = sbr.rel (%p184) target = $region28
        $region27: #{tpu_custom_call.1} parent=11 // pred_region
          _
        $region28: #{tpu_custom_call.1} parent=11 // pred_fallthru
          _
      $region12: #{tpu_custom_call.1} parent=5 // pred_fallthru
        _
      %p187 = scmp.lt.s32.totalorder %s16, 2
      // Predicated region
      $region29: #{tpu_custom_call.1} parent=5 // pred_check
        %p188 = pneg %p187
      $region30: #{tpu_custom_call.1} parent=5 // pred_check_branch
        %190 = sbr.rel (%p188) target = $region32
      $region31: #{tpu_custom_call.1} parent=5 // pred_region
        _
      $region32: #{tpu_custom_call.1} parent=5 // pred_fallthru
        _
      %p191 = scmp.le.s32.totalorder 1, %s16
      %p192 = scmp.lt.s32.totalorder %s16, 3
      %p193 = pnand %p191, %p192
      %p194 = pneg %p193
      // Predicated region
      $region33: #{tpu_custom_call.1} parent=5 // pred_check
        _
      $region34: #{tpu_custom_call.1} parent=5 // pred_check_branch
        %196 = sbr.rel (%p193) target = $region36
      $region35: #{tpu_custom_call.1} parent=5 // pred_region
        %s197 = ssub.s32 %s16, 1
        // Predicated region
        $region37: #{tpu_custom_call.1} parent=35 // pred_check
          %p198 = pneg %p49
        $region38: #{tpu_custom_call.1} parent=35 // pred_check_branch
          %200 = sbr.rel (%p198) target = $region40
        $region39: #{tpu_custom_call.1} parent=35 // pred_region
          %201 = dma.done [#allocation5], 144
        $region40: #{tpu_custom_call.1} parent=35 // pred_fallthru
          _
        // Predicated region
        $region41: #{tpu_custom_call.1} parent=35 // pred_check
          %p202 = pneg %p91
        $region42: #{tpu_custom_call.1} parent=35 // pred_check_branch
          %204 = sbr.rel (%p202) target = $region44
        $region43: #{tpu_custom_call.1} parent=35 // pred_region
          %205 = dma.done [#allocation8], 2048
        $region44: #{tpu_custom_call.1} parent=35 // pred_fallthru
          _
        %p206 = pneg %p49
        %p207 = pneg %p46
        %p208 = pneg %p70
        %p209 = pneg %p67
        %p210 = pneg %p91
        %p211 = pneg %p88
        %p212 = pneg %p112
        %p213 = pneg %p109
        %p214 = pneg %p140
        %p215 = pneg %p137
        %s216 = sand.u32 %s127, 1
        %s217 = scalar_lea.sflag [#allocation6], %s216
        %s218 = sand.u32 %s127, 1
        %s219 = smul.addr %s218, 480
        %s220 = scalar_lea.vmem [#allocation9], %s219
        %s221 = smul.u32 20, %s26
        %s222 = smul.u32 %s26, 20
        %s223 = smul.u32 %s222, 24
        %s224 = smul.u32 %s25, 528
        %s225 = sadd.s32 %s223, %s224
        %s226 = smul.addr %s225, 16
        %s227 = scalar_lea.hbm %s0, %s226
        // Predicated region
        $region45: #{tpu_custom_call.1} parent=35 // pred_check
          _
        $region46: #{tpu_custom_call.1} parent=35 // pred_check_branch
          %229 = sbr.rel target = $region48
        $region47: #{tpu_custom_call.1} parent=35 // pred_region
          %230 = sst [smem:[#allocation12]] [#allocation11]
          %231 = sst [smem:[#allocation13]] [#allocation10]
        $region48: #{tpu_custom_call.1} parent=35 // pred_fallthru
          _
        %233 = shalt.err (0)
        %s235 = sshll.u32 [#allocation2], 4
        %s236 = int_to_ptr.vmem [resolvable:$true] %s235
        %238 = dma.hbm_to_vmem [thread:$0]  %s227, 1920, %s236, [#allocation3]
        %s239 = sadd.s32 %s222, 5
        %s240 = smul.u32 %s239, 24
        %s241 = sadd.s32 %s240, %s224
        %s242 = smul.addr %s241, 16
        %s243 = scalar_lea.hbm %s0, %s242
        %s244 = scalar_lea.vmem [#allocation2], 120
        %s245 = scalar_lea.sflag [#allocation3], 1
        // Predicated region
        $region49: #{tpu_custom_call.1} parent=35 // pred_check
          _
        $region50: #{tpu_custom_call.1} parent=35 // pred_check_branch
          %247 = sbr.rel target = $region52
        $region51: #{tpu_custom_call.1} parent=35 // pred_region
          %248 = sst [smem:[#allocation12]] [#allocation15]
          %249 = sst [smem:[#allocation13]] [#allocation14]
        $region52: #{tpu_custom_call.1} parent=35 // pred_fallthru
          _
        %251 = shalt.err (0)
        %s253 = sshll.u32 %s244, 4
        %s254 = int_to_ptr.vmem [resolvable:$true] %s253
        %256 = dma.hbm_to_vmem [thread:$0]  %s243, 1920, %s254, %s245
        %s257 = smul.u32 5, 1
        %s258 = smul.u32 %s257, 24
        %s259 = smul.u32 %s258, 1
        %s260 = sshll.u32 %s259, 4
        %261 = dma.done [#allocation3], %s260
        %v262 = vld [vmem:[#allocation4] sm:$0x1]
        %s263 = scalar_lea.vmem [#allocation4], 1
        %v264 = vld [vmem:[%s263] sm:$0x1]
        %s265 = scalar_lea.vmem [#allocation4], 2
        %v266 = vld [vmem:[%s265] sm:$0x1]
        %s267 = scalar_lea.vmem [#allocation4], 3
        %v268 = vld [vmem:[%s267] sm:$0x1]
        %s269 = scalar_lea.vmem [#allocation4], 4
        %v270 = vld [vmem:[%s269] sm:$0x1]
        %s271 = scalar_lea.vmem [#allocation4], 5
        %v272 = vld [vmem:[%s271] sm:$0x1]
        %s273 = scalar_lea.vmem [#allocation4], 6
        %v274 = vld [vmem:[%s273] sm:$0x1]
        %s275 = scalar_lea.vmem [#allocation4], 7
        %v276 = vld [vmem:[%s275] sm:$0x1]
        %s277 = scalar_lea.vmem [#allocation4], 8
        %v278 = vld [vmem:[%s277] sm:$0x1]
        %v279 = vld [vmem:[%s2] sm:$0x1]
        %v280 = vld [vmem:[#allocation7] sm:$0xff]
        %v281 = vld [vmem:[#allocation7 + $0x8] sm:$0xff]
        %v282 = vld [vmem:[#allocation7 + $0x10] sm:$0xff]
        %v283 = vld [vmem:[#allocation7 + $0x18] sm:$0xff]
        %v284 = vld [vmem:[#allocation7 + $0x20] sm:$0xff]
        %v285 = vld [vmem:[#allocation7 + $0x28] sm:$0xff]
        %v286 = vld [vmem:[#allocation7 + $0x30] sm:$0xff]
        %v287 = vld [vmem:[#allocation7 + $0x38] sm:$0xff]
        %v288 = vld [vmem:[#allocation7 + $0x40] sm:$0xff]
        %v289 = vld [vmem:[#allocation7 + $0x48] sm:$0xff]
        %v290 = vld [vmem:[#allocation7 + $0x50] sm:$0xff]
        %v291 = vld [vmem:[#allocation7 + $0x58] sm:$0xff]
        %v292 = vld [vmem:[#allocation7 + $0x60] sm:$0xff]
        %v293 = vld [vmem:[#allocation7 + $0x68] sm:$0xff]
        %v294 = vld [vmem:[#allocation7 + $0x70] sm:$0xff]
        %v295 = vld [vmem:[#allocation7 + $0x78] sm:$0xff]
        %v296 = vld [vmem:[%s4] sm:$0x1]
        %s297 = sadd.s32 %s222, 10
        %s298 = smul.u32 %s297, 24
        %s299 = sadd.s32 %s298, %s224
        %s300 = smul.addr %s299, 16
        %s301 = scalar_lea.hbm %s0, %s300
        %s302 = scalar_lea.vmem [#allocation2], 240
        %s303 = scalar_lea.sflag [#allocation3], 2
        // Predicated region
        $region53: #{tpu_custom_call.1} parent=35 // pred_check
          _
        $region54: #{tpu_custom_call.1} parent=35 // pred_check_branch
          %305 = sbr.rel target = $region56
        $region55: #{tpu_custom_call.1} parent=35 // pred_region
          %306 = sst [smem:[#allocation12]] [#allocation17]
          %307 = sst [smem:[#allocation13]] [#allocation16]
        $region56: #{tpu_custom_call.1} parent=35 // pred_fallthru
          _
        %309 = shalt.err (0)
        %s311 = sshll.u32 %s302, 4
        %s312 = int_to_ptr.vmem [resolvable:$true] %s311
        %314 = dma.hbm_to_vmem [thread:$0]  %s301, 1920, %s312, %s303
        %s315 = sshll.u32 %s259, 4
        %316 = dma.done %s245, %s315
        %v317 = vld [vmem:[#allocation2] sm:$0xff]
        %v318 = vld [vmem:[#allocation2 + $0x8] sm:$0xff]
        %v319 = vld [vmem:[#allocation2 + $0x10] sm:$0xff]
        %v320 = vld [vmem:[#allocation2 + $0x18] sm:$0xff]
        %v321 = vld [vmem:[#allocation2 + $0x20] sm:$0xff]
        %v322 = vld [vmem:[#allocation2 + $0x28] sm:$0xff]
        %v323 = vld [vmem:[#allocation2 + $0x30] sm:$0xff]
        %v324 = vld [vmem:[#allocation2 + $0x38] sm:$0xff]
        %v325 = vld [vmem:[#allocation2 + $0x40] sm:$0xff]
        %v326 = vld [vmem:[#allocation2 + $0x48] sm:$0xff]
        %v327 = vld [vmem:[#allocation2 + $0x50] sm:$0xff]
        %v328 = vld [vmem:[#allocation2 + $0x58] sm:$0xff]
        %v329 = vld [vmem:[#allocation2 + $0x60] sm:$0xff]
        %v330 = vld [vmem:[#allocation2 + $0x68] sm:$0xff]
        %v331 = vld [vmem:[#allocation2 + $0x70] sm:$0xff]
        %v333 = vlaneseq
        %v334 = vshrl.u32 %v333, 7
        %v335 = vsub.s32 0, %v334
        %v336 = vrot.slane %v262, %v335
        %v338 = vmul.f32 %v317, %v336
        %v339 = vmul.f32 %v318, %v336
        %v340 = vmul.f32 %v319, %v336
        %v341 = vmul.f32 %v320, %v336
        %v342 = vmul.f32 %v321, %v336
        %v343 = vmul.f32 %v322, %v336
        %v344 = vmul.f32 %v323, %v336
        %v345 = vmul.f32 %v324, %v336
        %v346 = vmul.f32 %v325, %v336
        %v347 = vmul.f32 %v326, %v336
        %v348 = vmul.f32 %v327, %v336
        %v349 = vmul.f32 %v328, %v336
        %v350 = vmul.f32 %v329, %v336
        %v351 = vmul.f32 %v330, %v336
        %v352 = vmul.f32 %v331, %v336
        %v353 = vadd.f32 %v338, 0.0
        %v354 = vadd.f32 %v339, 0.0
        %v355 = vadd.f32 %v340, 0.0
        %v356 = vadd.f32 %v341, 0.0
        %v357 = vadd.f32 %v342, 0.0
        %v358 = vadd.f32 %v343, 0.0
        %v359 = vadd.f32 %v344, 0.0
        %v360 = vadd.f32 %v345, 0.0
        %v361 = vadd.f32 %v346, 0.0
        %v362 = vadd.f32 %v347, 0.0
        %v363 = vadd.f32 %v348, 0.0
        %v364 = vadd.f32 %v349, 0.0
        %v365 = vadd.f32 %v350, 0.0
        %v366 = vadd.f32 %v351, 0.0
        %v367 = vadd.f32 %v352, 0.0
        %vm383 = vcmask 1046528
        %v384 = vrot.slane %v317, 1
        %v385 = vrot.slane %v318, 1
        %v386 = vsel %vm383, %v384, %v385
        %v387 = vrot.slane %v319, 1
        %v388 = vsel %vm383, %v385, %v387
        %v389 = vrot.slane %v320, 1
        %v390 = vrot.slane %v321, 1
        %v391 = vsel %vm383, %v389, %v390
        %v392 = vrot.slane %v322, 1
        %v393 = vsel %vm383, %v390, %v392
        %v394 = vrot.slane %v323, 1
        %v395 = vrot.slane %v324, 1
        %v396 = vsel %vm383, %v394, %v395
        %v397 = vrot.slane %v325, 1
        %v398 = vsel %vm383, %v395, %v397
        %v399 = vrot.slane %v326, 1
        %v400 = vrot.slane %v327, 1
        %v401 = vsel %vm383, %v399, %v400
        %v402 = vrot.slane %v328, 1
        %v403 = vsel %vm383, %v400, %v402
        %v404 = vrot.slane %v329, 1
        %v405 = vrot.slane %v330, 1
        %v406 = vsel %vm383, %v404, %v405
        %v407 = vrot.slane %v331, 1
        %v408 = vsel %vm383, %v405, %v407
        %v429 = vsel %vm383, %v387, %v384
        %v430 = vsel %vm383, %v392, %v389
        %v431 = vsel %vm383, %v397, %v394
        %v432 = vsel %vm383, %v402, %v399
        %v433 = vsel %vm383, %v407, %v404
        %v435 = vlaneseq
        %v436 = vshrl.u32 %v435, 7
        %v437 = vsub.s32 0, %v436
        %v438 = vrot.slane %v264, %v437
        %v440 = vmul.f32 %v386, %v438
        %v441 = vmul.f32 %v388, %v438
        %v442 = vmul.f32 %v429, %v438
        %v443 = vmul.f32 %v391, %v438
        %v444 = vmul.f32 %v393, %v438
        %v445 = vmul.f32 %v430, %v438
        %v446 = vmul.f32 %v396, %v438
        %v447 = vmul.f32 %v398, %v438
        %v448 = vmul.f32 %v431, %v438
        %v449 = vmul.f32 %v401, %v438
        %v450 = vmul.f32 %v403, %v438
        %v451 = vmul.f32 %v432, %v438
        %v452 = vmul.f32 %v406, %v438
        %v453 = vmul.f32 %v408, %v438
        %v454 = vmul.f32 %v433, %v438
        %v455 = vadd.f32 %v353, %v440
        %v456 = vadd.f32 %v354, %v441
        %v457 = vadd.f32 %v355, %v442
        %v458 = vadd.f32 %v356, %v443
        %v459 = vadd.f32 %v357, %v444
        %v460 = vadd.f32 %v358, %v445
        %v461 = vadd.f32 %v359, %v446
        %v462 = vadd.f32 %v360, %v447
        %v463 = vadd.f32 %v361, %v448
        %v464 = vadd.f32 %v362, %v449
        %v465 = vadd.f32 %v363, %v450
        %v466 = vadd.f32 %v364, %v451
        %v467 = vadd.f32 %v365, %v452
        %v468 = vadd.f32 %v366, %v453
        %v469 = vadd.f32 %v367, %v454
        %vm470 = vcmask 1045504
        %v471 = vrot.slane %v317, 2
        %v472 = vrot.slane %v318, 2
        %v473 = vsel %vm470, %v471, %v472
        %v474 = vrot.slane %v319, 2
        %v475 = vsel %vm470, %v472, %v474
        %v476 = vrot.slane %v320, 2
        %v477 = vrot.slane %v321, 2
        %v478 = vsel %vm470, %v476, %v477
        %v479 = vrot.slane %v322, 2
        %v480 = vsel %vm470, %v477, %v479
        %v481 = vrot.slane %v323, 2
        %v482 = vrot.slane %v324, 2
        %v483 = vsel %vm470, %v481, %v482
        %v484 = vrot.slane %v325, 2
        %v485 = vsel %vm470, %v482, %v484
        %v486 = vrot.slane %v326, 2
        %v487 = vrot.slane %v327, 2
        %v488 = vsel %vm470, %v486, %v487
        %v489 = vrot.slane %v328, 2
        %v490 = vsel %vm470, %v487, %v489
        %v491 = vrot.slane %v329, 2
        %v492 = vrot.slane %v330, 2
        %v493 = vsel %vm470, %v491, %v492
        %v494 = vrot.slane %v331, 2
        %v495 = vsel %vm470, %v492, %v494
        %v516 = vsel %vm470, %v474, %v471
        %v517 = vsel %vm470, %v479, %v476
        %v518 = vsel %vm470, %v484, %v481
        %v519 = vsel %vm470, %v489, %v486
        %v520 = vsel %vm470, %v494, %v491
        %v522 = vlaneseq
        %v523 = vshrl.u32 %v522, 7
        %v524 = vsub.s32 0, %v523
        %v525 = vrot.slane %v266, %v524
        %v527 = vmul.f32 %v473, %v525
        %v528 = vmul.f32 %v475, %v525
        %v529 = vmul.f32 %v516, %v525
        %v530 = vmul.f32 %v478, %v525
        %v531 = vmul.f32 %v480, %v525
        %v532 = vmul.f32 %v517, %v525
        %v533 = vmul.f32 %v483, %v525
        %v534 = vmul.f32 %v485, %v525
        %v535 = vmul.f32 %v518, %v525
        %v536 = vmul.f32 %v488, %v525
        %v537 = vmul.f32 %v490, %v525
        %v538 = vmul.f32 %v519, %v525
        %v539 = vmul.f32 %v493, %v525
        %v540 = vmul.f32 %v495, %v525
        %v541 = vmul.f32 %v520, %v525
        %v542 = vadd.f32 %v455, %v527
        %v543 = vadd.f32 %v456, %v528
        %v544 = vadd.f32 %v457, %v529
        %v545 = vadd.f32 %v458, %v530
        %v546 = vadd.f32 %v459, %v531
        %v547 = vadd.f32 %v460, %v532
        %v548 = vadd.f32 %v461, %v533
        %v549 = vadd.f32 %v462, %v534
        %v550 = vadd.f32 %v463, %v535
        %v551 = vadd.f32 %v464, %v536
        %v552 = vadd.f32 %v465, %v537
        %v553 = vadd.f32 %v466, %v538
        %v554 = vadd.f32 %v467, %v539
        %v555 = vadd.f32 %v468, %v540
        %v556 = vadd.f32 %v469, %v541
        %s557 = scalar_lea.vmem [#allocation2], 24
        %v558 = vld [vmem:[%s557] sm:$0xff]
        %v559 = vld [vmem:[%s557 + $0x8] sm:$0xff]
        %v560 = vld [vmem:[%s557 + $0x10] sm:$0xff]
        %v561 = vld [vmem:[%s557 + $0x18] sm:$0xff]
        %v562 = vld [vmem:[%s557 + $0x20] sm:$0xff]
        %v563 = vld [vmem:[%s557 + $0x28] sm:$0xff]
        %v564 = vld [vmem:[%s557 + $0x30] sm:$0xff]
        %v565 = vld [vmem:[%s557 + $0x38] sm:$0xff]
        %v566 = vld [vmem:[%s557 + $0x40] sm:$0xff]
        %v567 = vld [vmem:[%s557 + $0x48] sm:$0xff]
        %v568 = vld [vmem:[%s557 + $0x50] sm:$0xff]
        %v569 = vld [vmem:[%s557 + $0x58] sm:$0xff]
        %v570 = vld [vmem:[%s557 + $0x60] sm:$0xff]
        %v571 = vld [vmem:[%s557 + $0x68] sm:$0xff]
        %v572 = vld [vmem:[%s557 + $0x70] sm:$0xff]
        %v574 = vlaneseq
        %v575 = vshrl.u32 %v574, 7
        %v576 = vsub.s32 0, %v575
        %v577 = vrot.slane %v268, %v576
        %v579 = vmul.f32 %v558, %v577
        %v580 = vmul.f32 %v559, %v577
        %v581 = vmul.f32 %v560, %v577
        %v582 = vmul.f32 %v561, %v577
        %v583 = vmul.f32 %v562, %v577
        %v584 = vmul.f32 %v563, %v577
        %v585 = vmul.f32 %v564, %v577
        %v586 = vmul.f32 %v565, %v577
        %v587 = vmul.f32 %v566, %v577
        %v588 = vmul.f32 %v567, %v577
        %v589 = vmul.f32 %v568, %v577
        %v590 = vmul.f32 %v569, %v577
        %v591 = vmul.f32 %v570, %v577
        %v592 = vmul.f32 %v571, %v577
        %v593 = vmul.f32 %v572, %v577
        %v594 = vadd.f32 %v542, %v579
        %v595 = vadd.f32 %v543, %v580
        %v596 = vadd.f32 %v544, %v581
        %v597 = vadd.f32 %v545, %v582
        %v598 = vadd.f32 %v546, %v583
        %v599 = vadd.f32 %v547, %v584
        %v600 = vadd.f32 %v548, %v585
        %v601 = vadd.f32 %v549, %v586
        %v602 = vadd.f32 %v550, %v587
        %v603 = vadd.f32 %v551, %v588
        %v604 = vadd.f32 %v552, %v589
        %v605 = vadd.f32 %v553, %v590
        %v606 = vadd.f32 %v554, %v591
        %v607 = vadd.f32 %v555, %v592
        %v608 = vadd.f32 %v556, %v593
        %v624 = vrot.slane %v558, 1
        %v625 = vrot.slane %v559, 1
        %v626 = vsel %vm383, %v624, %v625
        %v627 = vrot.slane %v560, 1
        %v628 = vsel %vm383, %v625, %v627
        %v629 = vrot.slane %v561, 1
        %v630 = vrot.slane %v562, 1
        %v631 = vsel %vm383, %v629, %v630
        %v632 = vrot.slane %v563, 1
        %v633 = vsel %vm383, %v630, %v632
        %v634 = vrot.slane %v564, 1
        %v635 = vrot.slane %v565, 1
        %v636 = vsel %vm383, %v634, %v635
        %v637 = vrot.slane %v566, 1
        %v638 = vsel %vm383, %v635, %v637
        %v639 = vrot.slane %v567, 1
        %v640 = vrot.slane %v568, 1
        %v641 = vsel %vm383, %v639, %v640
        %v642 = vrot.slane %v569, 1
        %v643 = vsel %vm383, %v640, %v642
        %v644 = vrot.slane %v570, 1
        %v645 = vrot.slane %v571, 1
        %v646 = vsel %vm383, %v644, %v645
        %v647 = vrot.slane %v572, 1
        %v648 = vsel %vm383, %v645, %v647
        %v669 = vsel %vm383, %v627, %v624
        %v670 = vsel %vm383, %v632, %v629
        %v671 = vsel %vm383, %v637, %v634
        %v672 = vsel %vm383, %v642, %v639
        %v673 = vsel %vm383, %v647, %v644
        %v675 = vlaneseq
        %v676 = vshrl.u32 %v675, 7
        %v677 = vsub.s32 0, %v676
        %v678 = vrot.slane %v270, %v677
        %v680 = vmul.f32 %v626, %v678
        %v681 = vmul.f32 %v628, %v678
        %v682 = vmul.f32 %v669, %v678
        %v683 = vmul.f32 %v631, %v678
        %v684 = vmul.f32 %v633, %v678
        %v685 = vmul.f32 %v670, %v678
        %v686 = vmul.f32 %v636, %v678
        %v687 = vmul.f32 %v638, %v678
        %v688 = vmul.f32 %v671, %v678
        %v689 = vmul.f32 %v641, %v678
        %v690 = vmul.f32 %v643, %v678
        %v691 = vmul.f32 %v672, %v678
        %v692 = vmul.f32 %v646, %v678
        %v693 = vmul.f32 %v648, %v678
        %v694 = vmul.f32 %v673, %v678
        %v695 = vadd.f32 %v594, %v680
        %v696 = vadd.f32 %v595, %v681
        %v697 = vadd.f32 %v596, %v682
        %v698 = vadd.f32 %v597, %v683
        %v699 = vadd.f32 %v598, %v684
        %v700 = vadd.f32 %v599, %v685
        %v701 = vadd.f32 %v600, %v686
        %v702 = vadd.f32 %v601, %v687
        %v703 = vadd.f32 %v602, %v688
        %v704 = vadd.f32 %v603, %v689
        %v705 = vadd.f32 %v604, %v690
        %v706 = vadd.f32 %v605, %v691
        %v707 = vadd.f32 %v606, %v692
        %v708 = vadd.f32 %v607, %v693
        %v709 = vadd.f32 %v608, %v694
        %v710 = vrot.slane %v558, 2
        %v711 = vrot.slane %v559, 2
        %v712 = vsel %vm470, %v710, %v711
        %v713 = vrot.slane %v560, 2
        %v714 = vsel %vm470, %v711, %v713
        %v715 = vrot.slane %v561, 2
        %v716 = vrot.slane %v562, 2
        %v717 = vsel %vm470, %v715, %v716
        %v718 = vrot.slane %v563, 2
        %v719 = vsel %vm470, %v716, %v718
        %v720 = vrot.slane %v564, 2
        %v721 = vrot.slane %v565, 2
        %v722 = vsel %vm470, %v720, %v721
        %v723 = vrot.slane %v566, 2
        %v724 = vsel %vm470, %v721, %v723
        %v725 = vrot.slane %v567, 2
        %v726 = vrot.slane %v568, 2
        %v727 = vsel %vm470, %v725, %v726
        %v728 = vrot.slane %v569, 2
        %v729 = vsel %vm470, %v726, %v728
        %v730 = vrot.slane %v570, 2
        %v731 = vrot.slane %v571, 2
        %v732 = vsel %vm470, %v730, %v731
        %v733 = vrot.slane %v572, 2
        %v734 = vsel %vm470, %v731, %v733
        %v755 = vsel %vm470, %v713, %v710
        %v756 = vsel %vm470, %v718, %v715
        %v757 = vsel %vm470, %v723, %v720
        %v758 = vsel %vm470, %v728, %v725
        %v759 = vsel %vm470, %v733, %v730
        %v761 = vlaneseq
        %v762 = vshrl.u32 %v761, 7
        %v763 = vsub.s32 0, %v762
        %v764 = vrot.slane %v272, %v763
        %v766 = vmul.f32 %v712, %v764
        %v767 = vmul.f32 %v714, %v764
        %v768 = vmul.f32 %v755, %v764
        %v769 = vmul.f32 %v717, %v764
        %v770 = vmul.f32 %v719, %v764
        %v771 = vmul.f32 %v756, %v764
        %v772 = vmul.f32 %v722, %v764
        %v773 = vmul.f32 %v724, %v764
        %v774 = vmul.f32 %v757, %v764
        %v775 = vmul.f32 %v727, %v764
        %v776 = vmul.f32 %v729, %v764
        %v777 = vmul.f32 %v758, %v764
        %v778 = vmul.f32 %v732, %v764
        %v779 = vmul.f32 %v734, %v764
        %v780 = vmul.f32 %v759, %v764
        %v781 = vadd.f32 %v695, %v766
        %v782 = vadd.f32 %v696, %v767
        %v783 = vadd.f32 %v697, %v768
        %v784 = vadd.f32 %v698, %v769
        %v785 = vadd.f32 %v699, %v770
        %v786 = vadd.f32 %v700, %v771
        %v787 = vadd.f32 %v701, %v772
        %v788 = vadd.f32 %v702, %v773
        %v789 = vadd.f32 %v703, %v774
        %v790 = vadd.f32 %v704, %v775
        %v791 = vadd.f32 %v705, %v776
        %v792 = vadd.f32 %v706, %v777
        %v793 = vadd.f32 %v707, %v778
        %v794 = vadd.f32 %v708, %v779
        %v795 = vadd.f32 %v709, %v780
        %s796 = scalar_lea.vmem [#allocation2], 48
        %v797 = vld [vmem:[%s796] sm:$0xff]
        %v798 = vld [vmem:[%s796 + $0x8] sm:$0xff]
        %v799 = vld [vmem:[%s796 + $0x10] sm:$0xff]
        %v800 = vld [vmem:[%s796 + $0x18] sm:$0xff]
        %v801 = vld [vmem:[%s796 + $0x20] sm:$0xff]
        %v802 = vld [vmem:[%s796 + $0x28] sm:$0xff]
        %v803 = vld [vmem:[%s796 + $0x30] sm:$0xff]
        %v804 = vld [vmem:[%s796 + $0x38] sm:$0xff]
        %v805 = vld [vmem:[%s796 + $0x40] sm:$0xff]
        %v806 = vld [vmem:[%s796 + $0x48] sm:$0xff]
        %v807 = vld [vmem:[%s796 + $0x50] sm:$0xff]
        %v808 = vld [vmem:[%s796 + $0x58] sm:$0xff]
        %v809 = vld [vmem:[%s796 + $0x60] sm:$0xff]
        %v810 = vld [vmem:[%s796 + $0x68] sm:$0xff]
        %v811 = vld [vmem:[%s796 + $0x70] sm:$0xff]
        %v813 = vlaneseq
        %v814 = vshrl.u32 %v813, 7
        %v815 = vsub.s32 0, %v814
        %v816 = vrot.slane %v274, %v815
        %v818 = vmul.f32 %v797, %v816
        %v819 = vmul.f32 %v798, %v816
        %v820 = vmul.f32 %v799, %v816
        %v821 = vmul.f32 %v800, %v816
        %v822 = vmul.f32 %v801, %v816
        %v823 = vmul.f32 %v802, %v816
        %v824 = vmul.f32 %v803, %v816
        %v825 = vmul.f32 %v804, %v816
        %v826 = vmul.f32 %v805, %v816
        %v827 = vmul.f32 %v806, %v816
        %v828 = vmul.f32 %v807, %v816
        %v829 = vmul.f32 %v808, %v816
        %v830 = vmul.f32 %v809, %v816
        %v831 = vmul.f32 %v810, %v816
        %v832 = vmul.f32 %v811, %v816
        %v833 = vadd.f32 %v781, %v818
        %v834 = vadd.f32 %v782, %v819
        %v835 = vadd.f32 %v783, %v820
        %v836 = vadd.f32 %v784, %v821
        %v837 = vadd.f32 %v785, %v822
        %v838 = vadd.f32 %v786, %v823
        %v839 = vadd.f32 %v787, %v824
        %v840 = vadd.f32 %v788, %v825
        %v841 = vadd.f32 %v789, %v826
        %v842 = vadd.f32 %v790, %v827
        %v843 = vadd.f32 %v791, %v828
        %v844 = vadd.f32 %v792, %v829
        %v845 = vadd.f32 %v793, %v830
        %v846 = vadd.f32 %v794, %v831
        %v847 = vadd.f32 %v795, %v832
        %v863 = vrot.slane %v797, 1
        %v864 = vrot.slane %v798, 1
        %v865 = vsel %vm383, %v863, %v864
        %v866 = vrot.slane %v799, 1
        %v867 = vsel %vm383, %v864, %v866
        %v868 = vrot.slane %v800, 1
        %v869 = vrot.slane %v801, 1
        %v870 = vsel %vm383, %v868, %v869
        %v871 = vrot.slane %v802, 1
        %v872 = vsel %vm383, %v869, %v871
        %v873 = vrot.slane %v803, 1
        %v874 = vrot.slane %v804, 1
        %v875 = vsel %vm383, %v873, %v874
        %v876 = vrot.slane %v805, 1
        %v877 = vsel %vm383, %v874, %v876
        %v878 = vrot.slane %v806, 1
        %v879 = vrot.slane %v807, 1
        %v880 = vsel %vm383, %v878, %v879
        %v881 = vrot.slane %v808, 1
        %v882 = vsel %vm383, %v879, %v881
        %v883 = vrot.slane %v809, 1
        %v884 = vrot.slane %v810, 1
        %v885 = vsel %vm383, %v883, %v884
        %v886 = vrot.slane %v811, 1
        %v887 = vsel %vm383, %v884, %v886
        %v908 = vsel %vm383, %v866, %v863
        %v909 = vsel %vm383, %v871, %v868
        %v910 = vsel %vm383, %v876, %v873
        %v911 = vsel %vm383, %v881, %v878
        %v912 = vsel %vm383, %v886, %v883
        %v914 = vlaneseq
        %v915 = vshrl.u32 %v914, 7
        %v916 = vsub.s32 0, %v915
        %v917 = vrot.slane %v276, %v916
        %v919 = vmul.f32 %v865, %v917
        %v920 = vmul.f32 %v867, %v917
        %v921 = vmul.f32 %v908, %v917
        %v922 = vmul.f32 %v870, %v917
        %v923 = vmul.f32 %v872, %v917
        %v924 = vmul.f32 %v909, %v917
        %v925 = vmul.f32 %v875, %v917
        %v926 = vmul.f32 %v877, %v917
        %v927 = vmul.f32 %v910, %v917
        %v928 = vmul.f32 %v880, %v917
        %v929 = vmul.f32 %v882, %v917
        %v930 = vmul.f32 %v911, %v917
        %v931 = vmul.f32 %v885, %v917
        %v932 = vmul.f32 %v887, %v917
        %v933 = vmul.f32 %v912, %v917
        %v934 = vadd.f32 %v833, %v919
        %v935 = vadd.f32 %v834, %v920
        %v936 = vadd.f32 %v835, %v921
        %v937 = vadd.f32 %v836, %v922
        %v938 = vadd.f32 %v837, %v923
        %v939 = vadd.f32 %v838, %v924
        %v940 = vadd.f32 %v839, %v925
        %v941 = vadd.f32 %v840, %v926
        %v942 = vadd.f32 %v841, %v927
        %v943 = vadd.f32 %v842, %v928
        %v944 = vadd.f32 %v843, %v929
        %v945 = vadd.f32 %v844, %v930
        %v946 = vadd.f32 %v845, %v931
        %v947 = vadd.f32 %v846, %v932
        %v948 = vadd.f32 %v847, %v933
        %v949 = vrot.slane %v797, 2
        %v950 = vrot.slane %v798, 2
        %v951 = vsel %vm470, %v949, %v950
        %v952 = vrot.slane %v799, 2
        %v953 = vsel %vm470, %v950, %v952
        %v954 = vrot.slane %v800, 2
        %v955 = vrot.slane %v801, 2
        %v956 = vsel %vm470, %v954, %v955
        %v957 = vrot.slane %v802, 2
        %v958 = vsel %vm470, %v955, %v957
        %v959 = vrot.slane %v803, 2
        %v960 = vrot.slane %v804, 2
        %v961 = vsel %vm470, %v959, %v960
        %v962 = vrot.slane %v805, 2
        %v963 = vsel %vm470, %v960, %v962
        %v964 = vrot.slane %v806, 2
        %v965 = vrot.slane %v807, 2
        %v966 = vsel %vm470, %v964, %v965
        %v967 = vrot.slane %v808, 2
        %v968 = vsel %vm470, %v965, %v967
        %v969 = vrot.slane %v809, 2
        %v970 = vrot.slane %v810, 2
        %v971 = vsel %vm470, %v969, %v970
        %v972 = vrot.slane %v811, 2
        %v973 = vsel %vm470, %v970, %v972
        %v994 = vsel %vm470, %v952, %v949
        %v995 = vsel %vm470, %v957, %v954
        %v996 = vsel %vm470, %v962, %v959
        %v997 = vsel %vm470, %v967, %v964
        %v998 = vsel %vm470, %v972, %v969
        %v1000 = vlaneseq
        %v1001 = vshrl.u32 %v1000, 7
        %v1002 = vsub.s32 0, %v1001
        %v1003 = vrot.slane %v278, %v1002
        %v1005 = vmul.f32 %v951, %v1003
        %v1006 = vmul.f32 %v953, %v1003
        %v1007 = vmul.f32 %v994, %v1003
        %v1008 = vmul.f32 %v956, %v1003
        %v1009 = vmul.f32 %v958, %v1003
        %v1010 = vmul.f32 %v995, %v1003
        %v1011 = vmul.f32 %v961, %v1003
        %v1012 = vmul.f32 %v963, %v1003
        %v1013 = vmul.f32 %v996, %v1003
        %v1014 = vmul.f32 %v966, %v1003
        %v1015 = vmul.f32 %v968, %v1003
        %v1016 = vmul.f32 %v997, %v1003
        %v1017 = vmul.f32 %v971, %v1003
        %v1018 = vmul.f32 %v973, %v1003
        %v1019 = vmul.f32 %v998, %v1003
        %v1020 = vadd.f32 %v934, %v1005
        %v1021 = vadd.f32 %v935, %v1006
        %v1022 = vadd.f32 %v936, %v1007
        %v1023 = vadd.f32 %v937, %v1008
        %v1024 = vadd.f32 %v938, %v1009
        %v1025 = vadd.f32 %v939, %v1010
        %v1026 = vadd.f32 %v940, %v1011
        %v1027 = vadd.f32 %v941, %v1012
        %v1028 = vadd.f32 %v942, %v1013
        %v1029 = vadd.f32 %v943, %v1014
        %v1030 = vadd.f32 %v944, %v1015
        %v1031 = vadd.f32 %v945, %v1016
        %v1032 = vadd.f32 %v946, %v1017
        %v1033 = vadd.f32 %v947, %v1018
        %v1034 = vadd.f32 %v948, %v1019
        %v1036 = vlaneseq
        %v1037 = vshrl.u32 %v1036, 7
        %v1038 = vsub.s32 0, %v1037
        %v1039 = vrot.slane %v279, %v1038
        %v1041 = vadd.f32 %v1020, %v1039
        %v1042 = vadd.f32 %v1021, %v1039
        %v1043 = vadd.f32 %v1022, %v1039
        %v1044 = vadd.f32 %v1023, %v1039
        %v1045 = vadd.f32 %v1024, %v1039
        %v1046 = vadd.f32 %v1025, %v1039
        %v1047 = vadd.f32 %v1026, %v1039
        %v1048 = vadd.f32 %v1027, %v1039
        %v1049 = vadd.f32 %v1028, %v1039
        %v1050 = vadd.f32 %v1029, %v1039
        %v1051 = vadd.f32 %v1030, %v1039
        %v1052 = vadd.f32 %v1031, %v1039
        %v1053 = vadd.f32 %v1032, %v1039
        %v1054 = vadd.f32 %v1033, %v1039
        %v1055 = vadd.f32 %v1034, %v1039
        %v1056 = vmax.f32 %v1041, 0.0
        %v1057 = vmax.f32 %v1042, 0.0
        %v1058 = vmax.f32 %v1043, 0.0
        %v1059 = vmax.f32 %v1044, 0.0
        %v1060 = vmax.f32 %v1045, 0.0
        %v1061 = vmax.f32 %v1046, 0.0
        %v1062 = vmax.f32 %v1047, 0.0
        %v1063 = vmax.f32 %v1048, 0.0
        %v1064 = vmax.f32 %v1049, 0.0
        %v1065 = vmax.f32 %v1050, 0.0
        %v1066 = vmax.f32 %v1051, 0.0
        %v1067 = vmax.f32 %v1052, 0.0
        %v1068 = vmax.f32 %v1053, 0.0
        %v1069 = vmax.f32 %v1054, 0.0
        %v1070 = vmax.f32 %v1055, 0.0
        %v1072 = vlaneseq
        %v1073 = vshrl.u32 %v1072, 7
        %v1074 = vsub.s32 0, %v1073
        %v1075 = vrot.slane %v296, %v1074
        %1077 = vmatprep.subr.mxu0 0.0
        %1078 = vmatpush1.msra.mxu0 %v295
        %1079 = vmatprep.subr.mxu0 0.0
        %1080 = vmatpush1.msra.mxu0 %v294
        %1081 = vmatprep.subr.mxu0 0.0
        %1082 = vmatpush1.msra.mxu0 %v293
        %1083 = vmatprep.subr.mxu0 0.0
        %1084 = vmatpush1.msra.mxu0 %v292
        %1085 = vmatprep.subr.mxu0 0.0
        %1086 = vmatpush1.msra.mxu0 %v291
        %1087 = vmatprep.subr.mxu0 0.0
        %1088 = vmatpush1.msra.mxu0 %v290
        %1089 = vmatprep.subr.mxu0 0.0
        %1090 = vmatpush1.msra.mxu0 %v289
        %1091 = vmatprep.subr.mxu0 0.0
        %1092 = vmatpush1.msra.mxu0 %v288
        %1093 = vmatprep.subr.mxu0 0.0
        %1094 = vmatpush1.msra.mxu0 %v287
        %1095 = vmatprep.subr.mxu0 0.0
        %1096 = vmatpush1.msra.mxu0 %v286
        %1097 = vmatprep.subr.mxu0 0.0
        %1098 = vmatpush1.msra.mxu0 %v285
        %1099 = vmatprep.subr.mxu0 0.0
        %1100 = vmatpush1.msra.mxu0 %v284
        %1101 = vmatprep.subr.mxu0 0.0
        %1102 = vmatpush1.msra.mxu0 %v283
        %1103 = vmatprep.subr.mxu0 0.0
        %1104 = vmatpush1.msra.mxu0 %v282
        %1105 = vmatprep.subr.mxu0 0.0
        %1106 = vmatpush1.msra.mxu0 %v281
        %1107 = vmatprep.subr.mxu0 0.0
        %1108 = vmatpush1.msra.mxu0 %v280
        %1109 = vmatprep.subr.mxu0 0.0
        %1110 = vmatpush2.msra.mxu0 0.0
        %1111 = vmatprep.subr.mxu0 0.0
        %1112 = vmatpush2.msra.mxu0 0.0
        %1113 = vmatprep.subr.mxu0 0.0
        %1114 = vmatpush2.msra.mxu0 0.0
        %1115 = vmatprep.subr.mxu0 0.0
        %1116 = vmatpush2.msra.mxu0 0.0
        %1117 = vmatprep.subr.mxu0 0.0
        %1118 = vmatpush2.msra.mxu0 0.0
        %1119 = vmatprep.subr.mxu0 0.0
        %1120 = vmatpush2.msra.mxu0 0.0
        %1121 = vmatprep.subr.mxu0 0.0
        %1122 = vmatpush2.msra.mxu0 0.0
        %1123 = vmatprep.subr.mxu0 0.0
        %1124 = vmatpush2.msra.mxu0 0.0
        %1125 = vmatprep.subr.mxu0 0.0
        %1126 = vmatpush2.msra.mxu0 0.0
        %1127 = vmatprep.subr.mxu0 0.0
        %1128 = vmatpush2.msra.mxu0 0.0
        %1129 = vmatprep.subr.mxu0 0.0
        %1130 = vmatpush2.msra.mxu0 0.0
        %1131 = vmatprep.subr.mxu0 0.0
        %1132 = vmatpush2.msra.mxu0 0.0
        %1133 = vmatprep.subr.mxu0 0.0
        %1134 = vmatpush2.msra.mxu0 0.0
        %1135 = vmatprep.subr.mxu0 0.0
        %1136 = vmatpush2.msra.mxu0 0.0
        %1137 = vmatprep.subr.mxu0 0.0
        %1138 = vmatpush2.msra.mxu0 0.0
        %1139 = vmatprep.subr.mxu0 0.0
        %1140 = vmatpush2.msra.mxu0 0.0
        %1141 = vmatprep.mubr.f32.mxu0 0.0
        %1142 = vmatmul.mubr.f32.gmra.mxu0 %v1056
        %v1143 = vpop.f32.mrf.mxu0
        %v1144 = vadd.f32 %v1075, %v1143
        %v1145 = vpop.f32.mrf.mxu0
        %1146 = vmatprep.mubr.f32.mxu0 0.0
        %1147 = vmatmul.mubr.f32.gmra.mxu0 %v1057
        %v1148 = vpop.f32.mrf.mxu0
        %v1149 = vadd.f32 %v1075, %v1148
        %v1150 = vpop.f32.mrf.mxu0
        %1151 = vmatprep.mubr.f32.mxu0 0.0
        %1152 = vmatmul.mubr.f32.gmra.mxu0 %v1058
        %v1153 = vpop.f32.mrf.mxu0
        %v1154 = vadd.f32 %v1075, %v1153
        %v1155 = vpop.f32.mrf.mxu0
        %1156 = vmatprep.mubr.f32.mxu0 0.0
        %1157 = vmatmul.mubr.f32.gmra.mxu0 %v1059
        %v1158 = vpop.f32.mrf.mxu0
        %v1159 = vadd.f32 %v1075, %v1158
        %v1160 = vpop.f32.mrf.mxu0
        %1161 = vmatprep.mubr.f32.mxu0 0.0
        %1162 = vmatmul.mubr.f32.gmra.mxu0 %v1060
        %v1163 = vpop.f32.mrf.mxu0
        %v1164 = vadd.f32 %v1075, %v1163
        %v1165 = vpop.f32.mrf.mxu0
        %1166 = vmatprep.mubr.f32.mxu0 0.0
        %1167 = vmatmul.mubr.f32.gmra.mxu0 %v1061
        %v1168 = vpop.f32.mrf.mxu0
        %v1169 = vadd.f32 %v1075, %v1168
        %v1170 = vpop.f32.mrf.mxu0
        %1171 = vmatprep.mubr.f32.mxu0 0.0
        %1172 = vmatmul.mubr.f32.gmra.mxu0 %v1062
        %v1173 = vpop.f32.mrf.mxu0
        %v1174 = vadd.f32 %v1075, %v1173
        %v1175 = vpop.f32.mrf.mxu0
        %1176 = vmatprep.mubr.f32.mxu0 0.0
        %1177 = vmatmul.mubr.f32.gmra.mxu0 %v1063
        %v1178 = vpop.f32.mrf.mxu0
        %v1179 = vadd.f32 %v1075, %v1178
        %v1180 = vpop.f32.mrf.mxu0
        %1181 = vmatprep.mubr.f32.mxu0 0.0
        %1182 = vmatmul.mubr.f32.gmra.mxu0 %v1064
        %v1183 = vpop.f32.mrf.mxu0
        %v1184 = vadd.f32 %v1075, %v1183
        %v1185 = vpop.f32.mrf.mxu0
        %1186 = vmatprep.mubr.f32.mxu0 0.0
        %1187 = vmatmul.mubr.f32.gmra.mxu0 %v1065
        %v1188 = vpop.f32.mrf.mxu0
        %v1189 = vadd.f32 %v1075, %v1188
        %v1190 = vpop.f32.mrf.mxu0
        %1191 = vmatprep.mubr.f32.mxu0 0.0
        %1192 = vmatmul.mubr.f32.gmra.mxu0 %v1066
        %v1193 = vpop.f32.mrf.mxu0
        %v1194 = vadd.f32 %v1075, %v1193
        %v1195 = vpop.f32.mrf.mxu0
        %1196 = vmatprep.mubr.f32.mxu0 0.0
        %1197 = vmatmul.mubr.f32.gmra.mxu0 %v1067
        %v1198 = vpop.f32.mrf.mxu0
        %v1199 = vadd.f32 %v1075, %v1198
        %v1200 = vpop.f32.mrf.mxu0
        %1201 = vmatprep.mubr.f32.mxu0 0.0
        %1202 = vmatmul.mubr.f32.gmra.mxu0 %v1068
        %v1203 = vpop.f32.mrf.mxu0
        %v1204 = vadd.f32 %v1075, %v1203
        %v1205 = vpop.f32.mrf.mxu0
        %1206 = vmatprep.mubr.f32.mxu0 0.0
        %1207 = vmatmul.mubr.f32.gmra.mxu0 %v1069
        %v1208 = vpop.f32.mrf.mxu0
        %v1209 = vadd.f32 %v1075, %v1208
        %v1210 = vpop.f32.mrf.mxu0
        %1211 = vmatprep.mubr.f32.mxu0 0.0
        %1212 = vmatmul.mubr.f32.gmra.mxu0 %v1070
        %v1213 = vpop.f32.mrf.mxu0
        %v1214 = vadd.f32 %v1075, %v1213
        %v1215 = vpop.f32.mrf.mxu0
        %1216 = vdwg.mxu0
        %v1217 = vmax.f32 %v1144, 0.0
        %v1218 = vmax.f32 %v1149, 0.0
        %v1219 = vmax.f32 %v1154, 0.0
        %v1220 = vmax.f32 %v1159, 0.0
        %v1221 = vmax.f32 %v1164, 0.0
        %v1222 = vmax.f32 %v1169, 0.0
        %v1223 = vmax.f32 %v1174, 0.0
        %v1224 = vmax.f32 %v1179, 0.0
        %v1225 = vmax.f32 %v1184, 0.0
        %v1226 = vmax.f32 %v1189, 0.0
        %v1227 = vmax.f32 %v1194, 0.0
        %v1228 = vmax.f32 %v1199, 0.0
        %v1229 = vmax.f32 %v1204, 0.0
        %v1230 = vmax.f32 %v1209, 0.0
        %v1231 = vmax.f32 %v1214, 0.0
        %1232 = vst [vmem:[%s220] sm:$0xff] %v1217
        %1233 = vst [vmem:[%s220 + $0x8] sm:$0xff] %v1218
        %1234 = vst [vmem:[%s220 + $0x10] sm:$0xff] %v1219
        %1235 = vst [vmem:[%s220 + $0x18] sm:$0xff] %v1220
        %1236 = vst [vmem:[%s220 + $0x20] sm:$0xff] %v1221
        %1237 = vst [vmem:[%s220 + $0x28] sm:$0xff] %v1222
        %1238 = vst [vmem:[%s220 + $0x30] sm:$0xff] %v1223
        %1239 = vst [vmem:[%s220 + $0x38] sm:$0xff] %v1224
        %1240 = vst [vmem:[%s220 + $0x40] sm:$0xff] %v1225
        %1241 = vst [vmem:[%s220 + $0x48] sm:$0xff] %v1226
        %1242 = vst [vmem:[%s220 + $0x50] sm:$0xff] %v1227
        %1243 = vst [vmem:[%s220 + $0x58] sm:$0xff] %v1228
        %1244 = vst [vmem:[%s220 + $0x60] sm:$0xff] %v1229
        %1245 = vst [vmem:[%s220 + $0x68] sm:$0xff] %v1230
        %1246 = vst [vmem:[%s220 + $0x70] sm:$0xff] %v1231
        %s1247 = sadd.s32 %s222, 15
        %s1248 = smul.u32 %s1247, 24
        %s1249 = sadd.s32 %s1248, %s224
        %s1250 = smul.addr %s1249, 16
        %s1251 = scalar_lea.hbm %s0, %s1250
        %s1252 = scalar_lea.vmem [#allocation2], 360
        %s1253 = scalar_lea.sflag [#allocation3], 3
        // Predicated region
        $region57: #{tpu_custom_call.1} parent=35 // pred_check
          _
        $region58: #{tpu_custom_call.1} parent=35 // pred_check_branch
          %1255 = sbr.rel target = $region60
        $region59: #{tpu_custom_call.1} parent=35 // pred_region
          %1256 = sst [smem:[#allocation12]] [#allocation19]
          %1257 = sst [smem:[#allocation13]] [#allocation18]
        $region60: #{tpu_custom_call.1} parent=35 // pred_fallthru
          _
        %1259 = shalt.err (0)
        %s1261 = sshll.u32 %s1252, 4
        %s1262 = int_to_ptr.vmem [resolvable:$true] %s1261
        %1264 = dma.hbm_to_vmem [thread:$0]  %s1251, 1920, %s1262, %s1253
        %s1265 = sshll.u32 %s259, 4
        %1266 = dma.done %s303, %s1265
        %v1267 = vld [vmem:[%s244] sm:$0xff]
        %v1268 = vld [vmem:[%s244 + $0x8] sm:$0xff]
        %v1269 = vld [vmem:[%s244 + $0x10] sm:$0xff]
        %v1270 = vld [vmem:[%s244 + $0x18] sm:$0xff]
        %v1271 = vld [vmem:[%s244 + $0x20] sm:$0xff]
        %v1272 = vld [vmem:[%s244 + $0x28] sm:$0xff]
        %v1273 = vld [vmem:[%s244 + $0x30] sm:$0xff]
        %v1274 = vld [vmem:[%s244 + $0x38] sm:$0xff]
        %v1275 = vld [vmem:[%s244 + $0x40] sm:$0xff]
        %v1276 = vld [vmem:[%s244 + $0x48] sm:$0xff]
        %v1277 = vld [vmem:[%s244 + $0x50] sm:$0xff]
        %v1278 = vld [vmem:[%s244 + $0x58] sm:$0xff]
        %v1279 = vld [vmem:[%s244 + $0x60] sm:$0xff]
        %v1280 = vld [vmem:[%s244 + $0x68] sm:$0xff]
        %v1281 = vld [vmem:[%s244 + $0x70] sm:$0xff]
        %v1282 = vmul.f32 %v1267, %v336
        %v1283 = vmul.f32 %v1268, %v336
        %v1284 = vmul.f32 %v1269, %v336
        %v1285 = vmul.f32 %v1270, %v336
        %v1286 = vmul.f32 %v1271, %v336
        %v1287 = vmul.f32 %v1272, %v336
        %v1288 = vmul.f32 %v1273, %v336
        %v1289 = vmul.f32 %v1274, %v336
        %v1290 = vmul.f32 %v1275, %v336
        %v1291 = vmul.f32 %v1276, %v336
        %v1292 = vmul.f32 %v1277, %v336
        %v1293 = vmul.f32 %v1278, %v336
        %v1294 = vmul.f32 %v1279, %v336
        %v1295 = vmul.f32 %v1280, %v336
        %v1296 = vmul.f32 %v1281, %v336
        %v1297 = vadd.f32 %v1282, 0.0
        %v1298 = vadd.f32 %v1283, 0.0
        %v1299 = vadd.f32 %v1284, 0.0
        %v1300 = vadd.f32 %v1285, 0.0
        %v1301 = vadd.f32 %v1286, 0.0
        %v1302 = vadd.f32 %v1287, 0.0
        %v1303 = vadd.f32 %v1288, 0.0
        %v1304 = vadd.f32 %v1289, 0.0
        %v1305 = vadd.f32 %v1290, 0.0
        %v1306 = vadd.f32 %v1291, 0.0
        %v1307 = vadd.f32 %v1292, 0.0
        %v1308 = vadd.f32 %v1293, 0.0
        %v1309 = vadd.f32 %v1294, 0.0
        %v1310 = vadd.f32 %v1295, 0.0
        %v1311 = vadd.f32 %v1296, 0.0
        %v1327 = vrot.slane %v1267, 1
        %v1328 = vrot.slane %v1268, 1
        %v1329 = vsel %vm383, %v1327, %v1328
        %v1330 = vrot.slane %v1269, 1
        %v1331 = vsel %vm383, %v1328, %v1330
        %v1332 = vrot.slane %v1270, 1
        %v1333 = vrot.slane %v1271, 1
        %v1334 = vsel %vm383, %v1332, %v1333
        %v1335 = vrot.slane %v1272, 1
        %v1336 = vsel %vm383, %v1333, %v1335
        %v1337 = vrot.slane %v1273, 1
        %v1338 = vrot.slane %v1274, 1
        %v1339 = vsel %vm383, %v1337, %v1338
        %v1340 = vrot.slane %v1275, 1
        %v1341 = vsel %vm383, %v1338, %v1340
        %v1342 = vrot.slane %v1276, 1
        %v1343 = vrot.slane %v1277, 1
        %v1344 = vsel %vm383, %v1342, %v1343
        %v1345 = vrot.slane %v1278, 1
        %v1346 = vsel %vm383, %v1343, %v1345
        %v1347 = vrot.slane %v1279, 1
        %v1348 = vrot.slane %v1280, 1
        %v1349 = vsel %vm383, %v1347, %v1348
        %v1350 = vrot.slane %v1281, 1
        %v1351 = vsel %vm383, %v1348, %v1350
        %v1372 = vsel %vm383, %v1330, %v1327
        %v1373 = vsel %vm383, %v1335, %v1332
        %v1374 = vsel %vm383, %v1340, %v1337
        %v1375 = vsel %vm383, %v1345, %v1342
        %v1376 = vsel %vm383, %v1350, %v1347
        %v1377 = vmul.f32 %v1329, %v438
        %v1378 = vmul.f32 %v1331, %v438
        %v1379 = vmul.f32 %v1372, %v438
        %v1380 = vmul.f32 %v1334, %v438
        %v1381 = vmul.f32 %v1336, %v438
        %v1382 = vmul.f32 %v1373, %v438
        %v1383 = vmul.f32 %v1339, %v438
        %v1384 = vmul.f32 %v1341, %v438
        %v1385 = vmul.f32 %v1374, %v438
        %v1386 = vmul.f32 %v1344, %v438
        %v1387 = vmul.f32 %v1346, %v438
        %v1388 = vmul.f32 %v1375, %v438
        %v1389 = vmul.f32 %v1349, %v438
        %v1390 = vmul.f32 %v1351, %v438
        %v1391 = vmul.f32 %v1376, %v438
        %v1392 = vadd.f32 %v1297, %v1377
        %v1393 = vadd.f32 %v1298, %v1378
        %v1394 = vadd.f32 %v1299, %v1379
        %v1395 = vadd.f32 %v1300, %v1380
        %v1396 = vadd.f32 %v1301, %v1381
        %v1397 = vadd.f32 %v1302, %v1382
        %v1398 = vadd.f32 %v1303, %v1383
        %v1399 = vadd.f32 %v1304, %v1384
        %v1400 = vadd.f32 %v1305, %v1385
        %v1401 = vadd.f32 %v1306, %v1386
        %v1402 = vadd.f32 %v1307, %v1387
        %v1403 = vadd.f32 %v1308, %v1388
        %v1404 = vadd.f32 %v1309, %v1389
        %v1405 = vadd.f32 %v1310, %v1390
        %v1406 = vadd.f32 %v1311, %v1391
        %v1407 = vrot.slane %v1267, 2
        %v1408 = vrot.slane %v1268, 2
        %v1409 = vsel %vm470, %v1407, %v1408
        %v1410 = vrot.slane %v1269, 2
        %v1411 = vsel %vm470, %v1408, %v1410
        %v1412 = vrot.slane %v1270, 2
        %v1413 = vrot.slane %v1271, 2
        %v1414 = vsel %vm470, %v1412, %v1413
        %v1415 = vrot.slane %v1272, 2
        %v1416 = vsel %vm470, %v1413, %v1415
        %v1417 = vrot.slane %v1273, 2
        %v1418 = vrot.slane %v1274, 2
        %v1419 = vsel %vm470, %v1417, %v1418
        %v1420 = vrot.slane %v1275, 2
        %v1421 = vsel %vm470, %v1418, %v1420
        %v1422 = vrot.slane %v1276, 2
        %v1423 = vrot.slane %v1277, 2
        %v1424 = vsel %vm470, %v1422, %v1423
        %v1425 = vrot.slane %v1278, 2
        %v1426 = vsel %vm470, %v1423, %v1425
        %v1427 = vrot.slane %v1279, 2
        %v1428 = vrot.slane %v1280, 2
        %v1429 = vsel %vm470, %v1427, %v1428
        %v1430 = vrot.slane %v1281, 2
        %v1431 = vsel %vm470, %v1428, %v1430
        %v1452 = vsel %vm470, %v1410, %v1407
        %v1453 = vsel %vm470, %v1415, %v1412
        %v1454 = vsel %vm470, %v1420, %v1417
        %v1455 = vsel %vm470, %v1425, %v1422
        %v1456 = vsel %vm470, %v1430, %v1427
        %v1457 = vmul.f32 %v1409, %v525
        %v1458 = vmul.f32 %v1411, %v525
        %v1459 = vmul.f32 %v1452, %v525
        %v1460 = vmul.f32 %v1414, %v525
        %v1461 = vmul.f32 %v1416, %v525
        %v1462 = vmul.f32 %v1453, %v525
        %v1463 = vmul.f32 %v1419, %v525
        %v1464 = vmul.f32 %v1421, %v525
        %v1465 = vmul.f32 %v1454, %v525
        %v1466 = vmul.f32 %v1424, %v525
        %v1467 = vmul.f32 %v1426, %v525
        %v1468 = vmul.f32 %v1455, %v525
        %v1469 = vmul.f32 %v1429, %v525
        %v1470 = vmul.f32 %v1431, %v525
        %v1471 = vmul.f32 %v1456, %v525
        %v1472 = vadd.f32 %v1392, %v1457
        %v1473 = vadd.f32 %v1393, %v1458
        %v1474 = vadd.f32 %v1394, %v1459
        %v1475 = vadd.f32 %v1395, %v1460
        %v1476 = vadd.f32 %v1396, %v1461
        %v1477 = vadd.f32 %v1397, %v1462
        %v1478 = vadd.f32 %v1398, %v1463
        %v1479 = vadd.f32 %v1399, %v1464
        %v1480 = vadd.f32 %v1400, %v1465
        %v1481 = vadd.f32 %v1401, %v1466
        %v1482 = vadd.f32 %v1402, %v1467
        %v1483 = vadd.f32 %v1403, %v1468
        %v1484 = vadd.f32 %v1404, %v1469
        %v1485 = vadd.f32 %v1405, %v1470
        %v1486 = vadd.f32 %v1406, %v1471
        %s1487 = scalar_lea.vmem [#allocation2], 144
        %v1488 = vld [vmem:[%s1487] sm:$0xff]
        %v1489 = vld [vmem:[%s1487 + $0x8] sm:$0xff]
        %v1490 = vld [vmem:[%s1487 + $0x10] sm:$0xff]
        %v1491 = vld [vmem:[%s1487 + $0x18] sm:$0xff]
        %v1492 = vld [vmem:[%s1487 + $0x20] sm:$0xff]
        %v1493 = vld [vmem:[%s1487 + $0x28] sm:$0xff]
        %v1494 = vld [vmem:[%s1487 + $0x30] sm:$0xff]
        %v1495 = vld [vmem:[%s1487 + $0x38] sm:$0xff]
        %v1496 = vld [vmem:[%s1487 + $0x40] sm:$0xff]
        %v1497 = vld [vmem:[%s1487 + $0x48] sm:$0xff]
        %v1498 = vld [vmem:[%s1487 + $0x50] sm:$0xff]
        %v1499 = vld [vmem:[%s1487 + $0x58] sm:$0xff]
        %v1500 = vld [vmem:[%s1487 + $0x60] sm:$0xff]
        %v1501 = vld [vmem:[%s1487 + $0x68] sm:$0xff]
        %v1502 = vld [vmem:[%s1487 + $0x70] sm:$0xff]
        %v1503 = vmul.f32 %v1488, %v577
        %v1504 = vmul.f32 %v1489, %v577
        %v1505 = vmul.f32 %v1490, %v577
        %v1506 = vmul.f32 %v1491, %v577
        %v1507 = vmul.f32 %v1492, %v577
        %v1508 = vmul.f32 %v1493, %v577
        %v1509 = vmul.f32 %v1494, %v577
        %v1510 = vmul.f32 %v1495, %v577
        %v1511 = vmul.f32 %v1496, %v577
        %v1512 = vmul.f32 %v1497, %v577
        %v1513 = vmul.f32 %v1498, %v577
        %v1514 = vmul.f32 %v1499, %v577
        %v1515 = vmul.f32 %v1500, %v577
        %v1516 = vmul.f32 %v1501, %v577
        %v1517 = vmul.f32 %v1502, %v577
        %v1518 = vadd.f32 %v1472, %v1503
        %v1519 = vadd.f32 %v1473, %v1504
        %v1520 = vadd.f32 %v1474, %v1505
        %v1521 = vadd.f32 %v1475, %v1506
        %v1522 = vadd.f32 %v1476, %v1507
        %v1523 = vadd.f32 %v1477, %v1508
        %v1524 = vadd.f32 %v1478, %v1509
        %v1525 = vadd.f32 %v1479, %v1510
        %v1526 = vadd.f32 %v1480, %v1511
        %v1527 = vadd.f32 %v1481, %v1512
        %v1528 = vadd.f32 %v1482, %v1513
        %v1529 = vadd.f32 %v1483, %v1514
        %v1530 = vadd.f32 %v1484, %v1515
        %v1531 = vadd.f32 %v1485, %v1516
        %v1532 = vadd.f32 %v1486, %v1517
        %v1548 = vrot.slane %v1488, 1
        %v1549 = vrot.slane %v1489, 1
        %v1550 = vsel %vm383, %v1548, %v1549
        %v1551 = vrot.slane %v1490, 1
        %v1552 = vsel %vm383, %v1549, %v1551
        %v1553 = vrot.slane %v1491, 1
        %v1554 = vrot.slane %v1492, 1
        %v1555 = vsel %vm383, %v1553, %v1554
        %v1556 = vrot.slane %v1493, 1
        %v1557 = vsel %vm383, %v1554, %v1556
        %v1558 = vrot.slane %v1494, 1
        %v1559 = vrot.slane %v1495, 1
        %v1560 = vsel %vm383, %v1558, %v1559
        %v1561 = vrot.slane %v1496, 1
        %v1562 = vsel %vm383, %v1559, %v1561
        %v1563 = vrot.slane %v1497, 1
        %v1564 = vrot.slane %v1498, 1
        %v1565 = vsel %vm383, %v1563, %v1564
        %v1566 = vrot.slane %v1499, 1
        %v1567 = vsel %vm383, %v1564, %v1566
        %v1568 = vrot.slane %v1500, 1
        %v1569 = vrot.slane %v1501, 1
        %v1570 = vsel %vm383, %v1568, %v1569
        %v1571 = vrot.slane %v1502, 1
        %v1572 = vsel %vm383, %v1569, %v1571
        %v1593 = vsel %vm383, %v1551, %v1548
        %v1594 = vsel %vm383, %v1556, %v1553
        %v1595 = vsel %vm383, %v1561, %v1558
        %v1596 = vsel %vm383, %v1566, %v1563
        %v1597 = vsel %vm383, %v1571, %v1568
        %v1598 = vmul.f32 %v1550, %v678
        %v1599 = vmul.f32 %v1552, %v678
        %v1600 = vmul.f32 %v1593, %v678
        %v1601 = vmul.f32 %v1555, %v678
        %v1602 = vmul.f32 %v1557, %v678
        %v1603 = vmul.f32 %v1594, %v678
        %v1604 = vmul.f32 %v1560, %v678
        %v1605 = vmul.f32 %v1562, %v678
        %v1606 = vmul.f32 %v1595, %v678
        %v1607 = vmul.f32 %v1565, %v678
        %v1608 = vmul.f32 %v1567, %v678
        %v1609 = vmul.f32 %v1596, %v678
        %v1610 = vmul.f32 %v1570, %v678
        %v1611 = vmul.f32 %v1572, %v678
        %v1612 = vmul.f32 %v1597, %v678
        %v1613 = vadd.f32 %v1518, %v1598
        %v1614 = vadd.f32 %v1519, %v1599
        %v1615 = vadd.f32 %v1520, %v1600
        %v1616 = vadd.f32 %v1521, %v1601
        %v1617 = vadd.f32 %v1522, %v1602
        %v1618 = vadd.f32 %v1523, %v1603
        %v1619 = vadd.f32 %v1524, %v1604
        %v1620 = vadd.f32 %v1525, %v1605
        %v1621 = vadd.f32 %v1526, %v1606
        %v1622 = vadd.f32 %v1527, %v1607
        %v1623 = vadd.f32 %v1528, %v1608
        %v1624 = vadd.f32 %v1529, %v1609
        %v1625 = vadd.f32 %v1530, %v1610
        %v1626 = vadd.f32 %v1531, %v1611
        %v1627 = vadd.f32 %v1532, %v1612
        %v1628 = vrot.slane %v1488, 2
        %v1629 = vrot.slane %v1489, 2
        %v1630 = vsel %vm470, %v1628, %v1629
        %v1631 = vrot.slane %v1490, 2
        %v1632 = vsel %vm470, %v1629, %v1631
        %v1633 = vrot.slane %v1491, 2
        %v1634 = vrot.slane %v1492, 2
        %v1635 = vsel %vm470, %v1633, %v1634
        %v1636 = vrot.slane %v1493, 2
        %v1637 = vsel %vm470, %v1634, %v1636
        %v1638 = vrot.slane %v1494, 2
        %v1639 = vrot.slane %v1495, 2
        %v1640 = vsel %vm470, %v1638, %v1639
        %v1641 = vrot.slane %v1496, 2
        %v1642 = vsel %vm470, %v1639, %v1641
        %v1643 = vrot.slane %v1497, 2
        %v1644 = vrot.slane %v1498, 2
        %v1645 = vsel %vm470, %v1643, %v1644
        %v1646 = vrot.slane %v1499, 2
        %v1647 = vsel %vm470, %v1644, %v1646
        %v1648 = vrot.slane %v1500, 2
        %v1649 = vrot.slane %v1501, 2
        %v1650 = vsel %vm470, %v1648, %v1649
        %v1651 = vrot.slane %v1502, 2
        %v1652 = vsel %vm470, %v1649, %v1651
        %v1673 = vsel %vm470, %v1631, %v1628
        %v1674 = vsel %vm470, %v1636, %v1633
        %v1675 = vsel %vm470, %v1641, %v1638
        %v1676 = vsel %vm470, %v1646, %v1643
        %v1677 = vsel %vm470, %v1651, %v1648
        %v1678 = vmul.f32 %v1630, %v764
        %v1679 = vmul.f32 %v1632, %v764
        %v1680 = vmul.f32 %v1673, %v764
        %v1681 = vmul.f32 %v1635, %v764
        %v1682 = vmul.f32 %v1637, %v764
        %v1683 = vmul.f32 %v1674, %v764
        %v1684 = vmul.f32 %v1640, %v764
        %v1685 = vmul.f32 %v1642, %v764
        %v1686 = vmul.f32 %v1675, %v764
        %v1687 = vmul.f32 %v1645, %v764
        %v1688 = vmul.f32 %v1647, %v764
        %v1689 = vmul.f32 %v1676, %v764
        %v1690 = vmul.f32 %v1650, %v764
        %v1691 = vmul.f32 %v1652, %v764
        %v1692 = vmul.f32 %v1677, %v764
        %v1693 = vadd.f32 %v1613, %v1678
        %v1694 = vadd.f32 %v1614, %v1679
        %v1695 = vadd.f32 %v1615, %v1680
        %v1696 = vadd.f32 %v1616, %v1681
        %v1697 = vadd.f32 %v1617, %v1682
        %v1698 = vadd.f32 %v1618, %v1683
        %v1699 = vadd.f32 %v1619, %v1684
        %v1700 = vadd.f32 %v1620, %v1685
        %v1701 = vadd.f32 %v1621, %v1686
        %v1702 = vadd.f32 %v1622, %v1687
        %v1703 = vadd.f32 %v1623, %v1688
        %v1704 = vadd.f32 %v1624, %v1689
        %v1705 = vadd.f32 %v1625, %v1690
        %v1706 = vadd.f32 %v1626, %v1691
        %v1707 = vadd.f32 %v1627, %v1692
        %s1708 = scalar_lea.vmem [#allocation2], 168
        %v1709 = vld [vmem:[%s1708] sm:$0xff]
        %v1710 = vld [vmem:[%s1708 + $0x8] sm:$0xff]
        %v1711 = vld [vmem:[%s1708 + $0x10] sm:$0xff]
        %v1712 = vld [vmem:[%s1708 + $0x18] sm:$0xff]
        %v1713 = vld [vmem:[%s1708 + $0x20] sm:$0xff]
        %v1714 = vld [vmem:[%s1708 + $0x28] sm:$0xff]
        %v1715 = vld [vmem:[%s1708 + $0x30] sm:$0xff]
        %v1716 = vld [vmem:[%s1708 + $0x38] sm:$0xff]
        %v1717 = vld [vmem:[%s1708 + $0x40] sm:$0xff]
        %v1718 = vld [vmem:[%s1708 + $0x48] sm:$0xff]
        %v1719 = vld [vmem:[%s1708 + $0x50] sm:$0xff]
        %v1720 = vld [vmem:[%s1708 + $0x58] sm:$0xff]
        %v1721 = vld [vmem:[%s1708 + $0x60] sm:$0xff]
        %v1722 = vld [vmem:[%s1708 + $0x68] sm:$0xff]
        %v1723 = vld [vmem:[%s1708 + $0x70] sm:$0xff]
        %v1724 = vmul.f32 %v1709, %v816
        %v1725 = vmul.f32 %v1710, %v816
        %v1726 = vmul.f32 %v1711, %v816
        %v1727 = vmul.f32 %v1712, %v816
        %v1728 = vmul.f32 %v1713, %v816
        %v1729 = vmul.f32 %v1714, %v816
        %v1730 = vmul.f32 %v1715, %v816
        %v1731 = vmul.f32 %v1716, %v816
        %v1732 = vmul.f32 %v1717, %v816
        %v1733 = vmul.f32 %v1718, %v816
        %v1734 = vmul.f32 %v1719, %v816
        %v1735 = vmul.f32 %v1720, %v816
        %v1736 = vmul.f32 %v1721, %v816
        %v1737 = vmul.f32 %v1722, %v816
        %v1738 = vmul.f32 %v1723, %v816
        %v1739 = vadd.f32 %v1693, %v1724
        %v1740 = vadd.f32 %v1694, %v1725
        %v1741 = vadd.f32 %v1695, %v1726
        %v1742 = vadd.f32 %v1696, %v1727
        %v1743 = vadd.f32 %v1697, %v1728
        %v1744 = vadd.f32 %v1698, %v1729
        %v1745 = vadd.f32 %v1699, %v1730
        %v1746 = vadd.f32 %v1700, %v1731
        %v1747 = vadd.f32 %v1701, %v1732
        %v1748 = vadd.f32 %v1702, %v1733
        %v1749 = vadd.f32 %v1703, %v1734
        %v1750 = vadd.f32 %v1704, %v1735
        %v1751 = vadd.f32 %v1705, %v1736
        %v1752 = vadd.f32 %v1706, %v1737
        %v1753 = vadd.f32 %v1707, %v1738
        %v1769 = vrot.slane %v1709, 1
        %v1770 = vrot.slane %v1710, 1
        %v1771 = vsel %vm383, %v1769, %v1770
        %v1772 = vrot.slane %v1711, 1
        %v1773 = vsel %vm383, %v1770, %v1772
        %v1774 = vrot.slane %v1712, 1
        %v1775 = vrot.slane %v1713, 1
        %v1776 = vsel %vm383, %v1774, %v1775
        %v1777 = vrot.slane %v1714, 1
        %v1778 = vsel %vm383, %v1775, %v1777
        %v1779 = vrot.slane %v1715, 1
        %v1780 = vrot.slane %v1716, 1
        %v1781 = vsel %vm383, %v1779, %v1780
        %v1782 = vrot.slane %v1717, 1
        %v1783 = vsel %vm383, %v1780, %v1782
        %v1784 = vrot.slane %v1718, 1
        %v1785 = vrot.slane %v1719, 1
        %v1786 = vsel %vm383, %v1784, %v1785
        %v1787 = vrot.slane %v1720, 1
        %v1788 = vsel %vm383, %v1785, %v1787
        %v1789 = vrot.slane %v1721, 1
        %v1790 = vrot.slane %v1722, 1
        %v1791 = vsel %vm383, %v1789, %v1790
        %v1792 = vrot.slane %v1723, 1
        %v1793 = vsel %vm383, %v1790, %v1792
        %v1814 = vsel %vm383, %v1772, %v1769
        %v1815 = vsel %vm383, %v1777, %v1774
        %v1816 = vsel %vm383, %v1782, %v1779
        %v1817 = vsel %vm383, %v1787, %v1784
        %v1818 = vsel %vm383, %v1792, %v1789
        %v1819 = vmul.f32 %v1771, %v917
        %v1820 = vmul.f32 %v1773, %v917
        %v1821 = vmul.f32 %v1814, %v917
        %v1822 = vmul.f32 %v1776, %v917
        %v1823 = vmul.f32 %v1778, %v917
        %v1824 = vmul.f32 %v1815, %v917
        %v1825 = vmul.f32 %v1781, %v917
        %v1826 = vmul.f32 %v1783, %v917
        %v1827 = vmul.f32 %v1816, %v917
        %v1828 = vmul.f32 %v1786, %v917
        %v1829 = vmul.f32 %v1788, %v917
        %v1830 = vmul.f32 %v1817, %v917
        %v1831 = vmul.f32 %v1791, %v917
        %v1832 = vmul.f32 %v1793, %v917
        %v1833 = vmul.f32 %v1818, %v917
        %v1834 = vadd.f32 %v1739, %v1819
        %v1835 = vadd.f32 %v1740, %v1820
        %v1836 = vadd.f32 %v1741, %v1821
        %v1837 = vadd.f32 %v1742, %v1822
        %v1838 = vadd.f32 %v1743, %v1823
        %v1839 = vadd.f32 %v1744, %v1824
        %v1840 = vadd.f32 %v1745, %v1825
        %v1841 = vadd.f32 %v1746, %v1826
        %v1842 = vadd.f32 %v1747, %v1827
        %v1843 = vadd.f32 %v1748, %v1828
        %v1844 = vadd.f32 %v1749, %v1829
        %v1845 = vadd.f32 %v1750, %v1830
        %v1846 = vadd.f32 %v1751, %v1831
        %v1847 = vadd.f32 %v1752, %v1832
        %v1848 = vadd.f32 %v1753, %v1833
        %v1849 = vrot.slane %v1709, 2
        %v1850 = vrot.slane %v1710, 2
        %v1851 = vsel %vm470, %v1849, %v1850
        %v1852 = vrot.slane %v1711, 2
        %v1853 = vsel %vm470, %v1850, %v1852
        %v1854 = vrot.slane %v1712, 2
        %v1855 = vrot.slane %v1713, 2
        %v1856 = vsel %vm470, %v1854, %v1855
        %v1857 = vrot.slane %v1714, 2
        %v1858 = vsel %vm470, %v1855, %v1857
        %v1859 = vrot.slane %v1715, 2
        %v1860 = vrot.slane %v1716, 2
        %v1861 = vsel %vm470, %v1859, %v1860
        %v1862 = vrot.slane %v1717, 2
        %v1863 = vsel %vm470, %v1860, %v1862
        %v1864 = vrot.slane %v1718, 2
        %v1865 = vrot.slane %v1719, 2
        %v1866 = vsel %vm470, %v1864, %v1865
        %v1867 = vrot.slane %v1720, 2
        %v1868 = vsel %vm470, %v1865, %v1867
        %v1869 = vrot.slane %v1721, 2
        %v1870 = vrot.slane %v1722, 2
        %v1871 = vsel %vm470, %v1869, %v1870
        %v1872 = vrot.slane %v1723, 2
        %v1873 = vsel %vm470, %v1870, %v1872
        %v1894 = vsel %vm470, %v1852, %v1849
        %v1895 = vsel %vm470, %v1857, %v1854
        %v1896 = vsel %vm470, %v1862, %v1859
        %v1897 = vsel %vm470, %v1867, %v1864
        %v1898 = vsel %vm470, %v1872, %v1869
        %v1899 = vmul.f32 %v1851, %v1003
        %v1900 = vmul.f32 %v1853, %v1003
        %v1901 = vmul.f32 %v1894, %v1003
        %v1902 = vmul.f32 %v1856, %v1003
        %v1903 = vmul.f32 %v1858, %v1003
        %v1904 = vmul.f32 %v1895, %v1003
        %v1905 = vmul.f32 %v1861, %v1003
        %v1906 = vmul.f32 %v1863, %v1003
        %v1907 = vmul.f32 %v1896, %v1003
        %v1908 = vmul.f32 %v1866, %v1003
        %v1909 = vmul.f32 %v1868, %v1003
        %v1910 = vmul.f32 %v1897, %v1003
        %v1911 = vmul.f32 %v1871, %v1003
        %v1912 = vmul.f32 %v1873, %v1003
        %v1913 = vmul.f32 %v1898, %v1003
        %v1914 = vadd.f32 %v1834, %v1899
        %v1915 = vadd.f32 %v1835, %v1900
        %v1916 = vadd.f32 %v1836, %v1901
        %v1917 = vadd.f32 %v1837, %v1902
        %v1918 = vadd.f32 %v1838, %v1903
        %v1919 = vadd.f32 %v1839, %v1904
        %v1920 = vadd.f32 %v1840, %v1905
        %v1921 = vadd.f32 %v1841, %v1906
        %v1922 = vadd.f32 %v1842, %v1907
        %v1923 = vadd.f32 %v1843, %v1908
        %v1924 = vadd.f32 %v1844, %v1909
        %v1925 = vadd.f32 %v1845, %v1910
        %v1926 = vadd.f32 %v1846, %v1911
        %v1927 = vadd.f32 %v1847, %v1912
        %v1928 = vadd.f32 %v1848, %v1913
        %v1929 = vadd.f32 %v1914, %v1039
        %v1930 = vadd.f32 %v1915, %v1039
        %v1931 = vadd.f32 %v1916, %v1039
        %v1932 = vadd.f32 %v1917, %v1039
        %v1933 = vadd.f32 %v1918, %v1039
        %v1934 = vadd.f32 %v1919, %v1039
        %v1935 = vadd.f32 %v1920, %v1039
        %v1936 = vadd.f32 %v1921, %v1039
        %v1937 = vadd.f32 %v1922, %v1039
        %v1938 = vadd.f32 %v1923, %v1039
        %v1939 = vadd.f32 %v1924, %v1039
        %v1940 = vadd.f32 %v1925, %v1039
        %v1941 = vadd.f32 %v1926, %v1039
        %v1942 = vadd.f32 %v1927, %v1039
        %v1943 = vadd.f32 %v1928, %v1039
        %v1944 = vmax.f32 %v1929, 0.0
        %v1945 = vmax.f32 %v1930, 0.0
        %v1946 = vmax.f32 %v1931, 0.0
        %v1947 = vmax.f32 %v1932, 0.0
        %v1948 = vmax.f32 %v1933, 0.0
        %v1949 = vmax.f32 %v1934, 0.0
        %v1950 = vmax.f32 %v1935, 0.0
        %v1951 = vmax.f32 %v1936, 0.0
        %v1952 = vmax.f32 %v1937, 0.0
        %v1953 = vmax.f32 %v1938, 0.0
        %v1954 = vmax.f32 %v1939, 0.0
        %v1955 = vmax.f32 %v1940, 0.0
        %v1956 = vmax.f32 %v1941, 0.0
        %v1957 = vmax.f32 %v1942, 0.0
        %v1958 = vmax.f32 %v1943, 0.0
        %1959 = vmatprep.subr.mxu0 0.0
        %1960 = vmatpush1.msra.mxu0 %v295
        %1961 = vmatprep.subr.mxu0 0.0
        %1962 = vmatpush1.msra.mxu0 %v294
        %1963 = vmatprep.subr.mxu0 0.0
        %1964 = vmatpush1.msra.mxu0 %v293
        %1965 = vmatprep.subr.mxu0 0.0
        %1966 = vmatpush1.msra.mxu0 %v292
        %1967 = vmatprep.subr.mxu0 0.0
        %1968 = vmatpush1.msra.mxu0 %v291
        %1969 = vmatprep.subr.mxu0 0.0
        %1970 = vmatpush1.msra.mxu0 %v290
        %1971 = vmatprep.subr.mxu0 0.0
        %1972 = vmatpush1.msra.mxu0 %v289
        %1973 = vmatprep.subr.mxu0 0.0
        %1974 = vmatpush1.msra.mxu0 %v288
        %1975 = vmatprep.subr.mxu0 0.0
        %1976 = vmatpush1.msra.mxu0 %v287
        %1977 = vmatprep.subr.mxu0 0.0
        %1978 = vmatpush1.msra.mxu0 %v286
        %1979 = vmatprep.subr.mxu0 0.0
        %1980 = vmatpush1.msra.mxu0 %v285
        %1981 = vmatprep.subr.mxu0 0.0
        %1982 = vmatpush1.msra.mxu0 %v284
        %1983 = vmatprep.subr.mxu0 0.0
        %1984 = vmatpush1.msra.mxu0 %v283
        %1985 = vmatprep.subr.mxu0 0.0
        %1986 = vmatpush1.msra.mxu0 %v282
        %1987 = vmatprep.subr.mxu0 0.0
        %1988 = vmatpush1.msra.mxu0 %v281
        %1989 = vmatprep.subr.mxu0 0.0
        %1990 = vmatpush1.msra.mxu0 %v280
        %1991 = vmatprep.subr.mxu0 0.0
        %1992 = vmatpush2.msra.mxu0 0.0
        %1993 = vmatprep.subr.mxu0 0.0
        %1994 = vmatpush2.msra.mxu0 0.0
        %1995 = vmatprep.subr.mxu0 0.0
        %1996 = vmatpush2.msra.mxu0 0.0
        %1997 = vmatprep.subr.mxu0 0.0
        %1998 = vmatpush2.msra.mxu0 0.0
        %1999 = vmatprep.subr.mxu0 0.0
        %2000 = vmatpush2.msra.mxu0 0.0
        %2001 = vmatprep.subr.mxu0 0.0
        %2002 = vmatpush2.msra.mxu0 0.0
        %2003 = vmatprep.subr.mxu0 0.0
        %2004 = vmatpush2.msra.mxu0 0.0
        %2005 = vmatprep.subr.mxu0 0.0
        %2006 = vmatpush2.msra.mxu0 0.0
        %2007 = vmatprep.subr.mxu0 0.0
        %2008 = vmatpush2.msra.mxu0 0.0
        %2009 = vmatprep.subr.mxu0 0.0
        %2010 = vmatpush2.msra.mxu0 0.0
        %2011 = vmatprep.subr.mxu0 0.0
        %2012 = vmatpush2.msra.mxu0 0.0
        %2013 = vmatprep.subr.mxu0 0.0
        %2014 = vmatpush2.msra.mxu0 0.0
        %2015 = vmatprep.subr.mxu0 0.0
        %2016 = vmatpush2.msra.mxu0 0.0
        %2017 = vmatprep.subr.mxu0 0.0
        %2018 = vmatpush2.msra.mxu0 0.0
        %2019 = vmatprep.subr.mxu0 0.0
        %2020 = vmatpush2.msra.mxu0 0.0
        %2021 = vmatprep.subr.mxu0 0.0
        %2022 = vmatpush2.msra.mxu0 0.0
        %2023 = vmatprep.mubr.f32.mxu0 0.0
        %2024 = vmatmul.mubr.f32.gmra.mxu0 %v1944
        %v2025 = vpop.f32.mrf.mxu0
        %v2026 = vadd.f32 %v1075, %v2025
        %v2027 = vpop.f32.mrf.mxu0
        %2028 = vmatprep.mubr.f32.mxu0 0.0
        %2029 = vmatmul.mubr.f32.gmra.mxu0 %v1945
        %v2030 = vpop.f32.mrf.mxu0
        %v2031 = vadd.f32 %v1075, %v2030
        %v2032 = vpop.f32.mrf.mxu0
        %2033 = vmatprep.mubr.f32.mxu0 0.0
        %2034 = vmatmul.mubr.f32.gmra.mxu0 %v1946
        %v2035 = vpop.f32.mrf.mxu0
        %v2036 = vadd.f32 %v1075, %v2035
        %v2037 = vpop.f32.mrf.mxu0
        %2038 = vmatprep.mubr.f32.mxu0 0.0
        %2039 = vmatmul.mubr.f32.gmra.mxu0 %v1947
        %v2040 = vpop.f32.mrf.mxu0
        %v2041 = vadd.f32 %v1075, %v2040
        %v2042 = vpop.f32.mrf.mxu0
        %2043 = vmatprep.mubr.f32.mxu0 0.0
        %2044 = vmatmul.mubr.f32.gmra.mxu0 %v1948
        %v2045 = vpop.f32.mrf.mxu0
        %v2046 = vadd.f32 %v1075, %v2045
        %v2047 = vpop.f32.mrf.mxu0
        %2048 = vmatprep.mubr.f32.mxu0 0.0
        %2049 = vmatmul.mubr.f32.gmra.mxu0 %v1949
        %v2050 = vpop.f32.mrf.mxu0
        %v2051 = vadd.f32 %v1075, %v2050
        %v2052 = vpop.f32.mrf.mxu0
        %2053 = vmatprep.mubr.f32.mxu0 0.0
        %2054 = vmatmul.mubr.f32.gmra.mxu0 %v1950
        %v2055 = vpop.f32.mrf.mxu0
        %v2056 = vadd.f32 %v1075, %v2055
        %v2057 = vpop.f32.mrf.mxu0
        %2058 = vmatprep.mubr.f32.mxu0 0.0
        %2059 = vmatmul.mubr.f32.gmra.mxu0 %v1951
        %v2060 = vpop.f32.mrf.mxu0
        %v2061 = vadd.f32 %v1075, %v2060
        %v2062 = vpop.f32.mrf.mxu0
        %2063 = vmatprep.mubr.f32.mxu0 0.0
        %2064 = vmatmul.mubr.f32.gmra.mxu0 %v1952
        %v2065 = vpop.f32.mrf.mxu0
        %v2066 = vadd.f32 %v1075, %v2065
        %v2067 = vpop.f32.mrf.mxu0
        %2068 = vmatprep.mubr.f32.mxu0 0.0
        %2069 = vmatmul.mubr.f32.gmra.mxu0 %v1953
        %v2070 = vpop.f32.mrf.mxu0
        %v2071 = vadd.f32 %v1075, %v2070
        %v2072 = vpop.f32.mrf.mxu0
        %2073 = vmatprep.mubr.f32.mxu0 0.0
        %2074 = vmatmul.mubr.f32.gmra.mxu0 %v1954
        %v2075 = vpop.f32.mrf.mxu0
        %v2076 = vadd.f32 %v1075, %v2075
        %v2077 = vpop.f32.mrf.mxu0
        %2078 = vmatprep.mubr.f32.mxu0 0.0
        %2079 = vmatmul.mubr.f32.gmra.mxu0 %v1955
        %v2080 = vpop.f32.mrf.mxu0
        %v2081 = vadd.f32 %v1075, %v2080
        %v2082 = vpop.f32.mrf.mxu0
        %2083 = vmatprep.mubr.f32.mxu0 0.0
        %2084 = vmatmul.mubr.f32.gmra.mxu0 %v1956
        %v2085 = vpop.f32.mrf.mxu0
        %v2086 = vadd.f32 %v1075, %v2085
        %v2087 = vpop.f32.mrf.mxu0
        %2088 = vmatprep.mubr.f32.mxu0 0.0
        %2089 = vmatmul.mubr.f32.gmra.mxu0 %v1957
        %v2090 = vpop.f32.mrf.mxu0
        %v2091 = vadd.f32 %v1075, %v2090
        %v2092 = vpop.f32.mrf.mxu0
        %2093 = vmatprep.mubr.f32.mxu0 0.0
        %2094 = vmatmul.mubr.f32.gmra.mxu0 %v1958
        %v2095 = vpop.f32.mrf.mxu0
        %v2096 = vadd.f32 %v1075, %v2095
        %v2097 = vpop.f32.mrf.mxu0
        %2098 = vdwg.mxu0
        %v2099 = vmax.f32 %v2026, 0.0
        %v2100 = vmax.f32 %v2031, 0.0
        %v2101 = vmax.f32 %v2036, 0.0
        %v2102 = vmax.f32 %v2041, 0.0
        %v2103 = vmax.f32 %v2046, 0.0
        %v2104 = vmax.f32 %v2051, 0.0
        %v2105 = vmax.f32 %v2056, 0.0
        %v2106 = vmax.f32 %v2061, 0.0
        %v2107 = vmax.f32 %v2066, 0.0
        %v2108 = vmax.f32 %v2071, 0.0
        %v2109 = vmax.f32 %v2076, 0.0
        %v2110 = vmax.f32 %v2081, 0.0
        %v2111 = vmax.f32 %v2086, 0.0
        %v2112 = vmax.f32 %v2091, 0.0
        %v2113 = vmax.f32 %v2096, 0.0
        %s2114 = scalar_lea.vmem %s220, 120 [#allocation9]
        %2115 = vst [vmem:[%s2114] sm:$0xff] %v2099
        %2116 = vst [vmem:[%s2114 + $0x8] sm:$0xff] %v2100
        %2117 = vst [vmem:[%s2114 + $0x10] sm:$0xff] %v2101
        %2118 = vst [vmem:[%s2114 + $0x18] sm:$0xff] %v2102
        %2119 = vst [vmem:[%s2114 + $0x20] sm:$0xff] %v2103
        %2120 = vst [vmem:[%s2114 + $0x28] sm:$0xff] %v2104
        %2121 = vst [vmem:[%s2114 + $0x30] sm:$0xff] %v2105
        %2122 = vst [vmem:[%s2114 + $0x38] sm:$0xff] %v2106
        %2123 = vst [vmem:[%s2114 + $0x40] sm:$0xff] %v2107
        %2124 = vst [vmem:[%s2114 + $0x48] sm:$0xff] %v2108
        %2125 = vst [vmem:[%s2114 + $0x50] sm:$0xff] %v2109
        %2126 = vst [vmem:[%s2114 + $0x58] sm:$0xff] %v2110
        %2127 = vst [vmem:[%s2114 + $0x60] sm:$0xff] %v2111
        %2128 = vst [vmem:[%s2114 + $0x68] sm:$0xff] %v2112
        %2129 = vst [vmem:[%s2114 + $0x70] sm:$0xff] %v2113
        %s2130 = sadd.s32 %s222, 20
        %s2131 = smul.u32 %s2130, 24
        %s2132 = sadd.s32 %s2131, %s224
        %s2133 = smul.addr %s2132, 16
        %s2134 = scalar_lea.hbm %s0, %s2133
        %s2135 = scalar_lea.vmem [#allocation2], 480
        %s2136 = scalar_lea.sflag [#allocation3], 4
        // Predicated region
        $region61: #{tpu_custom_call.1} parent=35 // pred_check
          _
        $region62: #{tpu_custom_call.1} parent=35 // pred_check_branch
          %2138 = sbr.rel target = $region64
        $region63: #{tpu_custom_call.1} parent=35 // pred_region
          %2139 = sst [smem:[#allocation12]] [#allocation21]
          %2140 = sst [smem:[#allocation13]] [#allocation20]
        $region64: #{tpu_custom_call.1} parent=35 // pred_fallthru
          _
        %2142 = shalt.err (0)
        %s2144 = sshll.u32 %s2135, 4
        %s2145 = int_to_ptr.vmem [resolvable:$true] %s2144
        %2147 = dma.hbm_to_vmem [thread:$0]  %s2134, 768, %s2145, %s2136
        %s2148 = sshll.u32 %s259, 4
        %2149 = dma.done %s1253, %s2148
        %v2150 = vld [vmem:[%s302] sm:$0xff]
        %v2151 = vld [vmem:[%s302 + $0x8] sm:$0xff]
        %v2152 = vld [vmem:[%s302 + $0x10] sm:$0xff]
        %v2153 = vld [vmem:[%s302 + $0x18] sm:$0xff]
        %v2154 = vld [vmem:[%s302 + $0x20] sm:$0xff]
        %v2155 = vld [vmem:[%s302 + $0x28] sm:$0xff]
        %v2156 = vld [vmem:[%s302 + $0x30] sm:$0xff]
        %v2157 = vld [vmem:[%s302 + $0x38] sm:$0xff]
        %v2158 = vld [vmem:[%s302 + $0x40] sm:$0xff]
        %v2159 = vld [vmem:[%s302 + $0x48] sm:$0xff]
        %v2160 = vld [vmem:[%s302 + $0x50] sm:$0xff]
        %v2161 = vld [vmem:[%s302 + $0x58] sm:$0xff]
        %v2162 = vld [vmem:[%s302 + $0x60] sm:$0xff]
        %v2163 = vld [vmem:[%s302 + $0x68] sm:$0xff]
        %v2164 = vld [vmem:[%s302 + $0x70] sm:$0xff]
        %v2165 = vmul.f32 %v2150, %v336
        %v2166 = vmul.f32 %v2151, %v336
        %v2167 = vmul.f32 %v2152, %v336
        %v2168 = vmul.f32 %v2153, %v336
        %v2169 = vmul.f32 %v2154, %v336
        %v2170 = vmul.f32 %v2155, %v336
        %v2171 = vmul.f32 %v2156, %v336
        %v2172 = vmul.f32 %v2157, %v336
        %v2173 = vmul.f32 %v2158, %v336
        %v2174 = vmul.f32 %v2159, %v336
        %v2175 = vmul.f32 %v2160, %v336
        %v2176 = vmul.f32 %v2161, %v336
        %v2177 = vmul.f32 %v2162, %v336
        %v2178 = vmul.f32 %v2163, %v336
        %v2179 = vmul.f32 %v2164, %v336
        %v2180 = vadd.f32 %v2165, 0.0
        %v2181 = vadd.f32 %v2166, 0.0
        %v2182 = vadd.f32 %v2167, 0.0
        %v2183 = vadd.f32 %v2168, 0.0
        %v2184 = vadd.f32 %v2169, 0.0
        %v2185 = vadd.f32 %v2170, 0.0
        %v2186 = vadd.f32 %v2171, 0.0
        %v2187 = vadd.f32 %v2172, 0.0
        %v2188 = vadd.f32 %v2173, 0.0
        %v2189 = vadd.f32 %v2174, 0.0
        %v2190 = vadd.f32 %v2175, 0.0
        %v2191 = vadd.f32 %v2176, 0.0
        %v2192 = vadd.f32 %v2177, 0.0
        %v2193 = vadd.f32 %v2178, 0.0
        %v2194 = vadd.f32 %v2179, 0.0
        %v2210 = vrot.slane %v2150, 1
        %v2211 = vrot.slane %v2151, 1
        %v2212 = vsel %vm383, %v2210, %v2211
        %v2213 = vrot.slane %v2152, 1
        %v2214 = vsel %vm383, %v2211, %v2213
        %v2215 = vrot.slane %v2153, 1
        %v2216 = vrot.slane %v2154, 1
        %v2217 = vsel %vm383, %v2215, %v2216
        %v2218 = vrot.slane %v2155, 1
        %v2219 = vsel %vm383, %v2216, %v2218
        %v2220 = vrot.slane %v2156, 1
        %v2221 = vrot.slane %v2157, 1
        %v2222 = vsel %vm383, %v2220, %v2221
        %v2223 = vrot.slane %v2158, 1
        %v2224 = vsel %vm383, %v2221, %v2223
        %v2225 = vrot.slane %v2159, 1
        %v2226 = vrot.slane %v2160, 1
        %v2227 = vsel %vm383, %v2225, %v2226
        %v2228 = vrot.slane %v2161, 1
        %v2229 = vsel %vm383, %v2226, %v2228
        %v2230 = vrot.slane %v2162, 1
        %v2231 = vrot.slane %v2163, 1
        %v2232 = vsel %vm383, %v2230, %v2231
        %v2233 = vrot.slane %v2164, 1
        %v2234 = vsel %vm383, %v2231, %v2233
        %v2255 = vsel %vm383, %v2213, %v2210
        %v2256 = vsel %vm383, %v2218, %v2215
        %v2257 = vsel %vm383, %v2223, %v2220
        %v2258 = vsel %vm383, %v2228, %v2225
        %v2259 = vsel %vm383, %v2233, %v2230
        %v2260 = vmul.f32 %v2212, %v438
        %v2261 = vmul.f32 %v2214, %v438
        %v2262 = vmul.f32 %v2255, %v438
        %v2263 = vmul.f32 %v2217, %v438
        %v2264 = vmul.f32 %v2219, %v438
        %v2265 = vmul.f32 %v2256, %v438
        %v2266 = vmul.f32 %v2222, %v438
        %v2267 = vmul.f32 %v2224, %v438
        %v2268 = vmul.f32 %v2257, %v438
        %v2269 = vmul.f32 %v2227, %v438
        %v2270 = vmul.f32 %v2229, %v438
        %v2271 = vmul.f32 %v2258, %v438
        %v2272 = vmul.f32 %v2232, %v438
        %v2273 = vmul.f32 %v2234, %v438
        %v2274 = vmul.f32 %v2259, %v438
        %v2275 = vadd.f32 %v2180, %v2260
        %v2276 = vadd.f32 %v2181, %v2261
        %v2277 = vadd.f32 %v2182, %v2262
        %v2278 = vadd.f32 %v2183, %v2263
        %v2279 = vadd.f32 %v2184, %v2264
        %v2280 = vadd.f32 %v2185, %v2265
        %v2281 = vadd.f32 %v2186, %v2266
        %v2282 = vadd.f32 %v2187, %v2267
        %v2283 = vadd.f32 %v2188, %v2268
        %v2284 = vadd.f32 %v2189, %v2269
        %v2285 = vadd.f32 %v2190, %v2270
        %v2286 = vadd.f32 %v2191, %v2271
        %v2287 = vadd.f32 %v2192, %v2272
        %v2288 = vadd.f32 %v2193, %v2273
        %v2289 = vadd.f32 %v2194, %v2274
        %v2290 = vrot.slane %v2150, 2
        %v2291 = vrot.slane %v2151, 2
        %v2292 = vsel %vm470, %v2290, %v2291
        %v2293 = vrot.slane %v2152, 2
        %v2294 = vsel %vm470, %v2291, %v2293
        %v2295 = vrot.slane %v2153, 2
        %v2296 = vrot.slane %v2154, 2
        %v2297 = vsel %vm470, %v2295, %v2296
        %v2298 = vrot.slane %v2155, 2
        %v2299 = vsel %vm470, %v2296, %v2298
        %v2300 = vrot.slane %v2156, 2
        %v2301 = vrot.slane %v2157, 2
        %v2302 = vsel %vm470, %v2300, %v2301
        %v2303 = vrot.slane %v2158, 2
        %v2304 = vsel %vm470, %v2301, %v2303
        %v2305 = vrot.slane %v2159, 2
        %v2306 = vrot.slane %v2160, 2
        %v2307 = vsel %vm470, %v2305, %v2306
        %v2308 = vrot.slane %v2161, 2
        %v2309 = vsel %vm470, %v2306, %v2308
        %v2310 = vrot.slane %v2162, 2
        %v2311 = vrot.slane %v2163, 2
        %v2312 = vsel %vm470, %v2310, %v2311
        %v2313 = vrot.slane %v2164, 2
        %v2314 = vsel %vm470, %v2311, %v2313
        %v2335 = vsel %vm470, %v2293, %v2290
        %v2336 = vsel %vm470, %v2298, %v2295
        %v2337 = vsel %vm470, %v2303, %v2300
        %v2338 = vsel %vm470, %v2308, %v2305
        %v2339 = vsel %vm470, %v2313, %v2310
        %v2340 = vmul.f32 %v2292, %v525
        %v2341 = vmul.f32 %v2294, %v525
        %v2342 = vmul.f32 %v2335, %v525
        %v2343 = vmul.f32 %v2297, %v525
        %v2344 = vmul.f32 %v2299, %v525
        %v2345 = vmul.f32 %v2336, %v525
        %v2346 = vmul.f32 %v2302, %v525
        %v2347 = vmul.f32 %v2304, %v525
        %v2348 = vmul.f32 %v2337, %v525
        %v2349 = vmul.f32 %v2307, %v525
        %v2350 = vmul.f32 %v2309, %v525
        %v2351 = vmul.f32 %v2338, %v525
        %v2352 = vmul.f32 %v2312, %v525
        %v2353 = vmul.f32 %v2314, %v525
        %v2354 = vmul.f32 %v2339, %v525
        %v2355 = vadd.f32 %v2275, %v2340
        %v2356 = vadd.f32 %v2276, %v2341
        %v2357 = vadd.f32 %v2277, %v2342
        %v2358 = vadd.f32 %v2278, %v2343
        %v2359 = vadd.f32 %v2279, %v2344
        %v2360 = vadd.f32 %v2280, %v2345
        %v2361 = vadd.f32 %v2281, %v2346
        %v2362 = vadd.f32 %v2282, %v2347
        %v2363 = vadd.f32 %v2283, %v2348
        %v2364 = vadd.f32 %v2284, %v2349
        %v2365 = vadd.f32 %v2285, %v2350
        %v2366 = vadd.f32 %v2286, %v2351
        %v2367 = vadd.f32 %v2287, %v2352
        %v2368 = vadd.f32 %v2288, %v2353
        %v2369 = vadd.f32 %v2289, %v2354
        %s2370 = scalar_lea.vmem [#allocation2], 264
        %v2371 = vld [vmem:[%s2370] sm:$0xff]
        %v2372 = vld [vmem:[%s2370 + $0x8] sm:$0xff]
        %v2373 = vld [vmem:[%s2370 + $0x10] sm:$0xff]
        %v2374 = vld [vmem:[%s2370 + $0x18] sm:$0xff]
        %v2375 = vld [vmem:[%s2370 + $0x20] sm:$0xff]
        %v2376 = vld [vmem:[%s2370 + $0x28] sm:$0xff]
        %v2377 = vld [vmem:[%s2370 + $0x30] sm:$0xff]
        %v2378 = vld [vmem:[%s2370 + $0x38] sm:$0xff]
        %v2379 = vld [vmem:[%s2370 + $0x40] sm:$0xff]
        %v2380 = vld [vmem:[%s2370 + $0x48] sm:$0xff]
        %v2381 = vld [vmem:[%s2370 + $0x50] sm:$0xff]
        %v2382 = vld [vmem:[%s2370 + $0x58] sm:$0xff]
        %v2383 = vld [vmem:[%s2370 + $0x60] sm:$0xff]
        %v2384 = vld [vmem:[%s2370 + $0x68] sm:$0xff]
        %v2385 = vld [vmem:[%s2370 + $0x70] sm:$0xff]
        %v2386 = vmul.f32 %v2371, %v577
        %v2387 = vmul.f32 %v2372, %v577
        %v2388 = vmul.f32 %v2373, %v577
        %v2389 = vmul.f32 %v2374, %v577
        %v2390 = vmul.f32 %v2375, %v577
        %v2391 = vmul.f32 %v2376, %v577
        %v2392 = vmul.f32 %v2377, %v577
        %v2393 = vmul.f32 %v2378, %v577
        %v2394 = vmul.f32 %v2379, %v577
        %v2395 = vmul.f32 %v2380, %v577
        %v2396 = vmul.f32 %v2381, %v577
        %v2397 = vmul.f32 %v2382, %v577
        %v2398 = vmul.f32 %v2383, %v577
        %v2399 = vmul.f32 %v2384, %v577
        %v2400 = vmul.f32 %v2385, %v577
        %v2401 = vadd.f32 %v2355, %v2386
        %v2402 = vadd.f32 %v2356, %v2387
        %v2403 = vadd.f32 %v2357, %v2388
        %v2404 = vadd.f32 %v2358, %v2389
        %v2405 = vadd.f32 %v2359, %v2390
        %v2406 = vadd.f32 %v2360, %v2391
        %v2407 = vadd.f32 %v2361, %v2392
        %v2408 = vadd.f32 %v2362, %v2393
        %v2409 = vadd.f32 %v2363, %v2394
        %v2410 = vadd.f32 %v2364, %v2395
        %v2411 = vadd.f32 %v2365, %v2396
        %v2412 = vadd.f32 %v2366, %v2397
        %v2413 = vadd.f32 %v2367, %v2398
        %v2414 = vadd.f32 %v2368, %v2399
        %v2415 = vadd.f32 %v2369, %v2400
        %v2431 = vrot.slane %v2371, 1
        %v2432 = vrot.slane %v2372, 1
        %v2433 = vsel %vm383, %v2431, %v2432
        %v2434 = vrot.slane %v2373, 1
        %v2435 = vsel %vm383, %v2432, %v2434
        %v2436 = vrot.slane %v2374, 1
        %v2437 = vrot.slane %v2375, 1
        %v2438 = vsel %vm383, %v2436, %v2437
        %v2439 = vrot.slane %v2376, 1
        %v2440 = vsel %vm383, %v2437, %v2439
        %v2441 = vrot.slane %v2377, 1
        %v2442 = vrot.slane %v2378, 1
        %v2443 = vsel %vm383, %v2441, %v2442
        %v2444 = vrot.slane %v2379, 1
        %v2445 = vsel %vm383, %v2442, %v2444
        %v2446 = vrot.slane %v2380, 1
        %v2447 = vrot.slane %v2381, 1
        %v2448 = vsel %vm383, %v2446, %v2447
        %v2449 = vrot.slane %v2382, 1
        %v2450 = vsel %vm383, %v2447, %v2449
        %v2451 = vrot.slane %v2383, 1
        %v2452 = vrot.slane %v2384, 1
        %v2453 = vsel %vm383, %v2451, %v2452
        %v2454 = vrot.slane %v2385, 1
        %v2455 = vsel %vm383, %v2452, %v2454
        %v2476 = vsel %vm383, %v2434, %v2431
        %v2477 = vsel %vm383, %v2439, %v2436
        %v2478 = vsel %vm383, %v2444, %v2441
        %v2479 = vsel %vm383, %v2449, %v2446
        %v2480 = vsel %vm383, %v2454, %v2451
        %v2481 = vmul.f32 %v2433, %v678
        %v2482 = vmul.f32 %v2435, %v678
        %v2483 = vmul.f32 %v2476, %v678
        %v2484 = vmul.f32 %v2438, %v678
        %v2485 = vmul.f32 %v2440, %v678
        %v2486 = vmul.f32 %v2477, %v678
        %v2487 = vmul.f32 %v2443, %v678
        %v2488 = vmul.f32 %v2445, %v678
        %v2489 = vmul.f32 %v2478, %v678
        %v2490 = vmul.f32 %v2448, %v678
        %v2491 = vmul.f32 %v2450, %v678
        %v2492 = vmul.f32 %v2479, %v678
        %v2493 = vmul.f32 %v2453, %v678
        %v2494 = vmul.f32 %v2455, %v678
        %v2495 = vmul.f32 %v2480, %v678
        %v2496 = vadd.f32 %v2401, %v2481
        %v2497 = vadd.f32 %v2402, %v2482
        %v2498 = vadd.f32 %v2403, %v2483
        %v2499 = vadd.f32 %v2404, %v2484
        %v2500 = vadd.f32 %v2405, %v2485
        %v2501 = vadd.f32 %v2406, %v2486
        %v2502 = vadd.f32 %v2407, %v2487
        %v2503 = vadd.f32 %v2408, %v2488
        %v2504 = vadd.f32 %v2409, %v2489
        %v2505 = vadd.f32 %v2410, %v2490
        %v2506 = vadd.f32 %v2411, %v2491
        %v2507 = vadd.f32 %v2412, %v2492
        %v2508 = vadd.f32 %v2413, %v2493
        %v2509 = vadd.f32 %v2414, %v2494
        %v2510 = vadd.f32 %v2415, %v2495
        %v2511 = vrot.slane %v2371, 2
        %v2512 = vrot.slane %v2372, 2
        %v2513 = vsel %vm470, %v2511, %v2512
        %v2514 = vrot.slane %v2373, 2
        %v2515 = vsel %vm470, %v2512, %v2514
        %v2516 = vrot.slane %v2374, 2
        %v2517 = vrot.slane %v2375, 2
        %v2518 = vsel %vm470, %v2516, %v2517
        %v2519 = vrot.slane %v2376, 2
        %v2520 = vsel %vm470, %v2517, %v2519
        %v2521 = vrot.slane %v2377, 2
        %v2522 = vrot.slane %v2378, 2
        %v2523 = vsel %vm470, %v2521, %v2522
        %v2524 = vrot.slane %v2379, 2
        %v2525 = vsel %vm470, %v2522, %v2524
        %v2526 = vrot.slane %v2380, 2
        %v2527 = vrot.slane %v2381, 2
        %v2528 = vsel %vm470, %v2526, %v2527
        %v2529 = vrot.slane %v2382, 2
        %v2530 = vsel %vm470, %v2527, %v2529
        %v2531 = vrot.slane %v2383, 2
        %v2532 = vrot.slane %v2384, 2
        %v2533 = vsel %vm470, %v2531, %v2532
        %v2534 = vrot.slane %v2385, 2
        %v2535 = vsel %vm470, %v2532, %v2534
        %v2556 = vsel %vm470, %v2514, %v2511
        %v2557 = vsel %vm470, %v2519, %v2516
        %v2558 = vsel %vm470, %v2524, %v2521
        %v2559 = vsel %vm470, %v2529, %v2526
        %v2560 = vsel %vm470, %v2534, %v2531
        %v2561 = vmul.f32 %v2513, %v764
        %v2562 = vmul.f32 %v2515, %v764
        %v2563 = vmul.f32 %v2556, %v764
        %v2564 = vmul.f32 %v2518, %v764
        %v2565 = vmul.f32 %v2520, %v764
        %v2566 = vmul.f32 %v2557, %v764
        %v2567 = vmul.f32 %v2523, %v764
        %v2568 = vmul.f32 %v2525, %v764
        %v2569 = vmul.f32 %v2558, %v764
        %v2570 = vmul.f32 %v2528, %v764
        %v2571 = vmul.f32 %v2530, %v764
        %v2572 = vmul.f32 %v2559, %v764
        %v2573 = vmul.f32 %v2533, %v764
        %v2574 = vmul.f32 %v2535, %v764
        %v2575 = vmul.f32 %v2560, %v764
        %v2576 = vadd.f32 %v2496, %v2561
        %v2577 = vadd.f32 %v2497, %v2562
        %v2578 = vadd.f32 %v2498, %v2563
        %v2579 = vadd.f32 %v2499, %v2564
        %v2580 = vadd.f32 %v2500, %v2565
        %v2581 = vadd.f32 %v2501, %v2566
        %v2582 = vadd.f32 %v2502, %v2567
        %v2583 = vadd.f32 %v2503, %v2568
        %v2584 = vadd.f32 %v2504, %v2569
        %v2585 = vadd.f32 %v2505, %v2570
        %v2586 = vadd.f32 %v2506, %v2571
        %v2587 = vadd.f32 %v2507, %v2572
        %v2588 = vadd.f32 %v2508, %v2573
        %v2589 = vadd.f32 %v2509, %v2574
        %v2590 = vadd.f32 %v2510, %v2575
        %s2591 = scalar_lea.vmem [#allocation2], 288
        %v2592 = vld [vmem:[%s2591] sm:$0xff]
        %v2593 = vld [vmem:[%s2591 + $0x8] sm:$0xff]
        %v2594 = vld [vmem:[%s2591 + $0x10] sm:$0xff]
        %v2595 = vld [vmem:[%s2591 + $0x18] sm:$0xff]
        %v2596 = vld [vmem:[%s2591 + $0x20] sm:$0xff]
        %v2597 = vld [vmem:[%s2591 + $0x28] sm:$0xff]
        %v2598 = vld [vmem:[%s2591 + $0x30] sm:$0xff]
        %v2599 = vld [vmem:[%s2591 + $0x38] sm:$0xff]
        %v2600 = vld [vmem:[%s2591 + $0x40] sm:$0xff]
        %v2601 = vld [vmem:[%s2591 + $0x48] sm:$0xff]
        %v2602 = vld [vmem:[%s2591 + $0x50] sm:$0xff]
        %v2603 = vld [vmem:[%s2591 + $0x58] sm:$0xff]
        %v2604 = vld [vmem:[%s2591 + $0x60] sm:$0xff]
        %v2605 = vld [vmem:[%s2591 + $0x68] sm:$0xff]
        %v2606 = vld [vmem:[%s2591 + $0x70] sm:$0xff]
        %v2607 = vmul.f32 %v2592, %v816
        %v2608 = vmul.f32 %v2593, %v816
        %v2609 = vmul.f32 %v2594, %v816
        %v2610 = vmul.f32 %v2595, %v816
        %v2611 = vmul.f32 %v2596, %v816
        %v2612 = vmul.f32 %v2597, %v816
        %v2613 = vmul.f32 %v2598, %v816
        %v2614 = vmul.f32 %v2599, %v816
        %v2615 = vmul.f32 %v2600, %v816
        %v2616 = vmul.f32 %v2601, %v816
        %v2617 = vmul.f32 %v2602, %v816
        %v2618 = vmul.f32 %v2603, %v816
        %v2619 = vmul.f32 %v2604, %v816
        %v2620 = vmul.f32 %v2605, %v816
        %v2621 = vmul.f32 %v2606, %v816
        %v2622 = vadd.f32 %v2576, %v2607
        %v2623 = vadd.f32 %v2577, %v2608
        %v2624 = vadd.f32 %v2578, %v2609
        %v2625 = vadd.f32 %v2579, %v2610
        %v2626 = vadd.f32 %v2580, %v2611
        %v2627 = vadd.f32 %v2581, %v2612
        %v2628 = vadd.f32 %v2582, %v2613
        %v2629 = vadd.f32 %v2583, %v2614
        %v2630 = vadd.f32 %v2584, %v2615
        %v2631 = vadd.f32 %v2585, %v2616
        %v2632 = vadd.f32 %v2586, %v2617
        %v2633 = vadd.f32 %v2587, %v2618
        %v2634 = vadd.f32 %v2588, %v2619
        %v2635 = vadd.f32 %v2589, %v2620
        %v2636 = vadd.f32 %v2590, %v2621
        %v2652 = vrot.slane %v2592, 1
        %v2653 = vrot.slane %v2593, 1
        %v2654 = vsel %vm383, %v2652, %v2653
        %v2655 = vrot.slane %v2594, 1
        %v2656 = vsel %vm383, %v2653, %v2655
        %v2657 = vrot.slane %v2595, 1
        %v2658 = vrot.slane %v2596, 1
        %v2659 = vsel %vm383, %v2657, %v2658
        %v2660 = vrot.slane %v2597, 1
        %v2661 = vsel %vm383, %v2658, %v2660
        %v2662 = vrot.slane %v2598, 1
        %v2663 = vrot.slane %v2599, 1
        %v2664 = vsel %vm383, %v2662, %v2663
        %v2665 = vrot.slane %v2600, 1
        %v2666 = vsel %vm383, %v2663, %v2665
        %v2667 = vrot.slane %v2601, 1
        %v2668 = vrot.slane %v2602, 1
        %v2669 = vsel %vm383, %v2667, %v2668
        %v2670 = vrot.slane %v2603, 1
        %v2671 = vsel %vm383, %v2668, %v2670
        %v2672 = vrot.slane %v2604, 1
        %v2673 = vrot.slane %v2605, 1
        %v2674 = vsel %vm383, %v2672, %v2673
        %v2675 = vrot.slane %v2606, 1
        %v2676 = vsel %vm383, %v2673, %v2675
        %v2697 = vsel %vm383, %v2655, %v2652
        %v2698 = vsel %vm383, %v2660, %v2657
        %v2699 = vsel %vm383, %v2665, %v2662
        %v2700 = vsel %vm383, %v2670, %v2667
        %v2701 = vsel %vm383, %v2675, %v2672
        %v2702 = vmul.f32 %v2654, %v917
        %v2703 = vmul.f32 %v2656, %v917
        %v2704 = vmul.f32 %v2697, %v917
        %v2705 = vmul.f32 %v2659, %v917
        %v2706 = vmul.f32 %v2661, %v917
        %v2707 = vmul.f32 %v2698, %v917
        %v2708 = vmul.f32 %v2664, %v917
        %v2709 = vmul.f32 %v2666, %v917
        %v2710 = vmul.f32 %v2699, %v917
        %v2711 = vmul.f32 %v2669, %v917
        %v2712 = vmul.f32 %v2671, %v917
        %v2713 = vmul.f32 %v2700, %v917
        %v2714 = vmul.f32 %v2674, %v917
        %v2715 = vmul.f32 %v2676, %v917
        %v2716 = vmul.f32 %v2701, %v917
        %v2717 = vadd.f32 %v2622, %v2702
        %v2718 = vadd.f32 %v2623, %v2703
        %v2719 = vadd.f32 %v2624, %v2704
        %v2720 = vadd.f32 %v2625, %v2705
        %v2721 = vadd.f32 %v2626, %v2706
        %v2722 = vadd.f32 %v2627, %v2707
        %v2723 = vadd.f32 %v2628, %v2708
        %v2724 = vadd.f32 %v2629, %v2709
        %v2725 = vadd.f32 %v2630, %v2710
        %v2726 = vadd.f32 %v2631, %v2711
        %v2727 = vadd.f32 %v2632, %v2712
        %v2728 = vadd.f32 %v2633, %v2713
        %v2729 = vadd.f32 %v2634, %v2714
        %v2730 = vadd.f32 %v2635, %v2715
        %v2731 = vadd.f32 %v2636, %v2716
        %v2732 = vrot.slane %v2592, 2
        %v2733 = vrot.slane %v2593, 2
        %v2734 = vsel %vm470, %v2732, %v2733
        %v2735 = vrot.slane %v2594, 2
        %v2736 = vsel %vm470, %v2733, %v2735
        %v2737 = vrot.slane %v2595, 2
        %v2738 = vrot.slane %v2596, 2
        %v2739 = vsel %vm470, %v2737, %v2738
        %v2740 = vrot.slane %v2597, 2
        %v2741 = vsel %vm470, %v2738, %v2740
        %v2742 = vrot.slane %v2598, 2
        %v2743 = vrot.slane %v2599, 2
        %v2744 = vsel %vm470, %v2742, %v2743
        %v2745 = vrot.slane %v2600, 2
        %v2746 = vsel %vm470, %v2743, %v2745
        %v2747 = vrot.slane %v2601, 2
        %v2748 = vrot.slane %v2602, 2
        %v2749 = vsel %vm470, %v2747, %v2748
        %v2750 = vrot.slane %v2603, 2
        %v2751 = vsel %vm470, %v2748, %v2750
        %v2752 = vrot.slane %v2604, 2
        %v2753 = vrot.slane %v2605, 2
        %v2754 = vsel %vm470, %v2752, %v2753
        %v2755 = vrot.slane %v2606, 2
        %v2756 = vsel %vm470, %v2753, %v2755
        %v2777 = vsel %vm470, %v2735, %v2732
        %v2778 = vsel %vm470, %v2740, %v2737
        %v2779 = vsel %vm470, %v2745, %v2742
        %v2780 = vsel %vm470, %v2750, %v2747
        %v2781 = vsel %vm470, %v2755, %v2752
        %v2782 = vmul.f32 %v2734, %v1003
        %v2783 = vmul.f32 %v2736, %v1003
        %v2784 = vmul.f32 %v2777, %v1003
        %v2785 = vmul.f32 %v2739, %v1003
        %v2786 = vmul.f32 %v2741, %v1003
        %v2787 = vmul.f32 %v2778, %v1003
        %v2788 = vmul.f32 %v2744, %v1003
        %v2789 = vmul.f32 %v2746, %v1003
        %v2790 = vmul.f32 %v2779, %v1003
        %v2791 = vmul.f32 %v2749, %v1003
        %v2792 = vmul.f32 %v2751, %v1003
        %v2793 = vmul.f32 %v2780, %v1003
        %v2794 = vmul.f32 %v2754, %v1003
        %v2795 = vmul.f32 %v2756, %v1003
        %v2796 = vmul.f32 %v2781, %v1003
        %v2797 = vadd.f32 %v2717, %v2782
        %v2798 = vadd.f32 %v2718, %v2783
        %v2799 = vadd.f32 %v2719, %v2784
        %v2800 = vadd.f32 %v2720, %v2785
        %v2801 = vadd.f32 %v2721, %v2786
        %v2802 = vadd.f32 %v2722, %v2787
        %v2803 = vadd.f32 %v2723, %v2788
        %v2804 = vadd.f32 %v2724, %v2789
        %v2805 = vadd.f32 %v2725, %v2790
        %v2806 = vadd.f32 %v2726, %v2791
        %v2807 = vadd.f32 %v2727, %v2792
        %v2808 = vadd.f32 %v2728, %v2793
        %v2809 = vadd.f32 %v2729, %v2794
        %v2810 = vadd.f32 %v2730, %v2795
        %v2811 = vadd.f32 %v2731, %v2796
        %v2812 = vadd.f32 %v2797, %v1039
        %v2813 = vadd.f32 %v2798, %v1039
        %v2814 = vadd.f32 %v2799, %v1039
        %v2815 = vadd.f32 %v2800, %v1039
        %v2816 = vadd.f32 %v2801, %v1039
        %v2817 = vadd.f32 %v2802, %v1039
        %v2818 = vadd.f32 %v2803, %v1039
        %v2819 = vadd.f32 %v2804, %v1039
        %v2820 = vadd.f32 %v2805, %v1039
        %v2821 = vadd.f32 %v2806, %v1039
        %v2822 = vadd.f32 %v2807, %v1039
        %v2823 = vadd.f32 %v2808, %v1039
        %v2824 = vadd.f32 %v2809, %v1039
        %v2825 = vadd.f32 %v2810, %v1039
        %v2826 = vadd.f32 %v2811, %v1039
        %v2827 = vmax.f32 %v2812, 0.0
        %v2828 = vmax.f32 %v2813, 0.0
        %v2829 = vmax.f32 %v2814, 0.0
        %v2830 = vmax.f32 %v2815, 0.0
        %v2831 = vmax.f32 %v2816, 0.0
        %v2832 = vmax.f32 %v2817, 0.0
        %v2833 = vmax.f32 %v2818, 0.0
        %v2834 = vmax.f32 %v2819, 0.0
        %v2835 = vmax.f32 %v2820, 0.0
        %v2836 = vmax.f32 %v2821, 0.0
        %v2837 = vmax.f32 %v2822, 0.0
        %v2838 = vmax.f32 %v2823, 0.0
        %v2839 = vmax.f32 %v2824, 0.0
        %v2840 = vmax.f32 %v2825, 0.0
        %v2841 = vmax.f32 %v2826, 0.0
        %2842 = vmatprep.subr.mxu0 0.0
        %2843 = vmatpush1.msra.mxu0 %v295
        %2844 = vmatprep.subr.mxu0 0.0
        %2845 = vmatpush1.msra.mxu0 %v294
        %2846 = vmatprep.subr.mxu0 0.0
        %2847 = vmatpush1.msra.mxu0 %v293
        %2848 = vmatprep.subr.mxu0 0.0
        %2849 = vmatpush1.msra.mxu0 %v292
        %2850 = vmatprep.subr.mxu0 0.0
        %2851 = vmatpush1.msra.mxu0 %v291
        %2852 = vmatprep.subr.mxu0 0.0
        %2853 = vmatpush1.msra.mxu0 %v290
        %2854 = vmatprep.subr.mxu0 0.0
        %2855 = vmatpush1.msra.mxu0 %v289
        %2856 = vmatprep.subr.mxu0 0.0
        %2857 = vmatpush1.msra.mxu0 %v288
        %2858 = vmatprep.subr.mxu0 0.0
        %2859 = vmatpush1.msra.mxu0 %v287
        %2860 = vmatprep.subr.mxu0 0.0
        %2861 = vmatpush1.msra.mxu0 %v286
        %2862 = vmatprep.subr.mxu0 0.0
        %2863 = vmatpush1.msra.mxu0 %v285
        %2864 = vmatprep.subr.mxu0 0.0
        %2865 = vmatpush1.msra.mxu0 %v284
        %2866 = vmatprep.subr.mxu0 0.0
        %2867 = vmatpush1.msra.mxu0 %v283
        %2868 = vmatprep.subr.mxu0 0.0
        %2869 = vmatpush1.msra.mxu0 %v282
        %2870 = vmatprep.subr.mxu0 0.0
        %2871 = vmatpush1.msra.mxu0 %v281
        %2872 = vmatprep.subr.mxu0 0.0
        %2873 = vmatpush1.msra.mxu0 %v280
        %2874 = vmatprep.subr.mxu0 0.0
        %2875 = vmatpush2.msra.mxu0 0.0
        %2876 = vmatprep.subr.mxu0 0.0
        %2877 = vmatpush2.msra.mxu0 0.0
        %2878 = vmatprep.subr.mxu0 0.0
        %2879 = vmatpush2.msra.mxu0 0.0
        %2880 = vmatprep.subr.mxu0 0.0
        %2881 = vmatpush2.msra.mxu0 0.0
        %2882 = vmatprep.subr.mxu0 0.0
        %2883 = vmatpush2.msra.mxu0 0.0
        %2884 = vmatprep.subr.mxu0 0.0
        %2885 = vmatpush2.msra.mxu0 0.0
        %2886 = vmatprep.subr.mxu0 0.0
        %2887 = vmatpush2.msra.mxu0 0.0
        %2888 = vmatprep.subr.mxu0 0.0
        %2889 = vmatpush2.msra.mxu0 0.0
        %2890 = vmatprep.subr.mxu0 0.0
        %2891 = vmatpush2.msra.mxu0 0.0
        %2892 = vmatprep.subr.mxu0 0.0
        %2893 = vmatpush2.msra.mxu0 0.0
        %2894 = vmatprep.subr.mxu0 0.0
        %2895 = vmatpush2.msra.mxu0 0.0
        %2896 = vmatprep.subr.mxu0 0.0
        %2897 = vmatpush2.msra.mxu0 0.0
        %2898 = vmatprep.subr.mxu0 0.0
        %2899 = vmatpush2.msra.mxu0 0.0
        %2900 = vmatprep.subr.mxu0 0.0
        %2901 = vmatpush2.msra.mxu0 0.0
        %2902 = vmatprep.subr.mxu0 0.0
        %2903 = vmatpush2.msra.mxu0 0.0
        %2904 = vmatprep.subr.mxu0 0.0
        %2905 = vmatpush2.msra.mxu0 0.0
        %2906 = vmatprep.mubr.f32.mxu0 0.0
        %2907 = vmatmul.mubr.f32.gmra.mxu0 %v2827
        %v2908 = vpop.f32.mrf.mxu0
        %v2909 = vadd.f32 %v1075, %v2908
        %v2910 = vpop.f32.mrf.mxu0
        %2911 = vmatprep.mubr.f32.mxu0 0.0
        %2912 = vmatmul.mubr.f32.gmra.mxu0 %v2828
        %v2913 = vpop.f32.mrf.mxu0
        %v2914 = vadd.f32 %v1075, %v2913
        %v2915 = vpop.f32.mrf.mxu0
        %2916 = vmatprep.mubr.f32.mxu0 0.0
        %2917 = vmatmul.mubr.f32.gmra.mxu0 %v2829
        %v2918 = vpop.f32.mrf.mxu0
        %v2919 = vadd.f32 %v1075, %v2918
        %v2920 = vpop.f32.mrf.mxu0
        %2921 = vmatprep.mubr.f32.mxu0 0.0
        %2922 = vmatmul.mubr.f32.gmra.mxu0 %v2830
        %v2923 = vpop.f32.mrf.mxu0
        %v2924 = vadd.f32 %v1075, %v2923
        %v2925 = vpop.f32.mrf.mxu0
        %2926 = vmatprep.mubr.f32.mxu0 0.0
        %2927 = vmatmul.mubr.f32.gmra.mxu0 %v2831
        %v2928 = vpop.f32.mrf.mxu0
        %v2929 = vadd.f32 %v1075, %v2928
        %v2930 = vpop.f32.mrf.mxu0
        %2931 = vmatprep.mubr.f32.mxu0 0.0
        %2932 = vmatmul.mubr.f32.gmra.mxu0 %v2832
        %v2933 = vpop.f32.mrf.mxu0
        %v2934 = vadd.f32 %v1075, %v2933
        %v2935 = vpop.f32.mrf.mxu0
        %2936 = vmatprep.mubr.f32.mxu0 0.0
        %2937 = vmatmul.mubr.f32.gmra.mxu0 %v2833
        %v2938 = vpop.f32.mrf.mxu0
        %v2939 = vadd.f32 %v1075, %v2938
        %v2940 = vpop.f32.mrf.mxu0
        %2941 = vmatprep.mubr.f32.mxu0 0.0
        %2942 = vmatmul.mubr.f32.gmra.mxu0 %v2834
        %v2943 = vpop.f32.mrf.mxu0
        %v2944 = vadd.f32 %v1075, %v2943
        %v2945 = vpop.f32.mrf.mxu0
        %2946 = vmatprep.mubr.f32.mxu0 0.0
        %2947 = vmatmul.mubr.f32.gmra.mxu0 %v2835
        %v2948 = vpop.f32.mrf.mxu0
        %v2949 = vadd.f32 %v1075, %v2948
        %v2950 = vpop.f32.mrf.mxu0
        %2951 = vmatprep.mubr.f32.mxu0 0.0
        %2952 = vmatmul.mubr.f32.gmra.mxu0 %v2836
        %v2953 = vpop.f32.mrf.mxu0
        %v2954 = vadd.f32 %v1075, %v2953
        %v2955 = vpop.f32.mrf.mxu0
        %2956 = vmatprep.mubr.f32.mxu0 0.0
        %2957 = vmatmul.mubr.f32.gmra.mxu0 %v2837
        %v2958 = vpop.f32.mrf.mxu0
        %v2959 = vadd.f32 %v1075, %v2958
        %v2960 = vpop.f32.mrf.mxu0
        %2961 = vmatprep.mubr.f32.mxu0 0.0
        %2962 = vmatmul.mubr.f32.gmra.mxu0 %v2838
        %v2963 = vpop.f32.mrf.mxu0
        %v2964 = vadd.f32 %v1075, %v2963
        %v2965 = vpop.f32.mrf.mxu0
        %2966 = vmatprep.mubr.f32.mxu0 0.0
        %2967 = vmatmul.mubr.f32.gmra.mxu0 %v2839
        %v2968 = vpop.f32.mrf.mxu0
        %v2969 = vadd.f32 %v1075, %v2968
        %v2970 = vpop.f32.mrf.mxu0
        %2971 = vmatprep.mubr.f32.mxu0 0.0
        %2972 = vmatmul.mubr.f32.gmra.mxu0 %v2840
        %v2973 = vpop.f32.mrf.mxu0
        %v2974 = vadd.f32 %v1075, %v2973
        %v2975 = vpop.f32.mrf.mxu0
        %2976 = vmatprep.mubr.f32.mxu0 0.0
        %2977 = vmatmul.mubr.f32.gmra.mxu0 %v2841
        %v2978 = vpop.f32.mrf.mxu0
        %v2979 = vadd.f32 %v1075, %v2978
        %v2980 = vpop.f32.mrf.mxu0
        %2981 = vdwg.mxu0
        %v2982 = vmax.f32 %v2909, 0.0
        %v2983 = vmax.f32 %v2914, 0.0
        %v2984 = vmax.f32 %v2919, 0.0
        %v2985 = vmax.f32 %v2924, 0.0
        %v2986 = vmax.f32 %v2929, 0.0
        %v2987 = vmax.f32 %v2934, 0.0
        %v2988 = vmax.f32 %v2939, 0.0
        %v2989 = vmax.f32 %v2944, 0.0
        %v2990 = vmax.f32 %v2949, 0.0
        %v2991 = vmax.f32 %v2954, 0.0
        %v2992 = vmax.f32 %v2959, 0.0
        %v2993 = vmax.f32 %v2964, 0.0
        %v2994 = vmax.f32 %v2969, 0.0
        %v2995 = vmax.f32 %v2974, 0.0
        %v2996 = vmax.f32 %v2979, 0.0
        %s2997 = scalar_lea.vmem %s220, 240 [#allocation9]
        %2998 = vst [vmem:[%s2997] sm:$0xff] %v2982
        %2999 = vst [vmem:[%s2997 + $0x8] sm:$0xff] %v2983
        %3000 = vst [vmem:[%s2997 + $0x10] sm:$0xff] %v2984
        %3001 = vst [vmem:[%s2997 + $0x18] sm:$0xff] %v2985
        %3002 = vst [vmem:[%s2997 + $0x20] sm:$0xff] %v2986
        %3003 = vst [vmem:[%s2997 + $0x28] sm:$0xff] %v2987
        %3004 = vst [vmem:[%s2997 + $0x30] sm:$0xff] %v2988
        %3005 = vst [vmem:[%s2997 + $0x38] sm:$0xff] %v2989
        %3006 = vst [vmem:[%s2997 + $0x40] sm:$0xff] %v2990
        %3007 = vst [vmem:[%s2997 + $0x48] sm:$0xff] %v2991
        %3008 = vst [vmem:[%s2997 + $0x50] sm:$0xff] %v2992
        %3009 = vst [vmem:[%s2997 + $0x58] sm:$0xff] %v2993
        %3010 = vst [vmem:[%s2997 + $0x60] sm:$0xff] %v2994
        %3011 = vst [vmem:[%s2997 + $0x68] sm:$0xff] %v2995
        %3012 = vst [vmem:[%s2997 + $0x70] sm:$0xff] %v2996
        %s3013 = smul.u32 2, 1
        %s3014 = smul.u32 %s3013, 24
        %s3015 = smul.u32 %s3014, 1
        %s3016 = sshll.u32 %s3015, 4
        %3017 = dma.done %s2136, %s3016
        %v3018 = vld [vmem:[%s1252] sm:$0xff]
        %v3019 = vld [vmem:[%s1252 + $0x8] sm:$0xff]
        %v3020 = vld [vmem:[%s1252 + $0x10] sm:$0xff]
        %v3021 = vld [vmem:[%s1252 + $0x18] sm:$0xff]
        %v3022 = vld [vmem:[%s1252 + $0x20] sm:$0xff]
        %v3023 = vld [vmem:[%s1252 + $0x28] sm:$0xff]
        %v3024 = vld [vmem:[%s1252 + $0x30] sm:$0xff]
        %v3025 = vld [vmem:[%s1252 + $0x38] sm:$0xff]
        %v3026 = vld [vmem:[%s1252 + $0x40] sm:$0xff]
        %v3027 = vld [vmem:[%s1252 + $0x48] sm:$0xff]
        %v3028 = vld [vmem:[%s1252 + $0x50] sm:$0xff]
        %v3029 = vld [vmem:[%s1252 + $0x58] sm:$0xff]
        %v3030 = vld [vmem:[%s1252 + $0x60] sm:$0xff]
        %v3031 = vld [vmem:[%s1252 + $0x68] sm:$0xff]
        %v3032 = vld [vmem:[%s1252 + $0x70] sm:$0xff]
        %v3033 = vmul.f32 %v3018, %v336
        %v3034 = vmul.f32 %v3019, %v336
        %v3035 = vmul.f32 %v3020, %v336
        %v3036 = vmul.f32 %v3021, %v336
        %v3037 = vmul.f32 %v3022, %v336
        %v3038 = vmul.f32 %v3023, %v336
        %v3039 = vmul.f32 %v3024, %v336
        %v3040 = vmul.f32 %v3025, %v336
        %v3041 = vmul.f32 %v3026, %v336
        %v3042 = vmul.f32 %v3027, %v336
        %v3043 = vmul.f32 %v3028, %v336
        %v3044 = vmul.f32 %v3029, %v336
        %v3045 = vmul.f32 %v3030, %v336
        %v3046 = vmul.f32 %v3031, %v336
        %v3047 = vmul.f32 %v3032, %v336
        %v3048 = vadd.f32 %v3033, 0.0
        %v3049 = vadd.f32 %v3034, 0.0
        %v3050 = vadd.f32 %v3035, 0.0
        %v3051 = vadd.f32 %v3036, 0.0
        %v3052 = vadd.f32 %v3037, 0.0
        %v3053 = vadd.f32 %v3038, 0.0
        %v3054 = vadd.f32 %v3039, 0.0
        %v3055 = vadd.f32 %v3040, 0.0
        %v3056 = vadd.f32 %v3041, 0.0
        %v3057 = vadd.f32 %v3042, 0.0
        %v3058 = vadd.f32 %v3043, 0.0
        %v3059 = vadd.f32 %v3044, 0.0
        %v3060 = vadd.f32 %v3045, 0.0
        %v3061 = vadd.f32 %v3046, 0.0
        %v3062 = vadd.f32 %v3047, 0.0
        %v3078 = vrot.slane %v3018, 1
        %v3079 = vrot.slane %v3019, 1
        %v3080 = vsel %vm383, %v3078, %v3079
        %v3081 = vrot.slane %v3020, 1
        %v3082 = vsel %vm383, %v3079, %v3081
        %v3083 = vrot.slane %v3021, 1
        %v3084 = vrot.slane %v3022, 1
        %v3085 = vsel %vm383, %v3083, %v3084
        %v3086 = vrot.slane %v3023, 1
        %v3087 = vsel %vm383, %v3084, %v3086
        %v3088 = vrot.slane %v3024, 1
        %v3089 = vrot.slane %v3025, 1
        %v3090 = vsel %vm383, %v3088, %v3089
        %v3091 = vrot.slane %v3026, 1
        %v3092 = vsel %vm383, %v3089, %v3091
        %v3093 = vrot.slane %v3027, 1
        %v3094 = vrot.slane %v3028, 1
        %v3095 = vsel %vm383, %v3093, %v3094
        %v3096 = vrot.slane %v3029, 1
        %v3097 = vsel %vm383, %v3094, %v3096
        %v3098 = vrot.slane %v3030, 1
        %v3099 = vrot.slane %v3031, 1
        %v3100 = vsel %vm383, %v3098, %v3099
        %v3101 = vrot.slane %v3032, 1
        %v3102 = vsel %vm383, %v3099, %v3101
        %v3123 = vsel %vm383, %v3081, %v3078
        %v3124 = vsel %vm383, %v3086, %v3083
        %v3125 = vsel %vm383, %v3091, %v3088
        %v3126 = vsel %vm383, %v3096, %v3093
        %v3127 = vsel %vm383, %v3101, %v3098
        %v3128 = vmul.f32 %v3080, %v438
        %v3129 = vmul.f32 %v3082, %v438
        %v3130 = vmul.f32 %v3123, %v438
        %v3131 = vmul.f32 %v3085, %v438
        %v3132 = vmul.f32 %v3087, %v438
        %v3133 = vmul.f32 %v3124, %v438
        %v3134 = vmul.f32 %v3090, %v438
        %v3135 = vmul.f32 %v3092, %v438
        %v3136 = vmul.f32 %v3125, %v438
        %v3137 = vmul.f32 %v3095, %v438
        %v3138 = vmul.f32 %v3097, %v438
        %v3139 = vmul.f32 %v3126, %v438
        %v3140 = vmul.f32 %v3100, %v438
        %v3141 = vmul.f32 %v3102, %v438
        %v3142 = vmul.f32 %v3127, %v438
        %v3143 = vadd.f32 %v3048, %v3128
        %v3144 = vadd.f32 %v3049, %v3129
        %v3145 = vadd.f32 %v3050, %v3130
        %v3146 = vadd.f32 %v3051, %v3131
        %v3147 = vadd.f32 %v3052, %v3132
        %v3148 = vadd.f32 %v3053, %v3133
        %v3149 = vadd.f32 %v3054, %v3134
        %v3150 = vadd.f32 %v3055, %v3135
        %v3151 = vadd.f32 %v3056, %v3136
        %v3152 = vadd.f32 %v3057, %v3137
        %v3153 = vadd.f32 %v3058, %v3138
        %v3154 = vadd.f32 %v3059, %v3139
        %v3155 = vadd.f32 %v3060, %v3140
        %v3156 = vadd.f32 %v3061, %v3141
        %v3157 = vadd.f32 %v3062, %v3142
        %v3158 = vrot.slane %v3018, 2
        %v3159 = vrot.slane %v3019, 2
        %v3160 = vsel %vm470, %v3158, %v3159
        %v3161 = vrot.slane %v3020, 2
        %v3162 = vsel %vm470, %v3159, %v3161
        %v3163 = vrot.slane %v3021, 2
        %v3164 = vrot.slane %v3022, 2
        %v3165 = vsel %vm470, %v3163, %v3164
        %v3166 = vrot.slane %v3023, 2
        %v3167 = vsel %vm470, %v3164, %v3166
        %v3168 = vrot.slane %v3024, 2
        %v3169 = vrot.slane %v3025, 2
        %v3170 = vsel %vm470, %v3168, %v3169
        %v3171 = vrot.slane %v3026, 2
        %v3172 = vsel %vm470, %v3169, %v3171
        %v3173 = vrot.slane %v3027, 2
        %v3174 = vrot.slane %v3028, 2
        %v3175 = vsel %vm470, %v3173, %v3174
        %v3176 = vrot.slane %v3029, 2
        %v3177 = vsel %vm470, %v3174, %v3176
        %v3178 = vrot.slane %v3030, 2
        %v3179 = vrot.slane %v3031, 2
        %v3180 = vsel %vm470, %v3178, %v3179
        %v3181 = vrot.slane %v3032, 2
        %v3182 = vsel %vm470, %v3179, %v3181
        %v3203 = vsel %vm470, %v3161, %v3158
        %v3204 = vsel %vm470, %v3166, %v3163
        %v3205 = vsel %vm470, %v3171, %v3168
        %v3206 = vsel %vm470, %v3176, %v3173
        %v3207 = vsel %vm470, %v3181, %v3178
        %v3208 = vmul.f32 %v3160, %v525
        %v3209 = vmul.f32 %v3162, %v525
        %v3210 = vmul.f32 %v3203, %v525
        %v3211 = vmul.f32 %v3165, %v525
        %v3212 = vmul.f32 %v3167, %v525
        %v3213 = vmul.f32 %v3204, %v525
        %v3214 = vmul.f32 %v3170, %v525
        %v3215 = vmul.f32 %v3172, %v525
        %v3216 = vmul.f32 %v3205, %v525
        %v3217 = vmul.f32 %v3175, %v525
        %v3218 = vmul.f32 %v3177, %v525
        %v3219 = vmul.f32 %v3206, %v525
        %v3220 = vmul.f32 %v3180, %v525
        %v3221 = vmul.f32 %v3182, %v525
        %v3222 = vmul.f32 %v3207, %v525
        %v3223 = vadd.f32 %v3143, %v3208
        %v3224 = vadd.f32 %v3144, %v3209
        %v3225 = vadd.f32 %v3145, %v3210
        %v3226 = vadd.f32 %v3146, %v3211
        %v3227 = vadd.f32 %v3147, %v3212
        %v3228 = vadd.f32 %v3148, %v3213
        %v3229 = vadd.f32 %v3149, %v3214
        %v3230 = vadd.f32 %v3150, %v3215
        %v3231 = vadd.f32 %v3151, %v3216
        %v3232 = vadd.f32 %v3152, %v3217
        %v3233 = vadd.f32 %v3153, %v3218
        %v3234 = vadd.f32 %v3154, %v3219
        %v3235 = vadd.f32 %v3155, %v3220
        %v3236 = vadd.f32 %v3156, %v3221
        %v3237 = vadd.f32 %v3157, %v3222
        %s3238 = scalar_lea.vmem [#allocation2], 384
        %v3239 = vld [vmem:[%s3238] sm:$0xff]
        %v3240 = vld [vmem:[%s3238 + $0x8] sm:$0xff]
        %v3241 = vld [vmem:[%s3238 + $0x10] sm:$0xff]
        %v3242 = vld [vmem:[%s3238 + $0x18] sm:$0xff]
        %v3243 = vld [vmem:[%s3238 + $0x20] sm:$0xff]
        %v3244 = vld [vmem:[%s3238 + $0x28] sm:$0xff]
        %v3245 = vld [vmem:[%s3238 + $0x30] sm:$0xff]
        %v3246 = vld [vmem:[%s3238 + $0x38] sm:$0xff]
        %v3247 = vld [vmem:[%s3238 + $0x40] sm:$0xff]
        %v3248 = vld [vmem:[%s3238 + $0x48] sm:$0xff]
        %v3249 = vld [vmem:[%s3238 + $0x50] sm:$0xff]
        %v3250 = vld [vmem:[%s3238 + $0x58] sm:$0xff]
        %v3251 = vld [vmem:[%s3238 + $0x60] sm:$0xff]
        %v3252 = vld [vmem:[%s3238 + $0x68] sm:$0xff]
        %v3253 = vld [vmem:[%s3238 + $0x70] sm:$0xff]
        %v3254 = vmul.f32 %v3239, %v577
        %v3255 = vmul.f32 %v3240, %v577
        %v3256 = vmul.f32 %v3241, %v577
        %v3257 = vmul.f32 %v3242, %v577
        %v3258 = vmul.f32 %v3243, %v577
        %v3259 = vmul.f32 %v3244, %v577
        %v3260 = vmul.f32 %v3245, %v577
        %v3261 = vmul.f32 %v3246, %v577
        %v3262 = vmul.f32 %v3247, %v577
        %v3263 = vmul.f32 %v3248, %v577
        %v3264 = vmul.f32 %v3249, %v577
        %v3265 = vmul.f32 %v3250, %v577
        %v3266 = vmul.f32 %v3251, %v577
        %v3267 = vmul.f32 %v3252, %v577
        %v3268 = vmul.f32 %v3253, %v577
        %v3269 = vadd.f32 %v3223, %v3254
        %v3270 = vadd.f32 %v3224, %v3255
        %v3271 = vadd.f32 %v3225, %v3256
        %v3272 = vadd.f32 %v3226, %v3257
        %v3273 = vadd.f32 %v3227, %v3258
        %v3274 = vadd.f32 %v3228, %v3259
        %v3275 = vadd.f32 %v3229, %v3260
        %v3276 = vadd.f32 %v3230, %v3261
        %v3277 = vadd.f32 %v3231, %v3262
        %v3278 = vadd.f32 %v3232, %v3263
        %v3279 = vadd.f32 %v3233, %v3264
        %v3280 = vadd.f32 %v3234, %v3265
        %v3281 = vadd.f32 %v3235, %v3266
        %v3282 = vadd.f32 %v3236, %v3267
        %v3283 = vadd.f32 %v3237, %v3268
        %v3299 = vrot.slane %v3239, 1
        %v3300 = vrot.slane %v3240, 1
        %v3301 = vsel %vm383, %v3299, %v3300
        %v3302 = vrot.slane %v3241, 1
        %v3303 = vsel %vm383, %v3300, %v3302
        %v3304 = vrot.slane %v3242, 1
        %v3305 = vrot.slane %v3243, 1
        %v3306 = vsel %vm383, %v3304, %v3305
        %v3307 = vrot.slane %v3244, 1
        %v3308 = vsel %vm383, %v3305, %v3307
        %v3309 = vrot.slane %v3245, 1
        %v3310 = vrot.slane %v3246, 1
        %v3311 = vsel %vm383, %v3309, %v3310
        %v3312 = vrot.slane %v3247, 1
        %v3313 = vsel %vm383, %v3310, %v3312
        %v3314 = vrot.slane %v3248, 1
        %v3315 = vrot.slane %v3249, 1
        %v3316 = vsel %vm383, %v3314, %v3315
        %v3317 = vrot.slane %v3250, 1
        %v3318 = vsel %vm383, %v3315, %v3317
        %v3319 = vrot.slane %v3251, 1
        %v3320 = vrot.slane %v3252, 1
        %v3321 = vsel %vm383, %v3319, %v3320
        %v3322 = vrot.slane %v3253, 1
        %v3323 = vsel %vm383, %v3320, %v3322
        %v3344 = vsel %vm383, %v3302, %v3299
        %v3345 = vsel %vm383, %v3307, %v3304
        %v3346 = vsel %vm383, %v3312, %v3309
        %v3347 = vsel %vm383, %v3317, %v3314
        %v3348 = vsel %vm383, %v3322, %v3319
        %v3349 = vmul.f32 %v3301, %v678
        %v3350 = vmul.f32 %v3303, %v678
        %v3351 = vmul.f32 %v3344, %v678
        %v3352 = vmul.f32 %v3306, %v678
        %v3353 = vmul.f32 %v3308, %v678
        %v3354 = vmul.f32 %v3345, %v678
        %v3355 = vmul.f32 %v3311, %v678
        %v3356 = vmul.f32 %v3313, %v678
        %v3357 = vmul.f32 %v3346, %v678
        %v3358 = vmul.f32 %v3316, %v678
        %v3359 = vmul.f32 %v3318, %v678
        %v3360 = vmul.f32 %v3347, %v678
        %v3361 = vmul.f32 %v3321, %v678
        %v3362 = vmul.f32 %v3323, %v678
        %v3363 = vmul.f32 %v3348, %v678
        %v3364 = vadd.f32 %v3269, %v3349
        %v3365 = vadd.f32 %v3270, %v3350
        %v3366 = vadd.f32 %v3271, %v3351
        %v3367 = vadd.f32 %v3272, %v3352
        %v3368 = vadd.f32 %v3273, %v3353
        %v3369 = vadd.f32 %v3274, %v3354
        %v3370 = vadd.f32 %v3275, %v3355
        %v3371 = vadd.f32 %v3276, %v3356
        %v3372 = vadd.f32 %v3277, %v3357
        %v3373 = vadd.f32 %v3278, %v3358
        %v3374 = vadd.f32 %v3279, %v3359
        %v3375 = vadd.f32 %v3280, %v3360
        %v3376 = vadd.f32 %v3281, %v3361
        %v3377 = vadd.f32 %v3282, %v3362
        %v3378 = vadd.f32 %v3283, %v3363
        %v3379 = vrot.slane %v3239, 2
        %v3380 = vrot.slane %v3240, 2
        %v3381 = vsel %vm470, %v3379, %v3380
        %v3382 = vrot.slane %v3241, 2
        %v3383 = vsel %vm470, %v3380, %v3382
        %v3384 = vrot.slane %v3242, 2
        %v3385 = vrot.slane %v3243, 2
        %v3386 = vsel %vm470, %v3384, %v3385
        %v3387 = vrot.slane %v3244, 2
        %v3388 = vsel %vm470, %v3385, %v3387
        %v3389 = vrot.slane %v3245, 2
        %v3390 = vrot.slane %v3246, 2
        %v3391 = vsel %vm470, %v3389, %v3390
        %v3392 = vrot.slane %v3247, 2
        %v3393 = vsel %vm470, %v3390, %v3392
        %v3394 = vrot.slane %v3248, 2
        %v3395 = vrot.slane %v3249, 2
        %v3396 = vsel %vm470, %v3394, %v3395
        %v3397 = vrot.slane %v3250, 2
        %v3398 = vsel %vm470, %v3395, %v3397
        %v3399 = vrot.slane %v3251, 2
        %v3400 = vrot.slane %v3252, 2
        %v3401 = vsel %vm470, %v3399, %v3400
        %v3402 = vrot.slane %v3253, 2
        %v3403 = vsel %vm470, %v3400, %v3402
        %v3424 = vsel %vm470, %v3382, %v3379
        %v3425 = vsel %vm470, %v3387, %v3384
        %v3426 = vsel %vm470, %v3392, %v3389
        %v3427 = vsel %vm470, %v3397, %v3394
        %v3428 = vsel %vm470, %v3402, %v3399
        %v3429 = vmul.f32 %v3381, %v764
        %v3430 = vmul.f32 %v3383, %v764
        %v3431 = vmul.f32 %v3424, %v764
        %v3432 = vmul.f32 %v3386, %v764
        %v3433 = vmul.f32 %v3388, %v764
        %v3434 = vmul.f32 %v3425, %v764
        %v3435 = vmul.f32 %v3391, %v764
        %v3436 = vmul.f32 %v3393, %v764
        %v3437 = vmul.f32 %v3426, %v764
        %v3438 = vmul.f32 %v3396, %v764
        %v3439 = vmul.f32 %v3398, %v764
        %v3440 = vmul.f32 %v3427, %v764
        %v3441 = vmul.f32 %v3401, %v764
        %v3442 = vmul.f32 %v3403, %v764
        %v3443 = vmul.f32 %v3428, %v764
        %v3444 = vadd.f32 %v3364, %v3429
        %v3445 = vadd.f32 %v3365, %v3430
        %v3446 = vadd.f32 %v3366, %v3431
        %v3447 = vadd.f32 %v3367, %v3432
        %v3448 = vadd.f32 %v3368, %v3433
        %v3449 = vadd.f32 %v3369, %v3434
        %v3450 = vadd.f32 %v3370, %v3435
        %v3451 = vadd.f32 %v3371, %v3436
        %v3452 = vadd.f32 %v3372, %v3437
        %v3453 = vadd.f32 %v3373, %v3438
        %v3454 = vadd.f32 %v3374, %v3439
        %v3455 = vadd.f32 %v3375, %v3440
        %v3456 = vadd.f32 %v3376, %v3441
        %v3457 = vadd.f32 %v3377, %v3442
        %v3458 = vadd.f32 %v3378, %v3443
        %s3459 = scalar_lea.vmem [#allocation2], 408
        %v3460 = vld [vmem:[%s3459] sm:$0xff]
        %v3461 = vld [vmem:[%s3459 + $0x8] sm:$0xff]
        %v3462 = vld [vmem:[%s3459 + $0x10] sm:$0xff]
        %v3463 = vld [vmem:[%s3459 + $0x18] sm:$0xff]
        %v3464 = vld [vmem:[%s3459 + $0x20] sm:$0xff]
        %v3465 = vld [vmem:[%s3459 + $0x28] sm:$0xff]
        %v3466 = vld [vmem:[%s3459 + $0x30] sm:$0xff]
        %v3467 = vld [vmem:[%s3459 + $0x38] sm:$0xff]
        %v3468 = vld [vmem:[%s3459 + $0x40] sm:$0xff]
        %v3469 = vld [vmem:[%s3459 + $0x48] sm:$0xff]
        %v3470 = vld [vmem:[%s3459 + $0x50] sm:$0xff]
        %v3471 = vld [vmem:[%s3459 + $0x58] sm:$0xff]
        %v3472 = vld [vmem:[%s3459 + $0x60] sm:$0xff]
        %v3473 = vld [vmem:[%s3459 + $0x68] sm:$0xff]
        %v3474 = vld [vmem:[%s3459 + $0x70] sm:$0xff]
        %v3475 = vmul.f32 %v3460, %v816
        %v3476 = vmul.f32 %v3461, %v816
        %v3477 = vmul.f32 %v3462, %v816
        %v3478 = vmul.f32 %v3463, %v816
        %v3479 = vmul.f32 %v3464, %v816
        %v3480 = vmul.f32 %v3465, %v816
        %v3481 = vmul.f32 %v3466, %v816
        %v3482 = vmul.f32 %v3467, %v816
        %v3483 = vmul.f32 %v3468, %v816
        %v3484 = vmul.f32 %v3469, %v816
        %v3485 = vmul.f32 %v3470, %v816
        %v3486 = vmul.f32 %v3471, %v816
        %v3487 = vmul.f32 %v3472, %v816
        %v3488 = vmul.f32 %v3473, %v816
        %v3489 = vmul.f32 %v3474, %v816
        %v3490 = vadd.f32 %v3444, %v3475
        %v3491 = vadd.f32 %v3445, %v3476
        %v3492 = vadd.f32 %v3446, %v3477
        %v3493 = vadd.f32 %v3447, %v3478
        %v3494 = vadd.f32 %v3448, %v3479
        %v3495 = vadd.f32 %v3449, %v3480
        %v3496 = vadd.f32 %v3450, %v3481
        %v3497 = vadd.f32 %v3451, %v3482
        %v3498 = vadd.f32 %v3452, %v3483
        %v3499 = vadd.f32 %v3453, %v3484
        %v3500 = vadd.f32 %v3454, %v3485
        %v3501 = vadd.f32 %v3455, %v3486
        %v3502 = vadd.f32 %v3456, %v3487
        %v3503 = vadd.f32 %v3457, %v3488
        %v3504 = vadd.f32 %v3458, %v3489
        %v3520 = vrot.slane %v3460, 1
        %v3521 = vrot.slane %v3461, 1
        %v3522 = vsel %vm383, %v3520, %v3521
        %v3523 = vrot.slane %v3462, 1
        %v3524 = vsel %vm383, %v3521, %v3523
        %v3525 = vrot.slane %v3463, 1
        %v3526 = vrot.slane %v3464, 1
        %v3527 = vsel %vm383, %v3525, %v3526
        %v3528 = vrot.slane %v3465, 1
        %v3529 = vsel %vm383, %v3526, %v3528
        %v3530 = vrot.slane %v3466, 1
        %v3531 = vrot.slane %v3467, 1
        %v3532 = vsel %vm383, %v3530, %v3531
        %v3533 = vrot.slane %v3468, 1
        %v3534 = vsel %vm383, %v3531, %v3533
        %v3535 = vrot.slane %v3469, 1
        %v3536 = vrot.slane %v3470, 1
        %v3537 = vsel %vm383, %v3535, %v3536
        %v3538 = vrot.slane %v3471, 1
        %v3539 = vsel %vm383, %v3536, %v3538
        %v3540 = vrot.slane %v3472, 1
        %v3541 = vrot.slane %v3473, 1
        %v3542 = vsel %vm383, %v3540, %v3541
        %v3543 = vrot.slane %v3474, 1
        %v3544 = vsel %vm383, %v3541, %v3543
        %v3565 = vsel %vm383, %v3523, %v3520
        %v3566 = vsel %vm383, %v3528, %v3525
        %v3567 = vsel %vm383, %v3533, %v3530
        %v3568 = vsel %vm383, %v3538, %v3535
        %v3569 = vsel %vm383, %v3543, %v3540
        %v3570 = vmul.f32 %v3522, %v917
        %v3571 = vmul.f32 %v3524, %v917
        %v3572 = vmul.f32 %v3565, %v917
        %v3573 = vmul.f32 %v3527, %v917
        %v3574 = vmul.f32 %v3529, %v917
        %v3575 = vmul.f32 %v3566, %v917
        %v3576 = vmul.f32 %v3532, %v917
        %v3577 = vmul.f32 %v3534, %v917
        %v3578 = vmul.f32 %v3567, %v917
        %v3579 = vmul.f32 %v3537, %v917
        %v3580 = vmul.f32 %v3539, %v917
        %v3581 = vmul.f32 %v3568, %v917
        %v3582 = vmul.f32 %v3542, %v917
        %v3583 = vmul.f32 %v3544, %v917
        %v3584 = vmul.f32 %v3569, %v917
        %v3585 = vadd.f32 %v3490, %v3570
        %v3586 = vadd.f32 %v3491, %v3571
        %v3587 = vadd.f32 %v3492, %v3572
        %v3588 = vadd.f32 %v3493, %v3573
        %v3589 = vadd.f32 %v3494, %v3574
        %v3590 = vadd.f32 %v3495, %v3575
        %v3591 = vadd.f32 %v3496, %v3576
        %v3592 = vadd.f32 %v3497, %v3577
        %v3593 = vadd.f32 %v3498, %v3578
        %v3594 = vadd.f32 %v3499, %v3579
        %v3595 = vadd.f32 %v3500, %v3580
        %v3596 = vadd.f32 %v3501, %v3581
        %v3597 = vadd.f32 %v3502, %v3582
        %v3598 = vadd.f32 %v3503, %v3583
        %v3599 = vadd.f32 %v3504, %v3584
        %v3600 = vrot.slane %v3460, 2
        %v3601 = vrot.slane %v3461, 2
        %v3602 = vsel %vm470, %v3600, %v3601
        %v3603 = vrot.slane %v3462, 2
        %v3604 = vsel %vm470, %v3601, %v3603
        %v3605 = vrot.slane %v3463, 2
        %v3606 = vrot.slane %v3464, 2
        %v3607 = vsel %vm470, %v3605, %v3606
        %v3608 = vrot.slane %v3465, 2
        %v3609 = vsel %vm470, %v3606, %v3608
        %v3610 = vrot.slane %v3466, 2
        %v3611 = vrot.slane %v3467, 2
        %v3612 = vsel %vm470, %v3610, %v3611
        %v3613 = vrot.slane %v3468, 2
        %v3614 = vsel %vm470, %v3611, %v3613
        %v3615 = vrot.slane %v3469, 2
        %v3616 = vrot.slane %v3470, 2
        %v3617 = vsel %vm470, %v3615, %v3616
        %v3618 = vrot.slane %v3471, 2
        %v3619 = vsel %vm470, %v3616, %v3618
        %v3620 = vrot.slane %v3472, 2
        %v3621 = vrot.slane %v3473, 2
        %v3622 = vsel %vm470, %v3620, %v3621
        %v3623 = vrot.slane %v3474, 2
        %v3624 = vsel %vm470, %v3621, %v3623
        %v3645 = vsel %vm470, %v3603, %v3600
        %v3646 = vsel %vm470, %v3608, %v3605
        %v3647 = vsel %vm470, %v3613, %v3610
        %v3648 = vsel %vm470, %v3618, %v3615
        %v3649 = vsel %vm470, %v3623, %v3620
        %v3650 = vmul.f32 %v3602, %v1003
        %v3651 = vmul.f32 %v3604, %v1003
        %v3652 = vmul.f32 %v3645, %v1003
        %v3653 = vmul.f32 %v3607, %v1003
        %v3654 = vmul.f32 %v3609, %v1003
        %v3655 = vmul.f32 %v3646, %v1003
        %v3656 = vmul.f32 %v3612, %v1003
        %v3657 = vmul.f32 %v3614, %v1003
        %v3658 = vmul.f32 %v3647, %v1003
        %v3659 = vmul.f32 %v3617, %v1003
        %v3660 = vmul.f32 %v3619, %v1003
        %v3661 = vmul.f32 %v3648, %v1003
        %v3662 = vmul.f32 %v3622, %v1003
        %v3663 = vmul.f32 %v3624, %v1003
        %v3664 = vmul.f32 %v3649, %v1003
        %v3665 = vadd.f32 %v3585, %v3650
        %v3666 = vadd.f32 %v3586, %v3651
        %v3667 = vadd.f32 %v3587, %v3652
        %v3668 = vadd.f32 %v3588, %v3653
        %v3669 = vadd.f32 %v3589, %v3654
        %v3670 = vadd.f32 %v3590, %v3655
        %v3671 = vadd.f32 %v3591, %v3656
        %v3672 = vadd.f32 %v3592, %v3657
        %v3673 = vadd.f32 %v3593, %v3658
        %v3674 = vadd.f32 %v3594, %v3659
        %v3675 = vadd.f32 %v3595, %v3660
        %v3676 = vadd.f32 %v3596, %v3661
        %v3677 = vadd.f32 %v3597, %v3662
        %v3678 = vadd.f32 %v3598, %v3663
        %v3679 = vadd.f32 %v3599, %v3664
        %v3680 = vadd.f32 %v3665, %v1039
        %v3681 = vadd.f32 %v3666, %v1039
        %v3682 = vadd.f32 %v3667, %v1039
        %v3683 = vadd.f32 %v3668, %v1039
        %v3684 = vadd.f32 %v3669, %v1039
        %v3685 = vadd.f32 %v3670, %v1039
        %v3686 = vadd.f32 %v3671, %v1039
        %v3687 = vadd.f32 %v3672, %v1039
        %v3688 = vadd.f32 %v3673, %v1039
        %v3689 = vadd.f32 %v3674, %v1039
        %v3690 = vadd.f32 %v3675, %v1039
        %v3691 = vadd.f32 %v3676, %v1039
        %v3692 = vadd.f32 %v3677, %v1039
        %v3693 = vadd.f32 %v3678, %v1039
        %v3694 = vadd.f32 %v3679, %v1039
        %v3695 = vmax.f32 %v3680, 0.0
        %v3696 = vmax.f32 %v3681, 0.0
        %v3697 = vmax.f32 %v3682, 0.0
        %v3698 = vmax.f32 %v3683, 0.0
        %v3699 = vmax.f32 %v3684, 0.0
        %v3700 = vmax.f32 %v3685, 0.0
        %v3701 = vmax.f32 %v3686, 0.0
        %v3702 = vmax.f32 %v3687, 0.0
        %v3703 = vmax.f32 %v3688, 0.0
        %v3704 = vmax.f32 %v3689, 0.0
        %v3705 = vmax.f32 %v3690, 0.0
        %v3706 = vmax.f32 %v3691, 0.0
        %v3707 = vmax.f32 %v3692, 0.0
        %v3708 = vmax.f32 %v3693, 0.0
        %v3709 = vmax.f32 %v3694, 0.0
        %3710 = vmatprep.subr.mxu0 0.0
        %3711 = vmatpush1.msra.mxu0 %v295
        %3712 = vmatprep.subr.mxu0 0.0
        %3713 = vmatpush1.msra.mxu0 %v294
        %3714 = vmatprep.subr.mxu0 0.0
        %3715 = vmatpush1.msra.mxu0 %v293
        %3716 = vmatprep.subr.mxu0 0.0
        %3717 = vmatpush1.msra.mxu0 %v292
        %3718 = vmatprep.subr.mxu0 0.0
        %3719 = vmatpush1.msra.mxu0 %v291
        %3720 = vmatprep.subr.mxu0 0.0
        %3721 = vmatpush1.msra.mxu0 %v290
        %3722 = vmatprep.subr.mxu0 0.0
        %3723 = vmatpush1.msra.mxu0 %v289
        %3724 = vmatprep.subr.mxu0 0.0
        %3725 = vmatpush1.msra.mxu0 %v288
        %3726 = vmatprep.subr.mxu0 0.0
        %3727 = vmatpush1.msra.mxu0 %v287
        %3728 = vmatprep.subr.mxu0 0.0
        %3729 = vmatpush1.msra.mxu0 %v286
        %3730 = vmatprep.subr.mxu0 0.0
        %3731 = vmatpush1.msra.mxu0 %v285
        %3732 = vmatprep.subr.mxu0 0.0
        %3733 = vmatpush1.msra.mxu0 %v284
        %3734 = vmatprep.subr.mxu0 0.0
        %3735 = vmatpush1.msra.mxu0 %v283
        %3736 = vmatprep.subr.mxu0 0.0
        %3737 = vmatpush1.msra.mxu0 %v282
        %3738 = vmatprep.subr.mxu0 0.0
        %3739 = vmatpush1.msra.mxu0 %v281
        %3740 = vmatprep.subr.mxu0 0.0
        %3741 = vmatpush1.msra.mxu0 %v280
        %3742 = vmatprep.subr.mxu0 0.0
        %3743 = vmatpush2.msra.mxu0 0.0
        %3744 = vmatprep.subr.mxu0 0.0
        %3745 = vmatpush2.msra.mxu0 0.0
        %3746 = vmatprep.subr.mxu0 0.0
        %3747 = vmatpush2.msra.mxu0 0.0
        %3748 = vmatprep.subr.mxu0 0.0
        %3749 = vmatpush2.msra.mxu0 0.0
        %3750 = vmatprep.subr.mxu0 0.0
        %3751 = vmatpush2.msra.mxu0 0.0
        %3752 = vmatprep.subr.mxu0 0.0
        %3753 = vmatpush2.msra.mxu0 0.0
        %3754 = vmatprep.subr.mxu0 0.0
        %3755 = vmatpush2.msra.mxu0 0.0
        %3756 = vmatprep.subr.mxu0 0.0
        %3757 = vmatpush2.msra.mxu0 0.0
        %3758 = vmatprep.subr.mxu0 0.0
        %3759 = vmatpush2.msra.mxu0 0.0
        %3760 = vmatprep.subr.mxu0 0.0
        %3761 = vmatpush2.msra.mxu0 0.0
        %3762 = vmatprep.subr.mxu0 0.0
        %3763 = vmatpush2.msra.mxu0 0.0
        %3764 = vmatprep.subr.mxu0 0.0
        %3765 = vmatpush2.msra.mxu0 0.0
        %3766 = vmatprep.subr.mxu0 0.0
        %3767 = vmatpush2.msra.mxu0 0.0
        %3768 = vmatprep.subr.mxu0 0.0
        %3769 = vmatpush2.msra.mxu0 0.0
        %3770 = vmatprep.subr.mxu0 0.0
        %3771 = vmatpush2.msra.mxu0 0.0
        %3772 = vmatprep.subr.mxu0 0.0
        %3773 = vmatpush2.msra.mxu0 0.0
        %3774 = vmatprep.mubr.f32.mxu0 0.0
        %3775 = vmatmul.mubr.f32.gmra.mxu0 %v3695
        %v3776 = vpop.f32.mrf.mxu0
        %v3777 = vadd.f32 %v1075, %v3776
        %v3778 = vpop.f32.mrf.mxu0
        %3779 = vmatprep.mubr.f32.mxu0 0.0
        %3780 = vmatmul.mubr.f32.gmra.mxu0 %v3696
        %v3781 = vpop.f32.mrf.mxu0
        %v3782 = vadd.f32 %v1075, %v3781
        %v3783 = vpop.f32.mrf.mxu0
        %3784 = vmatprep.mubr.f32.mxu0 0.0
        %3785 = vmatmul.mubr.f32.gmra.mxu0 %v3697
        %v3786 = vpop.f32.mrf.mxu0
        %v3787 = vadd.f32 %v1075, %v3786
        %v3788 = vpop.f32.mrf.mxu0
        %3789 = vmatprep.mubr.f32.mxu0 0.0
        %3790 = vmatmul.mubr.f32.gmra.mxu0 %v3698
        %v3791 = vpop.f32.mrf.mxu0
        %v3792 = vadd.f32 %v1075, %v3791
        %v3793 = vpop.f32.mrf.mxu0
        %3794 = vmatprep.mubr.f32.mxu0 0.0
        %3795 = vmatmul.mubr.f32.gmra.mxu0 %v3699
        %v3796 = vpop.f32.mrf.mxu0
        %v3797 = vadd.f32 %v1075, %v3796
        %v3798 = vpop.f32.mrf.mxu0
        %3799 = vmatprep.mubr.f32.mxu0 0.0
        %3800 = vmatmul.mubr.f32.gmra.mxu0 %v3700
        %v3801 = vpop.f32.mrf.mxu0
        %v3802 = vadd.f32 %v1075, %v3801
        %v3803 = vpop.f32.mrf.mxu0
        %3804 = vmatprep.mubr.f32.mxu0 0.0
        %3805 = vmatmul.mubr.f32.gmra.mxu0 %v3701
        %v3806 = vpop.f32.mrf.mxu0
        %v3807 = vadd.f32 %v1075, %v3806
        %v3808 = vpop.f32.mrf.mxu0
        %3809 = vmatprep.mubr.f32.mxu0 0.0
        %3810 = vmatmul.mubr.f32.gmra.mxu0 %v3702
        %v3811 = vpop.f32.mrf.mxu0
        %v3812 = vadd.f32 %v1075, %v3811
        %v3813 = vpop.f32.mrf.mxu0
        %3814 = vmatprep.mubr.f32.mxu0 0.0
        %3815 = vmatmul.mubr.f32.gmra.mxu0 %v3703
        %v3816 = vpop.f32.mrf.mxu0
        %v3817 = vadd.f32 %v1075, %v3816
        %v3818 = vpop.f32.mrf.mxu0
        %3819 = vmatprep.mubr.f32.mxu0 0.0
        %3820 = vmatmul.mubr.f32.gmra.mxu0 %v3704
        %v3821 = vpop.f32.mrf.mxu0
        %v3822 = vadd.f32 %v1075, %v3821
        %v3823 = vpop.f32.mrf.mxu0
        %3824 = vmatprep.mubr.f32.mxu0 0.0
        %3825 = vmatmul.mubr.f32.gmra.mxu0 %v3705
        %v3826 = vpop.f32.mrf.mxu0
        %v3827 = vadd.f32 %v1075, %v3826
        %v3828 = vpop.f32.mrf.mxu0
        %3829 = vmatprep.mubr.f32.mxu0 0.0
        %3830 = vmatmul.mubr.f32.gmra.mxu0 %v3706
        %v3831 = vpop.f32.mrf.mxu0
        %v3832 = vadd.f32 %v1075, %v3831
        %v3833 = vpop.f32.mrf.mxu0
        %3834 = vmatprep.mubr.f32.mxu0 0.0
        %3835 = vmatmul.mubr.f32.gmra.mxu0 %v3707
        %v3836 = vpop.f32.mrf.mxu0
        %v3837 = vadd.f32 %v1075, %v3836
        %v3838 = vpop.f32.mrf.mxu0
        %3839 = vmatprep.mubr.f32.mxu0 0.0
        %3840 = vmatmul.mubr.f32.gmra.mxu0 %v3708
        %v3841 = vpop.f32.mrf.mxu0
        %v3842 = vadd.f32 %v1075, %v3841
        %v3843 = vpop.f32.mrf.mxu0
        %3844 = vmatprep.mubr.f32.mxu0 0.0
        %3845 = vmatmul.mubr.f32.gmra.mxu0 %v3709
        %v3846 = vpop.f32.mrf.mxu0
        %v3847 = vadd.f32 %v1075, %v3846
        %v3848 = vpop.f32.mrf.mxu0
        %3849 = vdwg.mxu0
        %v3850 = vmax.f32 %v3777, 0.0
        %v3851 = vmax.f32 %v3782, 0.0
        %v3852 = vmax.f32 %v3787, 0.0
        %v3853 = vmax.f32 %v3792, 0.0
        %v3854 = vmax.f32 %v3797, 0.0
        %v3855 = vmax.f32 %v3802, 0.0
        %v3856 = vmax.f32 %v3807, 0.0
        %v3857 = vmax.f32 %v3812, 0.0
        %v3858 = vmax.f32 %v3817, 0.0
        %v3859 = vmax.f32 %v3822, 0.0
        %v3860 = vmax.f32 %v3827, 0.0
        %v3861 = vmax.f32 %v3832, 0.0
        %v3862 = vmax.f32 %v3837, 0.0
        %v3863 = vmax.f32 %v3842, 0.0
        %v3864 = vmax.f32 %v3847, 0.0
        %s3865 = scalar_lea.vmem %s220, 360 [#allocation9]
        %3866 = vst [vmem:[%s3865] sm:$0xff] %v3850
        %3867 = vst [vmem:[%s3865 + $0x8] sm:$0xff] %v3851
        %3868 = vst [vmem:[%s3865 + $0x10] sm:$0xff] %v3852
        %3869 = vst [vmem:[%s3865 + $0x18] sm:$0xff] %v3853
        %3870 = vst [vmem:[%s3865 + $0x20] sm:$0xff] %v3854
        %3871 = vst [vmem:[%s3865 + $0x28] sm:$0xff] %v3855
        %3872 = vst [vmem:[%s3865 + $0x30] sm:$0xff] %v3856
        %3873 = vst [vmem:[%s3865 + $0x38] sm:$0xff] %v3857
        %3874 = vst [vmem:[%s3865 + $0x40] sm:$0xff] %v3858
        %3875 = vst [vmem:[%s3865 + $0x48] sm:$0xff] %v3859
        %3876 = vst [vmem:[%s3865 + $0x50] sm:$0xff] %v3860
        %3877 = vst [vmem:[%s3865 + $0x58] sm:$0xff] %v3861
        %3878 = vst [vmem:[%s3865 + $0x60] sm:$0xff] %v3862
        %3879 = vst [vmem:[%s3865 + $0x68] sm:$0xff] %v3863
        %3880 = vst [vmem:[%s3865 + $0x70] sm:$0xff] %v3864
        %s3881 = sand.u32 %s127, 1
        %s3882 = scalar_lea.sflag [#allocation6], %s3881
        %s3883 = sand.u32 %s127, 1
        %s3884 = smul.addr %s3883, 480
        %s3885 = scalar_lea.vmem [#allocation9], %s3884
        // Predicated region
        $region65: #{tpu_custom_call.1} parent=35 // pred_check
          %p3886 = pneg %p137
        $region66: #{tpu_custom_call.1} parent=35 // pred_check_branch
          %3888 = sbr.rel (%p3886) target = $region68
        $region67: #{tpu_custom_call.1} parent=35 // pred_region
          %s3889 = smul.u32 20, %s26
          %s3891 = ssub.s32 7680, 7680
          %3892 = vsyncadd %s3882, %s3891
          %s3893 = smul.addr %s3889, 3
          %s3894 = smul.addr %s25, 60
          %s3895 = sadd.s32 %s3893, %s3894
          %s3896 = smul.addr %s3895, 128
          %s3897 = scalar_lea.hbm %s5, %s3896
          %s3898 = sshll.u32 %s3885, 4
          %s3899 = int_to_ptr.vmem [resolvable:$true] %s3898
          %3904 = dma.vmem_to_hbm [thread:$0]  %s3899, 7680, %s3897, %s3882, 128, 128, 8
        $region68: #{tpu_custom_call.1} parent=35 // pred_fallthru
          _
      $region36: #{tpu_custom_call.1} parent=5 // pred_fallthru
        _
      %p3905 = scmp.le.s32.totalorder 2, %s16
      // Predicated region
      $region69: #{tpu_custom_call.1} parent=5 // pred_check
        %p3906 = pneg %p3905
      $region70: #{tpu_custom_call.1} parent=5 // pred_check_branch
        %3908 = sbr.rel (%p3906) target = $region72
      $region71: #{tpu_custom_call.1} parent=5 // pred_region
        %s3909 = ssub.s32 %s16, 2
        // Predicated region
        $region73: #{tpu_custom_call.1} parent=71 // pred_check
          %p3910 = pneg %p143
        $region74: #{tpu_custom_call.1} parent=71 // pred_check_branch
          %3912 = sbr.rel (%p3910) target = $region76
        $region75: #{tpu_custom_call.1} parent=71 // pred_region
          %s3913 = sand.u32 %s128, 1
          %s3914 = scalar_lea.sflag [#allocation6], %s3913
          %s3915 = sand.u32 %s128, 1
          %s3916 = smul.addr %s3915, 480
          %s3917 = scalar_lea.vmem [#allocation9], %s3916
          %3918 = dma.done %s3914, 7680
        $region76: #{tpu_custom_call.1} parent=71 // pred_fallthru
          _
      $region72: #{tpu_custom_call.1} parent=5 // pred_fallthru
        _
    $region6: #{tpu_custom_call.1} parent=1 // loop_footer
      %s20 = sadd.s32 1, %s16
    $region7: #{tpu_custom_call.1} parent=1 // loop_footer_branch
      %15 = sbr.rel target = $region3
    $region8: #{tpu_custom_call.1} parent=1 // loop_exit
      _
    %3919 = vsyncpa [#allocation5], 1
    %s3920 = scalar_lea.sflag [#allocation5], 1
    %3921 = vsyncpa %s3920, 1
    %3922 = vsyncpa [#allocation8], 1
    %3923 = vsyncpa [#allocation6], 1
    %s3924 = scalar_lea.sflag [#allocation6], 1
    %3925 = vsyncpa %s3924, 1
  %3926 = vsyncmov [#allocation3]
  %s3927 = vpop.sfrf %3926
  %p3928 = scmp.eq.s32.totalorder %s3927, 0
  %p3929 = pneg %p3928
  %3931 = shalt.err (%p3929)
  %s3932 = scalar_lea.sflag [#allocation3], 1
  %3933 = vsyncmov %s3932
  %s3934 = vpop.sfrf %3933
  %p3935 = scmp.eq.s32.totalorder %s3934, 0
  %p3936 = pneg %p3935
  %3938 = shalt.err (%p3936)
  %s3939 = scalar_lea.sflag [#allocation3], 2
  %3940 = vsyncmov %s3939
  %s3941 = vpop.sfrf %3940
  %p3942 = scmp.eq.s32.totalorder %s3941, 0
  %p3943 = pneg %p3942
  %3945 = shalt.err (%p3943)
  %s3946 = scalar_lea.sflag [#allocation3], 3
  %3947 = vsyncmov %s3946
  %s3948 = vpop.sfrf %3947
  %p3949 = scmp.eq.s32.totalorder %s3948, 0
  %p3950 = pneg %p3949
  %3952 = shalt.err (%p3950)
  %s3953 = scalar_lea.sflag [#allocation3], 4
  %3954 = vsyncmov %s3953
  %s3955 = vpop.sfrf %3954
  %p3956 = scmp.eq.s32.totalorder %s3955, 0
  %p3957 = pneg %p3956
  %3959 = shalt.err (%p3957)

</llo_original>
